<compile_context>
chip_gen: v5e
topology: v5e:2x2
jax: 0.10.0
libtpu: 0.0.40
codegen_flags: <defaults>
</compile_context>

<pallas_src>
import functools

import jax
import jax.numpy as jnp
from jax.experimental import pallas as pl
from jax.experimental.pallas import tpu as pltpu


def _round_up(x, m):
    return (x + m - 1) // m * m


# -----------------------------------------------------------------------------
# Pallas kernel: complex 3-D "valid" convolution of the whole (batch-folded)
# volume as a reduced im2col + 3 accumulating MXU matmuls.
# -----------------------------------------------------------------------------
def _complex_conv3d_kernel(x_ref, w_ref, o_ref, p_ref, *,
                           tap_offsets, c2, m_cols, kw_taps):
    """x_ref: (2Cin, Lpad)   bf16  sym-padded volume; rows = [re chans, im chans],
                             columns = flattened (n, d, h, w) of the padded grid.
       w_ref: (KW, 2Fp, K')  bf16  block-complex weights, K' = KD*KH*2Cin,
                             K' ordered (kd, kh, c); one slab per kw tap.
       o_ref: (2Fp, Mp)      f32   lane-dense flat output columns.
       p_ref: (K', Mp)       bf16  im2col scratch over the (kd, kh) taps only.
    """
    # Assemble the reduced im2col: 9 large contiguous shifted-window copies with
    # static (Python int) column offsets.
    # TODO(synk): destination stripes are only 2Cin sublanes (sub-tile stores);
    # a >=16-row bf16 stripe layout would make these fully unmasked.
    for t, off in enumerate(tap_offsets):
        p_ref[t * c2:(t + 1) * c2, :] = x_ref[:, off:off + m_cols]

    p = p_ref[...]

    # kw = 0 tap: deep-contraction MXU matmul, f32 accumulation, lane-dense store.
    o_ref[...] = jnp.dot(w_ref[0], p, preferred_element_type=jnp.float32)

    # kw = 1..KW-1 taps: same matmul, result shifted left by kw output columns
    # and accumulated (shifting the tiny (2Fp, Mp) result is far cheaper than
    # shifting the K'-row operand).  Columns beyond Mp-kw are crop-garbage.
    for kw in range(1, kw_taps):
        r = jnp.dot(w_ref[kw], p, preferred_element_type=jnp.float32)
        o_ref[:, :m_cols - kw] += r[:, kw:]


# -----------------------------------------------------------------------------
# Wrapper: ComplexPadConv3D.forward  (stride=1, dilation=1, groups=1, bias=None)
# -----------------------------------------------------------------------------
def complex_pad_conv3d(x, weight):
    N, Cin, D, H, W, _ = x.shape
    F, _, KD, KH, KW, _ = weight.shape
    pd, ph, pw = KD // 2, KH // 2, KW // 2

    # complex_pad3d: pad real & imag parts with symmetric padding.
    # TODO(synk): optox complex_pad3d source not provided; 'symmetric' assumed.
    xp = jnp.pad(x, ((0, 0), (0, 0), (pd, pd), (ph, ph), (pw, pw), (0, 0)),
                 mode="symmetric")
    Dp, Hp, Wp = D + 2 * pd, H + 2 * ph, W + 2 * pw
    hw = Hp * Wp
    vol = Dp * hw                 # padded per-batch volume (flat columns/batch)
    c2 = 2 * Cin

    # Stack re/im on the channel axis; fold batch into the flat column axis.
    # TODO(synk): this pad/concat/transpose glue is 2-3 extra HBM passes; for
    # production sizes do the symmetric padding in-kernel (pl.ANY + manual DMA).
    x_st = jnp.concatenate([xp[..., 0], xp[..., 1]], axis=1)        # (N, 2Cin, Dp, Hp, Wp)
    x_t = jnp.transpose(x_st, (1, 0, 2, 3, 4)).reshape(c2, N * vol)

    m_cols = _round_up(N * vol, 128)              # lane-dense output column count
    max_off = (KD - 1) * hw + (KH - 1) * Wp       # largest (kd, kh) tap shift
    l_pad = _round_up(max_off + m_cols, 128)      # keeps all window reads in-bounds
    x_flat = jnp.pad(x_t, ((0, 0), (0, l_pad - N * vol))).astype(jnp.bfloat16)

    # Real block weight [[re, -im], [im, re]] -> (KW, 2Fp, K'), K' ordered (kd,kh,c);
    # output rows padded to a full 8-row sublane group (unmasked stores).
    k_re, k_im = weight[..., 0], weight[..., 1]
    top = jnp.concatenate([k_re, -k_im], axis=1)                    # (F, 2Cin, KD, KH, KW)
    bot = jnp.concatenate([k_im, k_re], axis=1)
    w_blk = jnp.concatenate([top, bot], axis=0)                     # (2F, 2Cin, KD, KH, KW)
    f2p = _round_up(2 * F, 8)
    w_blk = jnp.pad(w_blk, ((0, f2p - 2 * F), (0, 0), (0, 0), (0, 0), (0, 0)))
    kprime = KD * KH * c2
    w_mat = jnp.transpose(w_blk, (4, 0, 2, 3, 1)).reshape(KW, f2p, kprime)
    w_mat = w_mat.astype(jnp.bfloat16)

    tap_offsets = tuple(kd * hw + kh * Wp for kd in range(KD) for kh in range(KH))

    kernel = functools.partial(
        _complex_conv3d_kernel,
        tap_offsets=tap_offsets, c2=c2, m_cols=m_cols, kw_taps=KW)

    out = pl.pallas_call(
        kernel,
        out_shape=jax.ShapeDtypeStruct((f2p, m_cols), jnp.float32),
        grid=(1,),
        in_specs=[
            pl.BlockSpec((c2, l_pad), lambda i: (0, 0)),
            pl.BlockSpec((KW, f2p, kprime), lambda i: (0, 0, 0)),
        ],
        out_specs=pl.BlockSpec((f2p, m_cols), lambda i: (0, 0)),
        scratch_shapes=[pltpu.VMEM((kprime, m_cols), jnp.bfloat16)],
        compiler_params=pltpu.CompilerParams(dimension_semantics=("arbitrary",)),
        # TODO(synk): for production MRI sizes, add a column (D) tile grid axis
        # with manual halo DMA (memory_space=pl.ANY), set vmem_limit_bytes
        # explicitly (v7x: 64 MiB physical VMEM) and mark the tile axis
        # "parallel" for v7x's 2 TensorCores; at these sizes one block fits.
    )(x_flat, w_mat)

    # Crop the flat columns back to (N, 2F, D, H, W) and split real/imag.
    # Columns with d>=D / h>=H / w>=W (and the lane-padding tail) are garbage by
    # construction and are removed here.
    out = out[:2 * F, :N * vol].reshape(2 * F, N, Dp, Hp, Wp)[:, :, :D, :H, :W]
    out = jnp.transpose(out, (1, 0, 2, 3, 4))                       # (N, 2F, D, H, W)
    return jnp.stack([out[:, :F], out[:, F:]], axis=-1)             # (N, F, D, H, W, 2)


# -----------------------------------------------------------------------------
# Parameter construction (deterministic, mirrors module __init__)
# -----------------------------------------------------------------------------
def _glorot_complex_weight(key, filters, in_channels, k):
    fan_in = in_channels * k[0] * k[1] * k[2]
    fan_out = filters * k[0] * k[1] * k[2]
    std = (2.0 / (fan_in + fan_out)) ** 0.5
    return std * jax.random.normal(key, (filters, in_channels, *k, 2), jnp.float32)


def _project_weight(w, zero_mean, bound_norm):
    # weight.proj(True): surface projection applied at init time.
    if zero_mean:
        w = w - jnp.mean(w, axis=(1, 2, 3, 4), keepdims=True)
    if bound_norm:
        norm = jnp.sqrt(jnp.sum(w ** 2, axis=(1, 2, 3, 4, 5), keepdims=True))
        w = w / norm
    return w


class ComplexPadConv2Dt:
    """stride=1 path: conv_xy (zero_mean, bound_norm) -> conv_t (bound_norm)."""

    def __init__(self, key, in_channels, intermediate_filters, filters, kernel_size=3):
        k = (kernel_size,) * 3
        k1, k2 = jax.random.split(key)
        w_xy = _glorot_complex_weight(k1, intermediate_filters, in_channels, k)
        self.w_xy = _project_weight(w_xy, zero_mean=True, bound_norm=True)
        w_t = _glorot_complex_weight(k2, filters, intermediate_filters, k)
        self.w_t = _project_weight(w_t, zero_mean=False, bound_norm=True)

    def __call__(self, x):
        # TODO(synk): the two stages could be fused into one pallas_call keeping
        # the intermediate (+ its symmetric-pad halo) in VMEM, halving HBM
        # traffic; kept as two calls for robustness.
        x_sp = complex_pad_conv3d(x, self.w_xy)
        x_t = complex_pad_conv3d(x_sp, self.w_t)
        return x_t


# -----------------------------------------------------------------------------
# Pure-JAX f32 reference (semantics of ComplexPadConv3D.forward) for verification
# -----------------------------------------------------------------------------
def _ref_complex_pad_conv3d(x, w):
    pd, ph, pw = w.shape[2] // 2, w.shape[3] // 2, w.shape[4] // 2
    xp = jnp.pad(x, ((0, 0), (0, 0), (pd, pd), (ph, ph), (pw, pw), (0, 0)),
                 mode="symmetric")

    def conv(a, k):
        return jax.lax.conv_general_dilated(
            a, k, window_strides=(1, 1, 1), padding="VALID",
            dimension_numbers=("NCDHW", "OIDHW", "NCDHW"))

    xr, xi = xp[..., 0], xp[..., 1]
    kr, ki = w[..., 0], w[..., 1]
    re = conv(xr, kr) - conv(xi, ki)
    im = conv(xi, kr) + conv(xr, ki)
    return jnp.stack([re, im], axis=-1)


if __name__ == "__main__":
    key = jax.random.PRNGKey(0)
    k_param, k_x = jax.random.split(key)

    # small shapes: batch=2, in_channels=2, D(time)=6, H=W=8, complex last dim=2
    N, Cin, D, H, W = 2, 2, 6, 8, 8
    intermediate_filters, filters = 4, 3

    x = jax.random.normal(k_x, (N, Cin, D, H, W, 2), jnp.float32)

    model = ComplexPadConv2Dt(k_param, Cin, intermediate_filters, filters, kernel_size=3)

    fwd = jax.jit(lambda inp: model(inp))
    out = jax.block_until_ready(fwd(x))
    assert out.shape == (N, filters, D, H, W, 2), out.shape

    # verify against the pure-JAX f32 reference of the same forward semantics.
    # Tolerance is deliberately relaxed (5e-2) because the kernel uses bf16
    # operands (with f32 accumulation) across two chained conv stages.
    ref = _ref_complex_pad_conv3d(_ref_complex_pad_conv3d(x, model.w_xy), model.w_t)
    assert jnp.allclose(out, ref, atol=5e-2, rtol=5e-2), float(jnp.max(jnp.abs(out - ref)))

    print("KERNEL_OK")
</pallas_src>

<mosaic_0001>
module attributes {stable_mosaic.version = 11 : i64} {
  func.func @_complex_conv3d_kernel(%arg0: i32, %arg1: memref<4x1920xbf16, #tpu.memory_space<vmem>>, %arg2: memref<3x8x36xbf16, #tpu.memory_space<vmem>>, %arg3: memref<8x1664xf32, #tpu.memory_space<vmem>>, %arg4: memref<36x1664xbf16, #tpu.memory_space<vmem>>) attributes {dimension_semantics = [#tpu.dimension_semantics<arbitrary>], iteration_bounds = array<i64: 1>, scalar_prefetch = 0 : i64, scratch_operands = 1 : i64, tpu.core_type = #tpu.core_type<tc>, window_params = [{pipeline_mode = #tpu.pipeline_mode<synchronous>, transform_indices = @transform_0, window_bounds = array<i64: 4, 1920>}, {pipeline_mode = #tpu.pipeline_mode<synchronous>, transform_indices = @transform_1, window_bounds = array<i64: 3, 8, 36>}, {pipeline_mode = #tpu.pipeline_mode<synchronous>, transform_indices = @transform_2, window_bounds = array<i64: 8, 1664>}]} {
    %c0 = arith.constant 0 : index
    %c0_0 = arith.constant 0 : index
    %0 = vector.load %arg1[%c0, %c0_0] : memref<4x1920xbf16, #tpu.memory_space<vmem>>, vector<4x1664xbf16>
    %c0_1 = arith.constant 0 : index
    %c0_2 = arith.constant 0 : index
    %1 = vector.load %arg4[%c0_1, %c0_2] : memref<36x1664xbf16, #tpu.memory_space<vmem>>, vector<4x1664xbf16>
    tpu.vector_store %arg4[%c0_1, %c0_2], %0 {strides = array<i32>} : memref<36x1664xbf16, #tpu.memory_space<vmem>>, vector<4x1664xbf16>,
    %c0_3 = arith.constant 0 : index
    %c10 = arith.constant 10 : index
    %2 = vector.load %arg1[%c0_3, %c10] : memref<4x1920xbf16, #tpu.memory_space<vmem>>, vector<4x1664xbf16>
    %c4 = arith.constant 4 : index
    %c0_4 = arith.constant 0 : index
    %3 = vector.load %arg4[%c4, %c0_4] : memref<36x1664xbf16, #tpu.memory_space<vmem>>, vector<4x1664xbf16>
    tpu.vector_store %arg4[%c4, %c0_4], %2 {strides = array<i32>} : memref<36x1664xbf16, #tpu.memory_space<vmem>>, vector<4x1664xbf16>,
    %c0_5 = arith.constant 0 : index
    %c20 = arith.constant 20 : index
    %4 = vector.load %arg1[%c0_5, %c20] : memref<4x1920xbf16, #tpu.memory_space<vmem>>, vector<4x1664xbf16>
    %c8 = arith.constant 8 : index
    %c0_6 = arith.constant 0 : index
    %5 = vector.load %arg4[%c8, %c0_6] : memref<36x1664xbf16, #tpu.memory_space<vmem>>, vector<4x1664xbf16>
    tpu.vector_store %arg4[%c8, %c0_6], %4 {strides = array<i32>} : memref<36x1664xbf16, #tpu.memory_space<vmem>>, vector<4x1664xbf16>,
    %c0_7 = arith.constant 0 : index
    %c100 = arith.constant 100 : index
    %6 = vector.load %arg1[%c0_7, %c100] : memref<4x1920xbf16, #tpu.memory_space<vmem>>, vector<4x1664xbf16>
    %c12 = arith.constant 12 : index
    %c0_8 = arith.constant 0 : index
    %7 = vector.load %arg4[%c12, %c0_8] : memref<36x1664xbf16, #tpu.memory_space<vmem>>, vector<4x1664xbf16>
    tpu.vector_store %arg4[%c12, %c0_8], %6 {strides = array<i32>} : memref<36x1664xbf16, #tpu.memory_space<vmem>>, vector<4x1664xbf16>,
    %c0_9 = arith.constant 0 : index
    %c110 = arith.constant 110 : index
    %8 = vector.load %arg1[%c0_9, %c110] : memref<4x1920xbf16, #tpu.memory_space<vmem>>, vector<4x1664xbf16>
    %c16 = arith.constant 16 : index
    %c0_10 = arith.constant 0 : index
    %9 = vector.load %arg4[%c16, %c0_10] : memref<36x1664xbf16, #tpu.memory_space<vmem>>, vector<4x1664xbf16>
    tpu.vector_store %arg4[%c16, %c0_10], %8 {strides = array<i32>} : memref<36x1664xbf16, #tpu.memory_space<vmem>>, vector<4x1664xbf16>,
    %c0_11 = arith.constant 0 : index
    %c120 = arith.constant 120 : index
    %10 = vector.load %arg1[%c0_11, %c120] : memref<4x1920xbf16, #tpu.memory_space<vmem>>, vector<4x1664xbf16>
    %c20_12 = arith.constant 20 : index
    %c0_13 = arith.constant 0 : index
    %11 = vector.load %arg4[%c20_12, %c0_13] : memref<36x1664xbf16, #tpu.memory_space<vmem>>, vector<4x1664xbf16>
    tpu.vector_store %arg4[%c20_12, %c0_13], %10 {strides = array<i32>} : memref<36x1664xbf16, #tpu.memory_space<vmem>>, vector<4x1664xbf16>,
    %c0_14 = arith.constant 0 : index
    %c200 = arith.constant 200 : index
    %12 = vector.load %arg1[%c0_14, %c200] : memref<4x1920xbf16, #tpu.memory_space<vmem>>, vector<4x1664xbf16>
    %c24 = arith.constant 24 : index
    %c0_15 = arith.constant 0 : index
    %13 = vector.load %arg4[%c24, %c0_15] : memref<36x1664xbf16, #tpu.memory_space<vmem>>, vector<4x1664xbf16>
    tpu.vector_store %arg4[%c24, %c0_15], %12 {strides = array<i32>} : memref<36x1664xbf16, #tpu.memory_space<vmem>>, vector<4x1664xbf16>,
    %c0_16 = arith.constant 0 : index
    %c210 = arith.constant 210 : index
    %14 = vector.load %arg1[%c0_16, %c210] : memref<4x1920xbf16, #tpu.memory_space<vmem>>, vector<4x1664xbf16>
    %c28 = arith.constant 28 : index
    %c0_17 = arith.constant 0 : index
    %15 = vector.load %arg4[%c28, %c0_17] : memref<36x1664xbf16, #tpu.memory_space<vmem>>, vector<4x1664xbf16>
    tpu.vector_store %arg4[%c28, %c0_17], %14 {strides = array<i32>} : memref<36x1664xbf16, #tpu.memory_space<vmem>>, vector<4x1664xbf16>,
    %c0_18 = arith.constant 0 : index
    %c220 = arith.constant 220 : index
    %16 = vector.load %arg1[%c0_18, %c220] : memref<4x1920xbf16, #tpu.memory_space<vmem>>, vector<4x1664xbf16>
    %c32 = arith.constant 32 : index
    %c0_19 = arith.constant 0 : index
    %17 = vector.load %arg4[%c32, %c0_19] : memref<36x1664xbf16, #tpu.memory_space<vmem>>, vector<4x1664xbf16>
    tpu.vector_store %arg4[%c32, %c0_19], %16 {strides = array<i32>} : memref<36x1664xbf16, #tpu.memory_space<vmem>>, vector<4x1664xbf16>,
    %c0_20 = arith.constant 0 : index
    %c0_21 = arith.constant 0 : index
    %18 = vector.load %arg4[%c0_20, %c0_21] : memref<36x1664xbf16, #tpu.memory_space<vmem>>, vector<36x1664xbf16>
    %c0_22 = arith.constant 0 : index
    %c0_23 = arith.constant 0 : index
    %c0_24 = arith.constant 0 : index
    %19 = vector.load %arg2[%c0_22, %c0_23, %c0_24] : memref<3x8x36xbf16, #tpu.memory_space<vmem>>, vector<1x8x36xbf16>
    %20 = vector.shape_cast %19 : vector<1x8x36xbf16> to vector<8x36xbf16>
    %cst = arith.constant dense<0.000000e+00> : vector<8x1664xf32>
    %21 = tpu.matmul %20, %18, %cst {dimension_numbers = #tpu.dot_dimension_numbers<[1], [0], [0], [1], [0, 0, 1, 1], [], []>} : vector<8x36xbf16>, vector<36x1664xbf16>, vector<8x1664xf32> -> vector<8x1664xf32>
    %c0_25 = arith.constant 0 : index
    %c0_26 = arith.constant 0 : index
    %22 = vector.load %arg3[%c0_25, %c0_26] : memref<8x1664xf32, #tpu.memory_space<vmem>>, vector<8x1664xf32>
    tpu.vector_store %arg3[%c0_25, %c0_26], %21 {strides = array<i32>} : memref<8x1664xf32, #tpu.memory_space<vmem>>, vector<8x1664xf32>,
    %c1 = arith.constant 1 : index
    %c0_27 = arith.constant 0 : index
    %c0_28 = arith.constant 0 : index
    %23 = vector.load %arg2[%c1, %c0_27, %c0_28] : memref<3x8x36xbf16, #tpu.memory_space<vmem>>, vector<1x8x36xbf16>
    %24 = vector.shape_cast %23 : vector<1x8x36xbf16> to vector<8x36xbf16>
    %cst_29 = arith.constant dense<0.000000e+00> : vector<8x1664xf32>
    %25 = tpu.matmul %24, %18, %cst_29 {dimension_numbers = #tpu.dot_dimension_numbers<[1], [0], [0], [1], [0, 0, 1, 1], [], []>} : vector<8x36xbf16>, vector<36x1664xbf16>, vector<8x1664xf32> -> vector<8x1664xf32>
    %c0_30 = arith.constant 0 : index
    %c0_31 = arith.constant 0 : index
    %26 = vector.load %arg3[%c0_30, %c0_31] : memref<8x1664xf32, #tpu.memory_space<vmem>>, vector<8x1663xf32>
    %27 = vector.extract_strided_slice %25 {offsets = [0, 1], sizes = [8, 1663], strides = [1, 1]} : vector<8x1664xf32> to vector<8x1663xf32>
    %28 = arith.addf %26, %27 : vector<8x1663xf32>
    %c0_32 = arith.constant 0 : index
    %c0_33 = arith.constant 0 : index
    %29 = vector.load %arg3[%c0_32, %c0_33] : memref<8x1664xf32, #tpu.memory_space<vmem>>, vector<8x1663xf32>
    tpu.vector_store %arg3[%c0_32, %c0_33], %28 {strides = array<i32>} : memref<8x1664xf32, #tpu.memory_space<vmem>>, vector<8x1663xf32>,
    %c2 = arith.constant 2 : index
    %c0_34 = arith.constant 0 : index
    %c0_35 = arith.constant 0 : index
    %30 = vector.load %arg2[%c2, %c0_34, %c0_35] : memref<3x8x36xbf16, #tpu.memory_space<vmem>>, vector<1x8x36xbf16>
    %31 = vector.shape_cast %30 : vector<1x8x36xbf16> to vector<8x36xbf16>
    %cst_36 = arith.constant dense<0.000000e+00> : vector<8x1664xf32>
    %32 = tpu.matmul %31, %18, %cst_36 {dimension_numbers = #tpu.dot_dimension_numbers<[1], [0], [0], [1], [0, 0, 1, 1], [], []>} : vector<8x36xbf16>, vector<36x1664xbf16>, vector<8x1664xf32> -> vector<8x1664xf32>
    %c0_37 = arith.constant 0 : index
    %c0_38 = arith.constant 0 : index
    %33 = vector.load %arg3[%c0_37, %c0_38] : memref<8x1664xf32, #tpu.memory_space<vmem>>, vector<8x1662xf32>
    %34 = vector.extract_strided_slice %32 {offsets = [0, 2], sizes = [8, 1662], strides = [1, 1]} : vector<8x1664xf32> to vector<8x1662xf32>
    %35 = arith.addf %33, %34 : vector<8x1662xf32>
    %c0_39 = arith.constant 0 : index
    %c0_40 = arith.constant 0 : index
    %36 = vector.load %arg3[%c0_39, %c0_40] : memref<8x1664xf32, #tpu.memory_space<vmem>>, vector<8x1662xf32>
    tpu.vector_store %arg3[%c0_39, %c0_40], %35 {strides = array<i32>} : memref<8x1664xf32, #tpu.memory_space<vmem>>, vector<8x1662xf32>,
    return
  }
  func.func @transform_0(%arg0: i32) -> (i32, i32) {
    %c0_i32 = arith.constant 0 : i32
    %c0_i32_0 = arith.constant 0 : i32
    %c0_i32_1 = arith.constant 0 : i32
    return %c0_i32, %c0_i32_0 : i32, i32
  }
  func.func @transform_1(%arg0: i32) -> (i32, i32, i32) {
    %c0_i32 = arith.constant 0 : i32
    %c0_i32_0 = arith.constant 0 : i32
    %c0_i32_1 = arith.constant 0 : i32
    %c0_i32_2 = arith.constant 0 : i32
    return %c0_i32, %c0_i32_0, %c0_i32_1 : i32, i32, i32
  }
  func.func @transform_2(%arg0: i32) -> (i32, i32) {
    %c0_i32 = arith.constant 0 : i32
    %c0_i32_0 = arith.constant 0 : i32
    %c0_i32_1 = arith.constant 0 : i32
    return %c0_i32, %c0_i32_0 : i32, i32
  }
}

module attributes {stable_mosaic.version = 11 : i64} {
  func.func @_complex_conv3d_kernel(%arg0: i32, %arg1: memref<8x1920xbf16, #tpu.memory_space<vmem>>, %arg2: memref<3x8x72xbf16, #tpu.memory_space<vmem>>, %arg3: memref<8x1664xf32, #tpu.memory_space<vmem>>, %arg4: memref<72x1664xbf16, #tpu.memory_space<vmem>>) attributes {dimension_semantics = [#tpu.dimension_semantics<arbitrary>], iteration_bounds = array<i64: 1>, scalar_prefetch = 0 : i64, scratch_operands = 1 : i64, tpu.core_type = #tpu.core_type<tc>, window_params = [{pipeline_mode = #tpu.pipeline_mode<synchronous>, transform_indices = @transform_0, window_bounds = array<i64: 8, 1920>}, {pipeline_mode = #tpu.pipeline_mode<synchronous>, transform_indices = @transform_1, window_bounds = array<i64: 3, 8, 72>}, {pipeline_mode = #tpu.pipeline_mode<synchronous>, transform_indices = @transform_2, window_bounds = array<i64: 8, 1664>}]} {
    %c0 = arith.constant 0 : index
    %c0_0 = arith.constant 0 : index
    %0 = vector.load %arg1[%c0, %c0_0] : memref<8x1920xbf16, #tpu.memory_space<vmem>>, vector<8x1664xbf16>
    %c0_1 = arith.constant 0 : index
    %c0_2 = arith.constant 0 : index
    %1 = vector.load %arg4[%c0_1, %c0_2] : memref<72x1664xbf16, #tpu.memory_space<vmem>>, vector<8x1664xbf16>
    tpu.vector_store %arg4[%c0_1, %c0_2], %0 {strides = array<i32>} : memref<72x1664xbf16, #tpu.memory_space<vmem>>, vector<8x1664xbf16>,
    %c0_3 = arith.constant 0 : index
    %c10 = arith.constant 10 : index
    %2 = vector.load %arg1[%c0_3, %c10] : memref<8x1920xbf16, #tpu.memory_space<vmem>>, vector<8x1664xbf16>
    %c8 = arith.constant 8 : index
    %c0_4 = arith.constant 0 : index
    %3 = vector.load %arg4[%c8, %c0_4] : memref<72x1664xbf16, #tpu.memory_space<vmem>>, vector<8x1664xbf16>
    tpu.vector_store %arg4[%c8, %c0_4], %2 {strides = array<i32>} : memref<72x1664xbf16, #tpu.memory_space<vmem>>, vector<8x1664xbf16>,
    %c0_5 = arith.constant 0 : index
    %c20 = arith.constant 20 : index
    %4 = vector.load %arg1[%c0_5, %c20] : memref<8x1920xbf16, #tpu.memory_space<vmem>>, vector<8x1664xbf16>
    %c16 = arith.constant 16 : index
    %c0_6 = arith.constant 0 : index
    %5 = vector.load %arg4[%c16, %c0_6] : memref<72x1664xbf16, #tpu.memory_space<vmem>>, vector<8x1664xbf16>
    tpu.vector_store %arg4[%c16, %c0_6], %4 {strides = array<i32>} : memref<72x1664xbf16, #tpu.memory_space<vmem>>, vector<8x1664xbf16>,
    %c0_7 = arith.constant 0 : index
    %c100 = arith.constant 100 : index
    %6 = vector.load %arg1[%c0_7, %c100] : memref<8x1920xbf16, #tpu.memory_space<vmem>>, vector<8x1664xbf16>
    %c24 = arith.constant 24 : index
    %c0_8 = arith.constant 0 : index
    %7 = vector.load %arg4[%c24, %c0_8] : memref<72x1664xbf16, #tpu.memory_space<vmem>>, vector<8x1664xbf16>
    tpu.vector_store %arg4[%c24, %c0_8], %6 {strides = array<i32>} : memref<72x1664xbf16, #tpu.memory_space<vmem>>, vector<8x1664xbf16>,
    %c0_9 = arith.constant 0 : index
    %c110 = arith.constant 110 : index
    %8 = vector.load %arg1[%c0_9, %c110] : memref<8x1920xbf16, #tpu.memory_space<vmem>>, vector<8x1664xbf16>
    %c32 = arith.constant 32 : index
    %c0_10 = arith.constant 0 : index
    %9 = vector.load %arg4[%c32, %c0_10] : memref<72x1664xbf16, #tpu.memory_space<vmem>>, vector<8x1664xbf16>
    tpu.vector_store %arg4[%c32, %c0_10], %8 {strides = array<i32>} : memref<72x1664xbf16, #tpu.memory_space<vmem>>, vector<8x1664xbf16>,
    %c0_11 = arith.constant 0 : index
    %c120 = arith.constant 120 : index
    %10 = vector.load %arg1[%c0_11, %c120] : memref<8x1920xbf16, #tpu.memory_space<vmem>>, vector<8x1664xbf16>
    %c40 = arith.constant 40 : index
    %c0_12 = arith.constant 0 : index
    %11 = vector.load %arg4[%c40, %c0_12] : memref<72x1664xbf16, #tpu.memory_space<vmem>>, vector<8x1664xbf16>
    tpu.vector_store %arg4[%c40, %c0_12], %10 {strides = array<i32>} : memref<72x1664xbf16, #tpu.memory_space<vmem>>, vector<8x1664xbf16>,
    %c0_13 = arith.constant 0 : index
    %c200 = arith.constant 200 : index
    %12 = vector.load %arg1[%c0_13, %c200] : memref<8x1920xbf16, #tpu.memory_space<vmem>>, vector<8x1664xbf16>
    %c48 = arith.constant 48 : index
    %c0_14 = arith.constant 0 : index
    %13 = vector.load %arg4[%c48, %c0_14] : memref<72x1664xbf16, #tpu.memory_space<vmem>>, vector<8x1664xbf16>
    tpu.vector_store %arg4[%c48, %c0_14], %12 {strides = array<i32>} : memref<72x1664xbf16, #tpu.memory_space<vmem>>, vector<8x1664xbf16>,
    %c0_15 = arith.constant 0 : index
    %c210 = arith.constant 210 : index
    %14 = vector.load %arg1[%c0_15, %c210] : memref<8x1920xbf16, #tpu.memory_space<vmem>>, vector<8x1664xbf16>
    %c56 = arith.constant 56 : index
    %c0_16 = arith.constant 0 : index
    %15 = vector.load %arg4[%c56, %c0_16] : memref<72x1664xbf16, #tpu.memory_space<vmem>>, vector<8x1664xbf16>
    tpu.vector_store %arg4[%c56, %c0_16], %14 {strides = array<i32>} : memref<72x1664xbf16, #tpu.memory_space<vmem>>, vector<8x1664xbf16>,
    %c0_17 = arith.constant 0 : index
    %c220 = arith.constant 220 : index
    %16 = vector.load %arg1[%c0_17, %c220] : memref<8x1920xbf16, #tpu.memory_space<vmem>>, vector<8x1664xbf16>
    %c64 = arith.constant 64 : index
    %c0_18 = arith.constant 0 : index
    %17 = vector.load %arg4[%c64, %c0_18] : memref<72x1664xbf16, #tpu.memory_space<vmem>>, vector<8x1664xbf16>
    tpu.vector_store %arg4[%c64, %c0_18], %16 {strides = array<i32>} : memref<72x1664xbf16, #tpu.memory_space<vmem>>, vector<8x1664xbf16>,
    %c0_19 = arith.constant 0 : index
    %c0_20 = arith.constant 0 : index
    %18 = vector.load %arg4[%c0_19, %c0_20] : memref<72x1664xbf16, #tpu.memory_space<vmem>>, vector<72x1664xbf16>
    %c0_21 = arith.constant 0 : index
    %c0_22 = arith.constant 0 : index
    %c0_23 = arith.constant 0 : index
    %19 = vector.load %arg2[%c0_21, %c0_22, %c0_23] : memref<3x8x72xbf16, #tpu.memory_space<vmem>>, vector<1x8x72xbf16>
    %20 = vector.shape_cast %19 : vector<1x8x72xbf16> to vector<8x72xbf16>
    %cst = arith.constant dense<0.000000e+00> : vector<8x1664xf32>
    %21 = tpu.matmul %20, %18, %cst {dimension_numbers = #tpu.dot_dimension_numbers<[1], [0], [0], [1], [0, 0, 1, 1], [], []>} : vector<8x72xbf16>, vector<72x1664xbf16>, vector<8x1664xf32> -> vector<8x1664xf32>
    %c0_24 = arith.constant 0 : index
    %c0_25 = arith.constant 0 : index
    %22 = vector.load %arg3[%c0_24, %c0_25] : memref<8x1664xf32, #tpu.memory_space<vmem>>, vector<8x1664xf32>
    tpu.vector_store %arg3[%c0_24, %c0_25], %21 {strides = array<i32>} : memref<8x1664xf32, #tpu.memory_space<vmem>>, vector<8x1664xf32>,
    %c1 = arith.constant 1 : index
    %c0_26 = arith.constant 0 : index
    %c0_27 = arith.constant 0 : index
    %23 = vector.load %arg2[%c1, %c0_26, %c0_27] : memref<3x8x72xbf16, #tpu.memory_space<vmem>>, vector<1x8x72xbf16>
    %24 = vector.shape_cast %23 : vector<1x8x72xbf16> to vector<8x72xbf16>
    %cst_28 = arith.constant dense<0.000000e+00> : vector<8x1664xf32>
    %25 = tpu.matmul %24, %18, %cst_28 {dimension_numbers = #tpu.dot_dimension_numbers<[1], [0], [0], [1], [0, 0, 1, 1], [], []>} : vector<8x72xbf16>, vector<72x1664xbf16>, vector<8x1664xf32> -> vector<8x1664xf32>
    %c0_29 = arith.constant 0 : index
    %c0_30 = arith.constant 0 : index
    %26 = vector.load %arg3[%c0_29, %c0_30] : memref<8x1664xf32, #tpu.memory_space<vmem>>, vector<8x1663xf32>
    %27 = vector.extract_strided_slice %25 {offsets = [0, 1], sizes = [8, 1663], strides = [1, 1]} : vector<8x1664xf32> to vector<8x1663xf32>
    %28 = arith.addf %26, %27 : vector<8x1663xf32>
    %c0_31 = arith.constant 0 : index
    %c0_32 = arith.constant 0 : index
    %29 = vector.load %arg3[%c0_31, %c0_32] : memref<8x1664xf32, #tpu.memory_space<vmem>>, vector<8x1663xf32>
    tpu.vector_store %arg3[%c0_31, %c0_32], %28 {strides = array<i32>} : memref<8x1664xf32, #tpu.memory_space<vmem>>, vector<8x1663xf32>,
    %c2 = arith.constant 2 : index
    %c0_33 = arith.constant 0 : index
    %c0_34 = arith.constant 0 : index
    %30 = vector.load %arg2[%c2, %c0_33, %c0_34] : memref<3x8x72xbf16, #tpu.memory_space<vmem>>, vector<1x8x72xbf16>
    %31 = vector.shape_cast %30 : vector<1x8x72xbf16> to vector<8x72xbf16>
    %cst_35 = arith.constant dense<0.000000e+00> : vector<8x1664xf32>
    %32 = tpu.matmul %31, %18, %cst_35 {dimension_numbers = #tpu.dot_dimension_numbers<[1], [0], [0], [1], [0, 0, 1, 1], [], []>} : vector<8x72xbf16>, vector<72x1664xbf16>, vector<8x1664xf32> -> vector<8x1664xf32>
    %c0_36 = arith.constant 0 : index
    %c0_37 = arith.constant 0 : index
    %33 = vector.load %arg3[%c0_36, %c0_37] : memref<8x1664xf32, #tpu.memory_space<vmem>>, vector<8x1662xf32>
    %34 = vector.extract_strided_slice %32 {offsets = [0, 2], sizes = [8, 1662], strides = [1, 1]} : vector<8x1664xf32> to vector<8x1662xf32>
    %35 = arith.addf %33, %34 : vector<8x1662xf32>
    %c0_38 = arith.constant 0 : index
    %c0_39 = arith.constant 0 : index
    %36 = vector.load %arg3[%c0_38, %c0_39] : memref<8x1664xf32, #tpu.memory_space<vmem>>, vector<8x1662xf32>
    tpu.vector_store %arg3[%c0_38, %c0_39], %35 {strides = array<i32>} : memref<8x1664xf32, #tpu.memory_space<vmem>>, vector<8x1662xf32>,
    return
  }
  func.func @transform_0(%arg0: i32) -> (i32, i32) {
    %c0_i32 = arith.constant 0 : i32
    %c0_i32_0 = arith.constant 0 : i32
    %c0_i32_1 = arith.constant 0 : i32
    return %c0_i32, %c0_i32_0 : i32, i32
  }
  func.func @transform_1(%arg0: i32) -> (i32, i32, i32) {
    %c0_i32 = arith.constant 0 : i32
    %c0_i32_0 = arith.constant 0 : i32
    %c0_i32_1 = arith.constant 0 : i32
    %c0_i32_2 = arith.constant 0 : i32
    return %c0_i32, %c0_i32_0, %c0_i32_1 : i32, i32, i32
  }
  func.func @transform_2(%arg0: i32) -> (i32, i32) {
    %c0_i32 = arith.constant 0 : i32
    %c0_i32_0 = arith.constant 0 : i32
    %c0_i32_1 = arith.constant 0 : i32
    return %c0_i32, %c0_i32_0 : i32, i32
  }
}

</mosaic_0001>

<llo_original>
// kernel: _lambda_.2
$region0: #{_lambda_.2}
  #allocation0 [shape = 'u32[]', space=smem, size = 0x4, offset = 0x4, fixed_abs, tag = 'smem constant byte address 0x4 - core index']
  #allocation1 [shape = 'u32[72,128]{1,0:T(1,128)}', space=vmem, size = 0x9000, scoped, tag = 'internal scratch']
  #allocation2 [shape = 'bf16[36,1664]{1,0:T(8,128)(2,1)}', space=vmem, size = 0x20800, scoped, tag = 'scratch operand']
  %s0 = inlined_call_operand.vmem [shape: bf16[4,1920], index: 0, kind: input, shape index: {}]
  %s1 = inlined_call_operand.vmem [shape: bf16[3,8,36], index: 1, kind: input, shape index: {}]
  %s2 = inlined_call_operand.vmem [shape: f32[8,1664], index: 2, kind: output, shape index: {}]
  %s3 = sld [smem:[#allocation0]]
  $region18: #{_lambda_.2} parent=0
    _
  %s5 = ssub.s32 1, %s3
  %s6 = scalar_select 0, %s5, %s3
  // Predicated region
  $region2: #{_lambda_.2} parent=0 // pred_check
    _
  $region3: #{_lambda_.2} parent=0 // pred_check_branch
    %8 = sbr.rel (0) target = $region5
  $region4: #{_lambda_.2} parent=0 // pred_region
    _
  $region5: #{_lambda_.2} parent=0 // pred_fallthru
    _
  // Predicated region
  $region6: #{_lambda_.2} parent=0 // pred_check
    _
  $region7: #{_lambda_.2} parent=0 // pred_check_branch
    %10 = sbr.rel (0) target = $region9
  $region8: #{_lambda_.2} parent=0 // pred_region
    _
  $region9: #{_lambda_.2} parent=0 // pred_fallthru
    _
  %v12 = vld [vmem:[%s0] sm:$0xff]
  %v13 = vld [vmem:[%s0 + $0x8] sm:$0xff]
  %v14 = vld [vmem:[%s0 + $0x10] sm:$0xff]
  %v15 = vld [vmem:[%s0 + $0x18] sm:$0x3]
  %17 = vst [vmem:[#allocation1] ss:$2 sm:$0xff] %v12
  %s19 = scalar_lea.vmem [#allocation1], 16
  %20 = vst [vmem:[%s19] ss:$2 sm:$0xff] %v13
  %s22 = scalar_lea.vmem [#allocation1], 32
  %23 = vst [vmem:[%s22] ss:$2 sm:$0xff] %v14
  %s25 = scalar_lea.vmem [#allocation1], 48
  %26 = vst [vmem:[%s25] ss:$2 sm:$0xff] %v15
  %v27 = vld.sshfl [vmem:[#allocation1] sm:$0xff pattern:$0x75643120]
  %v28 = vld.sshfl [vmem:[#allocation1 + $0x8] sm:$0xff pattern:$0x75643120]
  %v29 = vld.sshfl [vmem:[#allocation1 + $0x10] sm:$0xff pattern:$0x75643120]
  %v30 = vld.sshfl [vmem:[#allocation1 + $0x18] sm:$0xff pattern:$0x75643120]
  %v31 = vld.sshfl [vmem:[#allocation1 + $0x20] sm:$0xff pattern:$0x75643120]
  %v32 = vld.sshfl [vmem:[#allocation1 + $0x28] sm:$0xff pattern:$0x75643120]
  %v33 = vld.sshfl [vmem:[#allocation1 + $0x30] sm:$0xff pattern:$0x75643120]
  %41 = vst [vmem:[#allocation2] sm:$0x33] %v27
  %42 = vst [vmem:[#allocation2 + $0x8] sm:$0x33] %v28
  %43 = vst [vmem:[#allocation2 + $0x10] sm:$0x33] %v29
  %44 = vst [vmem:[#allocation2 + $0x18] sm:$0x33] %v30
  %45 = vst [vmem:[#allocation2 + $0x20] sm:$0x33] %v31
  %46 = vst [vmem:[#allocation2 + $0x28] sm:$0x33] %v32
  %47 = vst [vmem:[#allocation2 + $0x30] sm:$0x3] %v33
  %v48 = vld [vmem:[%s0] sm:$0xff]
  %v49 = vld [vmem:[%s0 + $0x8] sm:$0xff]
  %v50 = vld [vmem:[%s0 + $0x10] sm:$0xff]
  %v51 = vld [vmem:[%s0 + $0x18] sm:$0xf]
  %s53 = scalar_lea.vmem [#allocation1], 1
  %54 = vst [vmem:[%s53] ss:$2 sm:$0xff] %v48
  %s56 = scalar_lea.vmem [#allocation1], 17
  %57 = vst [vmem:[%s56] ss:$2 sm:$0xff] %v49
  %s59 = scalar_lea.vmem [#allocation1], 33
  %60 = vst [vmem:[%s59] ss:$2 sm:$0xff] %v50
  %s62 = scalar_lea.vmem [#allocation1], 49
  %63 = vst [vmem:[%s62] ss:$2 sm:$0xff] %v51
  %v64 = vld.sshfl [vmem:[#allocation1] sm:$0xff pattern:$0x75643120]
  %v66 = vld.sshfl [vmem:[#allocation1 + $0x8] sm:$0xff pattern:$0x75643120]
  %v68 = vld.sshfl [vmem:[#allocation1 + $0x10] sm:$0xff pattern:$0x75643120]
  %v70 = vld.sshfl [vmem:[#allocation1 + $0x18] sm:$0xff pattern:$0x75643120]
  %v72 = vld.sshfl [vmem:[#allocation1 + $0x20] sm:$0xff pattern:$0x75643120]
  %v74 = vld.sshfl [vmem:[#allocation1 + $0x28] sm:$0xff pattern:$0x75643120]
  %v76 = vld.sshfl [vmem:[#allocation1 + $0x30] sm:$0xff pattern:$0x75643120]
  %78 = vrot.lane.b32.xlu0 %v64, 118
  %v79 = vpop.permute.xlu0 %78
  %80 = vrot.lane.b32.xlu0 %v66, 118
  %v81 = vpop.permute.xlu0 %80
  %82 = vrot.lane.b32.xlu0 %v68, 118
  %v83 = vpop.permute.xlu0 %82
  %84 = vrot.lane.b32.xlu0 %v70, 118
  %v85 = vpop.permute.xlu0 %84
  %86 = vrot.lane.b32.xlu0 %v72, 118
  %v87 = vpop.permute.xlu0 %86
  %88 = vrot.lane.b32.xlu0 %v74, 118
  %v89 = vpop.permute.xlu0 %88
  %90 = vrot.lane.b32.xlu0 %v76, 118
  %v91 = vpop.permute.xlu0 %90
  %v92 = vrot.slane %v79, 4
  %v93 = vrot.slane %v81, 4
  %v94 = vrot.slane %v83, 4
  %v95 = vrot.slane %v85, 4
  %v96 = vrot.slane %v87, 4
  %v97 = vrot.slane %v89, 4
  %v98 = vrot.slane %v91, 4
  %vm99 = vcmask 1043456
  %v100 = vsel %vm99, %v92, %v93
  %vm101 = vcmask 965632
  %v102 = vsel %vm101, %v79, %v100
  %v103 = vsel %vm99, %v93, %v94
  %v104 = vsel %vm101, %v81, %v103
  %v105 = vsel %vm99, %v94, %v95
  %v106 = vsel %vm101, %v83, %v105
  %v107 = vsel %vm99, %v95, %v96
  %v108 = vsel %vm101, %v85, %v107
  %v109 = vsel %vm99, %v96, %v97
  %v110 = vsel %vm101, %v87, %v109
  %v111 = vsel %vm99, %v97, %v98
  %v112 = vsel %vm101, %v89, %v111
  %v113 = vsel %vm101, %v91, %v98
  %121 = vst [vmem:[#allocation2] sm:$0xcc] %v102
  %122 = vst [vmem:[#allocation2 + $0x8] sm:$0xcc] %v104
  %123 = vst [vmem:[#allocation2 + $0x10] sm:$0xcc] %v106
  %124 = vst [vmem:[#allocation2 + $0x18] sm:$0xcc] %v108
  %125 = vst [vmem:[#allocation2 + $0x20] sm:$0xcc] %v110
  %126 = vst [vmem:[#allocation2 + $0x28] sm:$0xcc] %v112
  %127 = vst [vmem:[#allocation2 + $0x30] sm:$0xc] %v113
  %v128 = vld [vmem:[%s0] sm:$0xff]
  %v129 = vld [vmem:[%s0 + $0x8] sm:$0xff]
  %v130 = vld [vmem:[%s0 + $0x10] sm:$0xff]
  %v131 = vld [vmem:[%s0 + $0x18] sm:$0xf]
  %133 = vst [vmem:[#allocation1] ss:$2 sm:$0xff] %v128
  %s135 = scalar_lea.vmem [#allocation1], 16
  %136 = vst [vmem:[%s135] ss:$2 sm:$0xff] %v129
  %s138 = scalar_lea.vmem [#allocation1], 32
  %139 = vst [vmem:[%s138] ss:$2 sm:$0xff] %v130
  %s141 = scalar_lea.vmem [#allocation1], 48
  %142 = vst [vmem:[%s141] ss:$2 sm:$0xff] %v131
  %v143 = vld.sshfl [vmem:[#allocation1] sm:$0xff pattern:$0x75643120]
  %v145 = vld.sshfl [vmem:[#allocation1 + $0x8] sm:$0xff pattern:$0x75643120]
  %v147 = vld.sshfl [vmem:[#allocation1 + $0x10] sm:$0xff pattern:$0x75643120]
  %v149 = vld.sshfl [vmem:[#allocation1 + $0x18] sm:$0xff pattern:$0x75643120]
  %v151 = vld.sshfl [vmem:[#allocation1 + $0x20] sm:$0xff pattern:$0x75643120]
  %v153 = vld.sshfl [vmem:[#allocation1 + $0x28] sm:$0xff pattern:$0x75643120]
  %v155 = vld.sshfl [vmem:[#allocation1 + $0x30] sm:$0xff pattern:$0x75643120]
  %157 = vrot.lane.b32.xlu0 %v143, 108
  %v158 = vpop.permute.xlu0 %157
  %159 = vrot.lane.b32.xlu0 %v145, 108
  %v160 = vpop.permute.xlu0 %159
  %161 = vrot.lane.b32.xlu0 %v147, 108
  %v162 = vpop.permute.xlu0 %161
  %163 = vrot.lane.b32.xlu0 %v149, 108
  %v164 = vpop.permute.xlu0 %163
  %165 = vrot.lane.b32.xlu0 %v151, 108
  %v166 = vpop.permute.xlu0 %165
  %167 = vrot.lane.b32.xlu0 %v153, 108
  %v168 = vpop.permute.xlu0 %167
  %169 = vrot.lane.b32.xlu0 %v155, 108
  %v170 = vpop.permute.xlu0 %169
  %v171 = vrot.slane %v158, 4
  %v172 = vrot.slane %v160, 4
  %v173 = vrot.slane %v162, 4
  %v174 = vrot.slane %v164, 4
  %v175 = vrot.slane %v166, 4
  %v176 = vrot.slane %v168, 4
  %v177 = vrot.slane %v170, 4
  %v178 = vsel %vm99, %v171, %v172
  %vm179 = vcmask 883712
  %v180 = vsel %vm179, %v158, %v178
  %v181 = vsel %vm99, %v172, %v173
  %v182 = vsel %vm179, %v160, %v181
  %v183 = vsel %vm99, %v173, %v174
  %v184 = vsel %vm179, %v162, %v183
  %v185 = vsel %vm99, %v174, %v175
  %v186 = vsel %vm179, %v164, %v185
  %v187 = vsel %vm99, %v175, %v176
  %v188 = vsel %vm179, %v166, %v187
  %v189 = vsel %vm99, %v176, %v177
  %v190 = vsel %vm179, %v168, %v189
  %v191 = vsel %vm179, %v170, %v177
  %199 = vst [vmem:[#allocation2 + $0x34] sm:$0x33] %v180
  %200 = vst [vmem:[#allocation2 + $0x3c] sm:$0x33] %v182
  %201 = vst [vmem:[#allocation2 + $0x44] sm:$0x33] %v184
  %202 = vst [vmem:[#allocation2 + $0x4c] sm:$0x33] %v186
  %203 = vst [vmem:[#allocation2 + $0x54] sm:$0x33] %v188
  %204 = vst [vmem:[#allocation2 + $0x5c] sm:$0x33] %v190
  %205 = vst [vmem:[#allocation2 + $0x64] sm:$0x3] %v191
  %v206 = vld [vmem:[%s0] sm:$0xff]
  %v207 = vld [vmem:[%s0 + $0x8] sm:$0xff]
  %v208 = vld [vmem:[%s0 + $0x10] sm:$0xff]
  %v209 = vld [vmem:[%s0 + $0x18] sm:$0xf]
  %s211 = scalar_lea.vmem [#allocation1], 1
  %212 = vst [vmem:[%s211] ss:$2 sm:$0xff] %v206
  %s214 = scalar_lea.vmem [#allocation1], 17
  %215 = vst [vmem:[%s214] ss:$2 sm:$0xff] %v207
  %s217 = scalar_lea.vmem [#allocation1], 33
  %218 = vst [vmem:[%s217] ss:$2 sm:$0xff] %v208
  %s220 = scalar_lea.vmem [#allocation1], 49
  %221 = vst [vmem:[%s220] ss:$2 sm:$0xff] %v209
  %v222 = vld.sshfl [vmem:[#allocation1] sm:$0xff pattern:$0x75643120]
  %v224 = vld.sshfl [vmem:[#allocation1 + $0x8] sm:$0xff pattern:$0x75643120]
  %v226 = vld.sshfl [vmem:[#allocation1 + $0x10] sm:$0xff pattern:$0x75643120]
  %v228 = vld.sshfl [vmem:[#allocation1 + $0x18] sm:$0xff pattern:$0x75643120]
  %v230 = vld.sshfl [vmem:[#allocation1 + $0x20] sm:$0xff pattern:$0x75643120]
  %v232 = vld.sshfl [vmem:[#allocation1 + $0x28] sm:$0xff pattern:$0x75643120]
  %v234 = vld.sshfl [vmem:[#allocation1 + $0x30] sm:$0xff pattern:$0x75643120]
  %236 = vrot.lane.b32.xlu0 %v222, 28
  %v237 = vpop.permute.xlu0 %236
  %238 = vrot.lane.b32.xlu0 %v224, 28
  %v239 = vpop.permute.xlu0 %238
  %240 = vrot.lane.b32.xlu0 %v226, 28
  %v241 = vpop.permute.xlu0 %240
  %242 = vrot.lane.b32.xlu0 %v228, 28
  %v243 = vpop.permute.xlu0 %242
  %244 = vrot.lane.b32.xlu0 %v230, 28
  %v245 = vpop.permute.xlu0 %244
  %246 = vrot.lane.b32.xlu0 %v232, 28
  %v247 = vpop.permute.xlu0 %246
  %248 = vrot.lane.b32.xlu0 %v234, 28
  %v249 = vpop.permute.xlu0 %248
  %v250 = vrot.slane %v237, 4
  %v251 = vrot.slane %v239, 4
  %v252 = vrot.slane %v241, 4
  %v253 = vrot.slane %v243, 4
  %v254 = vrot.slane %v245, 4
  %v255 = vrot.slane %v247, 4
  %v256 = vrot.slane %v249, 4
  %v257 = vsel %vm99, %v250, %v251
  %vm258 = vcmask 228352
  %v259 = vsel %vm258, %v237, %v257
  %v260 = vsel %vm99, %v251, %v252
  %v261 = vsel %vm258, %v239, %v260
  %v262 = vsel %vm99, %v252, %v253
  %v263 = vsel %vm258, %v241, %v262
  %v264 = vsel %vm99, %v253, %v254
  %v265 = vsel %vm258, %v243, %v264
  %v266 = vsel %vm99, %v254, %v255
  %v267 = vsel %vm258, %v245, %v266
  %v268 = vsel %vm99, %v255, %v256
  %v269 = vsel %vm258, %v247, %v268
  %v270 = vsel %vm258, %v249, %v256
  %278 = vst [vmem:[#allocation2 + $0x34] sm:$0xcc] %v259
  %279 = vst [vmem:[#allocation2 + $0x3c] sm:$0xcc] %v261
  %280 = vst [vmem:[#allocation2 + $0x44] sm:$0xcc] %v263
  %281 = vst [vmem:[#allocation2 + $0x4c] sm:$0xcc] %v265
  %282 = vst [vmem:[#allocation2 + $0x54] sm:$0xcc] %v267
  %283 = vst [vmem:[#allocation2 + $0x5c] sm:$0xcc] %v269
  %284 = vst [vmem:[#allocation2 + $0x64] sm:$0xc] %v270
  %v285 = vld [vmem:[%s0] sm:$0xff]
  %v286 = vld [vmem:[%s0 + $0x8] sm:$0xff]
  %v287 = vld [vmem:[%s0 + $0x10] sm:$0xff]
  %v288 = vld [vmem:[%s0 + $0x18] sm:$0xf]
  %290 = vst [vmem:[#allocation1] ss:$2 sm:$0xff] %v285
  %s292 = scalar_lea.vmem [#allocation1], 16
  %293 = vst [vmem:[%s292] ss:$2 sm:$0xff] %v286
  %s295 = scalar_lea.vmem [#allocation1], 32
  %296 = vst [vmem:[%s295] ss:$2 sm:$0xff] %v287
  %s298 = scalar_lea.vmem [#allocation1], 48
  %299 = vst [vmem:[%s298] ss:$2 sm:$0xff] %v288
  %v300 = vld.sshfl [vmem:[#allocation1] sm:$0xff pattern:$0x75643120]
  %v302 = vld.sshfl [vmem:[#allocation1 + $0x8] sm:$0xff pattern:$0x75643120]
  %v304 = vld.sshfl [vmem:[#allocation1 + $0x10] sm:$0xff pattern:$0x75643120]
  %v306 = vld.sshfl [vmem:[#allocation1 + $0x18] sm:$0xff pattern:$0x75643120]
  %v308 = vld.sshfl [vmem:[#allocation1 + $0x20] sm:$0xff pattern:$0x75643120]
  %v310 = vld.sshfl [vmem:[#allocation1 + $0x28] sm:$0xff pattern:$0x75643120]
  %v312 = vld.sshfl [vmem:[#allocation1 + $0x30] sm:$0xff pattern:$0x75643120]
  %314 = vrot.lane.b32.xlu0 %v300, 18
  %v315 = vpop.permute.xlu0 %314
  %316 = vrot.lane.b32.xlu0 %v302, 18
  %v317 = vpop.permute.xlu0 %316
  %318 = vrot.lane.b32.xlu0 %v304, 18
  %v319 = vpop.permute.xlu0 %318
  %320 = vrot.lane.b32.xlu0 %v306, 18
  %v321 = vpop.permute.xlu0 %320
  %322 = vrot.lane.b32.xlu0 %v308, 18
  %v323 = vpop.permute.xlu0 %322
  %324 = vrot.lane.b32.xlu0 %v310, 18
  %v325 = vpop.permute.xlu0 %324
  %326 = vrot.lane.b32.xlu0 %v312, 18
  %v327 = vpop.permute.xlu0 %326
  %v328 = vrot.slane %v315, 4
  %v329 = vrot.slane %v317, 4
  %v330 = vrot.slane %v319, 4
  %v331 = vrot.slane %v321, 4
  %v332 = vrot.slane %v323, 4
  %v333 = vrot.slane %v325, 4
  %v334 = vrot.slane %v327, 4
  %v335 = vsel %vm99, %v328, %v329
  %vm336 = vcmask 146432
  %v337 = vsel %vm336, %v315, %v335
  %v338 = vsel %vm99, %v329, %v330
  %v339 = vsel %vm336, %v317, %v338
  %v340 = vsel %vm99, %v330, %v331
  %v341 = vsel %vm336, %v319, %v340
  %v342 = vsel %vm99, %v331, %v332
  %v343 = vsel %vm336, %v321, %v342
  %v344 = vsel %vm99, %v332, %v333
  %v345 = vsel %vm336, %v323, %v344
  %v346 = vsel %vm99, %v333, %v334
  %v347 = vsel %vm336, %v325, %v346
  %v348 = vsel %vm336, %v327, %v334
  %356 = vst [vmem:[#allocation2 + $0x68] sm:$0x33] %v337
  %357 = vst [vmem:[#allocation2 + $0x70] sm:$0x33] %v339
  %358 = vst [vmem:[#allocation2 + $0x78] sm:$0x33] %v341
  %359 = vst [vmem:[#allocation2 + $0x80] sm:$0x33] %v343
  %360 = vst [vmem:[#allocation2 + $0x88] sm:$0x33] %v345
  %361 = vst [vmem:[#allocation2 + $0x90] sm:$0x33] %v347
  %362 = vst [vmem:[#allocation2 + $0x98] sm:$0x3] %v348
  %v363 = vld [vmem:[%s0] sm:$0xff]
  %v364 = vld [vmem:[%s0 + $0x8] sm:$0xff]
  %v365 = vld [vmem:[%s0 + $0x10] sm:$0xff]
  %v366 = vld [vmem:[%s0 + $0x18] sm:$0xf]
  %s368 = scalar_lea.vmem [#allocation1], 1
  %369 = vst [vmem:[%s368] ss:$2 sm:$0xff] %v363
  %s371 = scalar_lea.vmem [#allocation1], 17
  %372 = vst [vmem:[%s371] ss:$2 sm:$0xff] %v364
  %s374 = scalar_lea.vmem [#allocation1], 33
  %375 = vst [vmem:[%s374] ss:$2 sm:$0xff] %v365
  %s377 = scalar_lea.vmem [#allocation1], 49
  %378 = vst [vmem:[%s377] ss:$2 sm:$0xff] %v366
  %v379 = vld.sshfl [vmem:[#allocation1] sm:$0xff pattern:$0x75643120]
  %v381 = vld.sshfl [vmem:[#allocation1 + $0x8] sm:$0xff pattern:$0x75643120]
  %v383 = vld.sshfl [vmem:[#allocation1 + $0x10] sm:$0xff pattern:$0x75643120]
  %v385 = vld.sshfl [vmem:[#allocation1 + $0x18] sm:$0xff pattern:$0x75643120]
  %v387 = vld.sshfl [vmem:[#allocation1 + $0x20] sm:$0xff pattern:$0x75643120]
  %v389 = vld.sshfl [vmem:[#allocation1 + $0x28] sm:$0xff pattern:$0x75643120]
  %v391 = vld.sshfl [vmem:[#allocation1 + $0x30] sm:$0xff pattern:$0x75643120]
  %393 = vrot.lane.b32.xlu0 %v379, 8
  %v394 = vpop.permute.xlu0 %393
  %395 = vrot.lane.b32.xlu0 %v381, 8
  %v396 = vpop.permute.xlu0 %395
  %397 = vrot.lane.b32.xlu0 %v383, 8
  %v398 = vpop.permute.xlu0 %397
  %399 = vrot.lane.b32.xlu0 %v385, 8
  %v400 = vpop.permute.xlu0 %399
  %401 = vrot.lane.b32.xlu0 %v387, 8
  %v402 = vpop.permute.xlu0 %401
  %403 = vrot.lane.b32.xlu0 %v389, 8
  %v404 = vpop.permute.xlu0 %403
  %405 = vrot.lane.b32.xlu0 %v391, 8
  %v406 = vpop.permute.xlu0 %405
  %v407 = vrot.slane %v394, 4
  %v408 = vrot.slane %v396, 4
  %v409 = vrot.slane %v398, 4
  %v410 = vrot.slane %v400, 4
  %v411 = vrot.slane %v402, 4
  %v412 = vrot.slane %v404, 4
  %v413 = vrot.slane %v406, 4
  %v414 = vsel %vm99, %v407, %v408
  %vm415 = vcmask 64512
  %v416 = vsel %vm415, %v394, %v414
  %v417 = vsel %vm99, %v408, %v409
  %v418 = vsel %vm415, %v396, %v417
  %v419 = vsel %vm99, %v409, %v410
  %v420 = vsel %vm415, %v398, %v419
  %v421 = vsel %vm99, %v410, %v411
  %v422 = vsel %vm415, %v400, %v421
  %v423 = vsel %vm99, %v411, %v412
  %v424 = vsel %vm415, %v402, %v423
  %v425 = vsel %vm99, %v412, %v413
  %v426 = vsel %vm415, %v404, %v425
  %v427 = vsel %vm415, %v406, %v413
  %435 = vst [vmem:[#allocation2 + $0x68] sm:$0xcc] %v416
  %436 = vst [vmem:[#allocation2 + $0x70] sm:$0xcc] %v418
  %437 = vst [vmem:[#allocation2 + $0x78] sm:$0xcc] %v420
  %438 = vst [vmem:[#allocation2 + $0x80] sm:$0xcc] %v422
  %439 = vst [vmem:[#allocation2 + $0x88] sm:$0xcc] %v424
  %440 = vst [vmem:[#allocation2 + $0x90] sm:$0xcc] %v426
  %441 = vst [vmem:[#allocation2 + $0x98] sm:$0xc] %v427
  %v442 = vld [vmem:[%s0 + $0x2] sm:$0xff]
  %v443 = vld [vmem:[%s0 + $0xa] sm:$0xff]
  %v444 = vld [vmem:[%s0 + $0x12] sm:$0xff]
  %v445 = vld [vmem:[%s0 + $0x1a] sm:$0xf]
  %447 = vst [vmem:[#allocation1] ss:$2 sm:$0xff] %v442
  %s449 = scalar_lea.vmem [#allocation1], 16
  %450 = vst [vmem:[%s449] ss:$2 sm:$0xff] %v443
  %s452 = scalar_lea.vmem [#allocation1], 32
  %453 = vst [vmem:[%s452] ss:$2 sm:$0xff] %v444
  %s455 = scalar_lea.vmem [#allocation1], 48
  %456 = vst [vmem:[%s455] ss:$2 sm:$0xff] %v445
  %v457 = vld.sshfl [vmem:[#allocation1] sm:$0xff pattern:$0x75643120]
  %v459 = vld.sshfl [vmem:[#allocation1 + $0x8] sm:$0xff pattern:$0x75643120]
  %v461 = vld.sshfl [vmem:[#allocation1 + $0x10] sm:$0xff pattern:$0x75643120]
  %v463 = vld.sshfl [vmem:[#allocation1 + $0x18] sm:$0xff pattern:$0x75643120]
  %v465 = vld.sshfl [vmem:[#allocation1 + $0x20] sm:$0xff pattern:$0x75643120]
  %v467 = vld.sshfl [vmem:[#allocation1 + $0x28] sm:$0xff pattern:$0x75643120]
  %v469 = vld.sshfl [vmem:[#allocation1 + $0x30] sm:$0xff pattern:$0x75643120]
  %471 = vrot.lane.b32.xlu0 %v457, 56
  %v472 = vpop.permute.xlu0 %471
  %473 = vrot.lane.b32.xlu0 %v459, 56
  %v474 = vpop.permute.xlu0 %473
  %475 = vrot.lane.b32.xlu0 %v461, 56
  %v476 = vpop.permute.xlu0 %475
  %477 = vrot.lane.b32.xlu0 %v463, 56
  %v478 = vpop.permute.xlu0 %477
  %479 = vrot.lane.b32.xlu0 %v465, 56
  %v480 = vpop.permute.xlu0 %479
  %481 = vrot.lane.b32.xlu0 %v467, 56
  %v482 = vpop.permute.xlu0 %481
  %483 = vrot.lane.b32.xlu0 %v469, 56
  %v484 = vpop.permute.xlu0 %483
  %v485 = vrot.slane %v472, 4
  %v486 = vrot.slane %v474, 4
  %v487 = vrot.slane %v476, 4
  %v488 = vrot.slane %v478, 4
  %v489 = vrot.slane %v480, 4
  %v490 = vrot.slane %v482, 4
  %v491 = vrot.slane %v484, 4
  %v492 = vsel %vm99, %v485, %v486
  %vm493 = vcmask 457728
  %v494 = vsel %vm493, %v472, %v492
  %v495 = vsel %vm99, %v486, %v487
  %v496 = vsel %vm493, %v474, %v495
  %v497 = vsel %vm99, %v487, %v488
  %v498 = vsel %vm493, %v476, %v497
  %v499 = vsel %vm99, %v488, %v489
  %v500 = vsel %vm493, %v478, %v499
  %v501 = vsel %vm99, %v489, %v490
  %v502 = vsel %vm493, %v480, %v501
  %v503 = vsel %vm99, %v490, %v491
  %v504 = vsel %vm493, %v482, %v503
  %v505 = vsel %vm493, %v484, %v491
  %513 = vst [vmem:[#allocation2 + $0x9c] sm:$0x33] %v494
  %514 = vst [vmem:[#allocation2 + $0xa4] sm:$0x33] %v496
  %515 = vst [vmem:[#allocation2 + $0xac] sm:$0x33] %v498
  %516 = vst [vmem:[#allocation2 + $0xb4] sm:$0x33] %v500
  %517 = vst [vmem:[#allocation2 + $0xbc] sm:$0x33] %v502
  %518 = vst [vmem:[#allocation2 + $0xc4] sm:$0x33] %v504
  %519 = vst [vmem:[#allocation2 + $0xcc] sm:$0x3] %v505
  %v520 = vld [vmem:[%s0 + $0x2] sm:$0xff]
  %v521 = vld [vmem:[%s0 + $0xa] sm:$0xff]
  %v522 = vld [vmem:[%s0 + $0x12] sm:$0xff]
  %v523 = vld [vmem:[%s0 + $0x1a] sm:$0xf]
  %s525 = scalar_lea.vmem [#allocation1], 1
  %526 = vst [vmem:[%s525] ss:$2 sm:$0xff] %v520
  %s528 = scalar_lea.vmem [#allocation1], 17
  %529 = vst [vmem:[%s528] ss:$2 sm:$0xff] %v521
  %s531 = scalar_lea.vmem [#allocation1], 33
  %532 = vst [vmem:[%s531] ss:$2 sm:$0xff] %v522
  %s534 = scalar_lea.vmem [#allocation1], 49
  %535 = vst [vmem:[%s534] ss:$2 sm:$0xff] %v523
  %v536 = vld.sshfl [vmem:[#allocation1] sm:$0xff pattern:$0x75643120]
  %v538 = vld.sshfl [vmem:[#allocation1 + $0x8] sm:$0xff pattern:$0x75643120]
  %v540 = vld.sshfl [vmem:[#allocation1 + $0x10] sm:$0xff pattern:$0x75643120]
  %v542 = vld.sshfl [vmem:[#allocation1 + $0x18] sm:$0xff pattern:$0x75643120]
  %v544 = vld.sshfl [vmem:[#allocation1 + $0x20] sm:$0xff pattern:$0x75643120]
  %v546 = vld.sshfl [vmem:[#allocation1 + $0x28] sm:$0xff pattern:$0x75643120]
  %v548 = vld.sshfl [vmem:[#allocation1 + $0x30] sm:$0xff pattern:$0x75643120]
  %550 = vrot.lane.b32.xlu0 %v536, 46
  %v551 = vpop.permute.xlu0 %550
  %552 = vrot.lane.b32.xlu0 %v538, 46
  %v553 = vpop.permute.xlu0 %552
  %554 = vrot.lane.b32.xlu0 %v540, 46
  %v555 = vpop.permute.xlu0 %554
  %556 = vrot.lane.b32.xlu0 %v542, 46
  %v557 = vpop.permute.xlu0 %556
  %558 = vrot.lane.b32.xlu0 %v544, 46
  %v559 = vpop.permute.xlu0 %558
  %560 = vrot.lane.b32.xlu0 %v546, 46
  %v561 = vpop.permute.xlu0 %560
  %562 = vrot.lane.b32.xlu0 %v548, 46
  %v563 = vpop.permute.xlu0 %562
  %v564 = vrot.slane %v551, 4
  %v565 = vrot.slane %v553, 4
  %v566 = vrot.slane %v555, 4
  %v567 = vrot.slane %v557, 4
  %v568 = vrot.slane %v559, 4
  %v569 = vrot.slane %v561, 4
  %v570 = vrot.slane %v563, 4
  %v571 = vsel %vm99, %v564, %v565
  %vm572 = vcmask 375808
  %v573 = vsel %vm572, %v551, %v571
  %v574 = vsel %vm99, %v565, %v566
  %v575 = vsel %vm572, %v553, %v574
  %v576 = vsel %vm99, %v566, %v567
  %v577 = vsel %vm572, %v555, %v576
  %v578 = vsel %vm99, %v567, %v568
  %v579 = vsel %vm572, %v557, %v578
  %v580 = vsel %vm99, %v568, %v569
  %v581 = vsel %vm572, %v559, %v580
  %v582 = vsel %vm99, %v569, %v570
  %v583 = vsel %vm572, %v561, %v582
  %v584 = vsel %vm572, %v563, %v570
  %592 = vst [vmem:[#allocation2 + $0x9c] sm:$0xcc] %v573
  %593 = vst [vmem:[#allocation2 + $0xa4] sm:$0xcc] %v575
  %594 = vst [vmem:[#allocation2 + $0xac] sm:$0xcc] %v577
  %595 = vst [vmem:[#allocation2 + $0xb4] sm:$0xcc] %v579
  %596 = vst [vmem:[#allocation2 + $0xbc] sm:$0xcc] %v581
  %597 = vst [vmem:[#allocation2 + $0xc4] sm:$0xcc] %v583
  %598 = vst [vmem:[#allocation2 + $0xcc] sm:$0xc] %v584
  %v599 = vld [vmem:[%s0 + $0x2] sm:$0xff]
  %v600 = vld [vmem:[%s0 + $0xa] sm:$0xff]
  %v601 = vld [vmem:[%s0 + $0x12] sm:$0xff]
  %v602 = vld [vmem:[%s0 + $0x1a] sm:$0xf]
  %604 = vst [vmem:[#allocation1] ss:$2 sm:$0xff] %v599
  %s606 = scalar_lea.vmem [#allocation1], 16
  %607 = vst [vmem:[%s606] ss:$2 sm:$0xff] %v600
  %s609 = scalar_lea.vmem [#allocation1], 32
  %610 = vst [vmem:[%s609] ss:$2 sm:$0xff] %v601
  %s612 = scalar_lea.vmem [#allocation1], 48
  %613 = vst [vmem:[%s612] ss:$2 sm:$0xff] %v602
  %v614 = vld.sshfl [vmem:[#allocation1] sm:$0xff pattern:$0x75643120]
  %v616 = vld.sshfl [vmem:[#allocation1 + $0x8] sm:$0xff pattern:$0x75643120]
  %v618 = vld.sshfl [vmem:[#allocation1 + $0x10] sm:$0xff pattern:$0x75643120]
  %v620 = vld.sshfl [vmem:[#allocation1 + $0x18] sm:$0xff pattern:$0x75643120]
  %v622 = vld.sshfl [vmem:[#allocation1 + $0x20] sm:$0xff pattern:$0x75643120]
  %v624 = vld.sshfl [vmem:[#allocation1 + $0x28] sm:$0xff pattern:$0x75643120]
  %v626 = vld.sshfl [vmem:[#allocation1 + $0x30] sm:$0xff pattern:$0x75643120]
  %628 = vrot.lane.b32.xlu0 %v614, 36
  %v629 = vpop.permute.xlu0 %628
  %630 = vrot.lane.b32.xlu0 %v616, 36
  %v631 = vpop.permute.xlu0 %630
  %632 = vrot.lane.b32.xlu0 %v618, 36
  %v633 = vpop.permute.xlu0 %632
  %634 = vrot.lane.b32.xlu0 %v620, 36
  %v635 = vpop.permute.xlu0 %634
  %636 = vrot.lane.b32.xlu0 %v622, 36
  %v637 = vpop.permute.xlu0 %636
  %638 = vrot.lane.b32.xlu0 %v624, 36
  %v639 = vpop.permute.xlu0 %638
  %640 = vrot.lane.b32.xlu0 %v626, 36
  %v641 = vpop.permute.xlu0 %640
  %v642 = vrot.slane %v629, 4
  %v643 = vrot.slane %v631, 4
  %v644 = vrot.slane %v633, 4
  %v645 = vrot.slane %v635, 4
  %v646 = vrot.slane %v637, 4
  %v647 = vrot.slane %v639, 4
  %v648 = vrot.slane %v641, 4
  %v649 = vsel %vm99, %v642, %v643
  %vm650 = vcmask 293888
  %v651 = vsel %vm650, %v629, %v649
  %v652 = vsel %vm99, %v643, %v644
  %v653 = vsel %vm650, %v631, %v652
  %v654 = vsel %vm99, %v644, %v645
  %v655 = vsel %vm650, %v633, %v654
  %v656 = vsel %vm99, %v645, %v646
  %v657 = vsel %vm650, %v635, %v656
  %v658 = vsel %vm99, %v646, %v647
  %v659 = vsel %vm650, %v637, %v658
  %v660 = vsel %vm99, %v647, %v648
  %v661 = vsel %vm650, %v639, %v660
  %v662 = vsel %vm650, %v641, %v648
  %670 = vst [vmem:[#allocation2 + $0xd0] sm:$0x33] %v651
  %671 = vst [vmem:[#allocation2 + $0xd8] sm:$0x33] %v653
  %672 = vst [vmem:[#allocation2 + $0xe0] sm:$0x33] %v655
  %673 = vst [vmem:[#allocation2 + $0xe8] sm:$0x33] %v657
  %674 = vst [vmem:[#allocation2 + $0xf0] sm:$0x33] %v659
  %675 = vst [vmem:[#allocation2 + $0xf8] sm:$0x33] %v661
  %676 = vst [vmem:[#allocation2 + $0x100] sm:$0x3] %v662
  %v677 = vld [vmem:[#allocation2] sm:$0xff]
  %v678 = vld [vmem:[#allocation2 + $0x8] sm:$0xff]
  %v679 = vld [vmem:[#allocation2 + $0x10] sm:$0xff]
  %v680 = vld [vmem:[#allocation2 + $0x18] sm:$0xff]
  %v681 = vld [vmem:[#allocation2 + $0x20] sm:$0xff]
  %v682 = vld [vmem:[#allocation2 + $0x28] sm:$0xff]
  %v683 = vld [vmem:[#allocation2 + $0x30] sm:$0xf]
  %v684 = vld [vmem:[#allocation2 + $0x34] sm:$0xff]
  %v685 = vld [vmem:[#allocation2 + $0x3c] sm:$0xff]
  %v686 = vld [vmem:[#allocation2 + $0x44] sm:$0xff]
  %v687 = vld [vmem:[#allocation2 + $0x4c] sm:$0xff]
  %v688 = vld [vmem:[#allocation2 + $0x54] sm:$0xff]
  %v689 = vld [vmem:[#allocation2 + $0x5c] sm:$0xff]
  %v690 = vld [vmem:[#allocation2 + $0x64] sm:$0xf]
  %v691 = vld [vmem:[#allocation2 + $0x68] sm:$0xff]
  %v692 = vld [vmem:[#allocation2 + $0x70] sm:$0xff]
  %v693 = vld [vmem:[#allocation2 + $0x78] sm:$0xff]
  %v694 = vld [vmem:[#allocation2 + $0x80] sm:$0xff]
  %v695 = vld [vmem:[#allocation2 + $0x88] sm:$0xff]
  %v696 = vld [vmem:[#allocation2 + $0x90] sm:$0xff]
  %v697 = vld [vmem:[#allocation2 + $0x98] sm:$0xf]
  %v698 = vld [vmem:[#allocation2 + $0x9c] sm:$0xff]
  %v699 = vld [vmem:[#allocation2 + $0xa4] sm:$0xff]
  %v700 = vld [vmem:[#allocation2 + $0xac] sm:$0xff]
  %v701 = vld [vmem:[#allocation2 + $0xb4] sm:$0xff]
  %v702 = vld [vmem:[#allocation2 + $0xbc] sm:$0xff]
  %v703 = vld [vmem:[#allocation2 + $0xc4] sm:$0xff]
  %v704 = vld [vmem:[#allocation2 + $0xcc] sm:$0xf]
  %v705 = vld [vmem:[#allocation2 + $0xd0] sm:$0x33]
  %v706 = vld [vmem:[#allocation2 + $0xd8] sm:$0x33]
  %v707 = vld [vmem:[#allocation2 + $0xe0] sm:$0x33]
  %v708 = vld [vmem:[#allocation2 + $0xe8] sm:$0x33]
  %v709 = vld [vmem:[#allocation2 + $0xf0] sm:$0x33]
  %v710 = vld [vmem:[#allocation2 + $0xf8] sm:$0x33]
  %v711 = vld [vmem:[#allocation2 + $0x100] sm:$0x3]
  %v712 = vld [vmem:[%s1] sm:$0xf]
  %v748 = vunpack.c.l.b16 %v677
  %v749 = vunpack.c.h.b16 %v677
  %v750 = vunpack.c.l.b16 %v678
  %v751 = vunpack.c.h.b16 %v678
  %v752 = vunpack.c.l.b16 %v679
  %v753 = vunpack.c.h.b16 %v679
  %v754 = vunpack.c.l.b16 %v680
  %v755 = vunpack.c.h.b16 %v680
  %v756 = vunpack.c.l.b16 %v681
  %v757 = vunpack.c.h.b16 %v681
  %v758 = vunpack.c.l.b16 %v682
  %v759 = vunpack.c.h.b16 %v682
  %v760 = vunpack.c.l.b16 %v683
  %v761 = vunpack.c.l.b16 %v684
  %v762 = vunpack.c.h.b16 %v684
  %v763 = vunpack.c.l.b16 %v685
  %v764 = vunpack.c.h.b16 %v685
  %v765 = vunpack.c.l.b16 %v686
  %v766 = vunpack.c.h.b16 %v686
  %v767 = vunpack.c.l.b16 %v687
  %v768 = vunpack.c.h.b16 %v687
  %v769 = vunpack.c.l.b16 %v688
  %v770 = vunpack.c.h.b16 %v688
  %v771 = vunpack.c.l.b16 %v689
  %v772 = vunpack.c.h.b16 %v689
  %v773 = vunpack.c.l.b16 %v690
  %v774 = vunpack.c.l.b16 %v691
  %v775 = vunpack.c.h.b16 %v691
  %v776 = vunpack.c.l.b16 %v692
  %v777 = vunpack.c.h.b16 %v692
  %v778 = vunpack.c.l.b16 %v693
  %v779 = vunpack.c.h.b16 %v693
  %v780 = vunpack.c.l.b16 %v694
  %v781 = vunpack.c.h.b16 %v694
  %v782 = vunpack.c.l.b16 %v695
  %v783 = vunpack.c.h.b16 %v695
  %v784 = vunpack.c.l.b16 %v696
  %v785 = vunpack.c.h.b16 %v696
  %v786 = vunpack.c.l.b16 %v697
  %v787 = vunpack.c.l.b16 %v698
  %v788 = vunpack.c.h.b16 %v698
  %v789 = vunpack.c.l.b16 %v699
  %v790 = vunpack.c.h.b16 %v699
  %v791 = vunpack.c.l.b16 %v700
  %v792 = vunpack.c.h.b16 %v700
  %v793 = vunpack.c.l.b16 %v701
  %v794 = vunpack.c.h.b16 %v701
  %v795 = vunpack.c.l.b16 %v702
  %v796 = vunpack.c.h.b16 %v702
  %v797 = vunpack.c.l.b16 %v703
  %v798 = vunpack.c.h.b16 %v703
  %v799 = vunpack.c.l.b16 %v704
  %v800 = vunpack.c.l.b16 %v705
  %v801 = vunpack.c.h.b16 %v705
  %v802 = vunpack.c.l.b16 %v706
  %v803 = vunpack.c.h.b16 %v706
  %v804 = vunpack.c.l.b16 %v707
  %v805 = vunpack.c.h.b16 %v707
  %v806 = vunpack.c.l.b16 %v708
  %v807 = vunpack.c.h.b16 %v708
  %v808 = vunpack.c.l.b16 %v709
  %v809 = vunpack.c.h.b16 %v709
  %v810 = vunpack.c.l.b16 %v710
  %v811 = vunpack.c.h.b16 %v710
  %v812 = vunpack.c.l.b16 %v711
  %v813 = vpack.c.b16 %v761, %v748
  %v814 = vpack.c.b16 %v762, %v749
  %v815 = vpack.c.b16 %v763, %v750
  %v816 = vpack.c.b16 %v764, %v751
  %v817 = vpack.c.b16 %v765, %v752
  %v818 = vpack.c.b16 %v766, %v753
  %v819 = vpack.c.b16 %v767, %v754
  %v820 = vpack.c.b16 %v768, %v755
  %v821 = vpack.c.b16 %v769, %v756
  %v822 = vpack.c.b16 %v770, %v757
  %v823 = vpack.c.b16 %v771, %v758
  %v824 = vpack.c.b16 %v772, %v759
  %v825 = vpack.c.b16 %v773, %v760
  %v826 = vpack.c.b16 %v787, %v774
  %v827 = vpack.c.b16 %v788, %v775
  %v828 = vpack.c.b16 %v789, %v776
  %v829 = vpack.c.b16 %v790, %v777
  %v830 = vpack.c.b16 %v791, %v778
  %v831 = vpack.c.b16 %v792, %v779
  %v832 = vpack.c.b16 %v793, %v780
  %v833 = vpack.c.b16 %v794, %v781
  %v834 = vpack.c.b16 %v795, %v782
  %v835 = vpack.c.b16 %v796, %v783
  %v836 = vpack.c.b16 %v797, %v784
  %v837 = vpack.c.b16 %v798, %v785
  %v838 = vpack.c.b16 %v799, %v786
  %v839 = vpack.c.b16 %v800, %v800
  %v840 = vpack.c.b16 %v801, %v801
  %v841 = vpack.c.b16 %v802, %v802
  %v842 = vpack.c.b16 %v803, %v803
  %v843 = vpack.c.b16 %v804, %v804
  %v844 = vpack.c.b16 %v805, %v805
  %v845 = vpack.c.b16 %v806, %v806
  %v846 = vpack.c.b16 %v807, %v807
  %v847 = vpack.c.b16 %v808, %v808
  %v848 = vpack.c.b16 %v809, %v809
  %v849 = vpack.c.b16 %v810, %v810
  %v850 = vpack.c.b16 %v811, %v811
  %v851 = vpack.c.b16 %v812, %v812
  %vm878 = vcmask 293888
  %v880 = vsel %vm878, %v712, 0
  %vm882 = vcmask 1041408
  %v884 = vsel %vm882, %v839, 0
  %v887 = vsel %vm882, %v840, 0
  %v890 = vsel %vm882, %v841, 0
  %v893 = vsel %vm882, %v842, 0
  %v896 = vsel %vm882, %v843, 0
  %v899 = vsel %vm882, %v844, 0
  %v902 = vsel %vm882, %v845, 0
  %v905 = vsel %vm882, %v846, 0
  %v908 = vsel %vm882, %v847, 0
  %v911 = vsel %vm882, %v848, 0
  %v914 = vsel %vm882, %v849, 0
  %v917 = vsel %vm882, %v850, 0
  %v920 = vsel %vm882, %v851, 0
  %922 = vmatpush.bf16.msra.mxu0 0
  %923 = vmatpush.bf16.msra.mxu0 0
  %924 = vmatpush.bf16.msra.mxu0 0
  %925 = vmatpush.bf16.msra.mxu0 0
  %926 = vmatpush.bf16.msra.mxu0 0
  %927 = vmatpush.bf16.msra.mxu0 %v884
  %928 = vmatpush.bf16.msra.mxu0 %v826
  %929 = vmatpush.bf16.msra.mxu0 %v813
  %930 = vmatmul.bf16.gmra.mxu0 %v880
  %v931 = vpop.f32.mrf.mxu0
  %v932 = vadd.f32 0.0, %v931
  %v933 = vpop.f32.mrf.mxu0
  %934 = vdwg.mxu0
  %935 = vmatpush.bf16.msra.mxu0 0
  %936 = vmatpush.bf16.msra.mxu0 0
  %937 = vmatpush.bf16.msra.mxu0 0
  %938 = vmatpush.bf16.msra.mxu0 0
  %939 = vmatpush.bf16.msra.mxu0 0
  %940 = vmatpush.bf16.msra.mxu0 %v887
  %941 = vmatpush.bf16.msra.mxu0 %v827
  %942 = vmatpush.bf16.msra.mxu0 %v814
  %943 = vmatmul.bf16.gmra.mxu0 %v880
  %v944 = vpop.f32.mrf.mxu0
  %v945 = vadd.f32 0.0, %v944
  %v946 = vpop.f32.mrf.mxu0
  %947 = vdwg.mxu0
  %948 = vmatpush.bf16.msra.mxu0 0
  %949 = vmatpush.bf16.msra.mxu0 0
  %950 = vmatpush.bf16.msra.mxu0 0
  %951 = vmatpush.bf16.msra.mxu0 0
  %952 = vmatpush.bf16.msra.mxu0 0
  %953 = vmatpush.bf16.msra.mxu0 %v890
  %954 = vmatpush.bf16.msra.mxu0 %v828
  %955 = vmatpush.bf16.msra.mxu0 %v815
  %956 = vmatmul.bf16.gmra.mxu0 %v880
  %v957 = vpop.f32.mrf.mxu0
  %v958 = vadd.f32 0.0, %v957
  %v959 = vpop.f32.mrf.mxu0
  %960 = vdwg.mxu0
  %961 = vmatpush.bf16.msra.mxu0 0
  %962 = vmatpush.bf16.msra.mxu0 0
  %963 = vmatpush.bf16.msra.mxu0 0
  %964 = vmatpush.bf16.msra.mxu0 0
  %965 = vmatpush.bf16.msra.mxu0 0
  %966 = vmatpush.bf16.msra.mxu0 %v893
  %967 = vmatpush.bf16.msra.mxu0 %v829
  %968 = vmatpush.bf16.msra.mxu0 %v816
  %969 = vmatmul.bf16.gmra.mxu0 %v880
  %v970 = vpop.f32.mrf.mxu0
  %v971 = vadd.f32 0.0, %v970
  %v972 = vpop.f32.mrf.mxu0
  %973 = vdwg.mxu0
  %974 = vmatpush.bf16.msra.mxu0 0
  %975 = vmatpush.bf16.msra.mxu0 0
  %976 = vmatpush.bf16.msra.mxu0 0
  %977 = vmatpush.bf16.msra.mxu0 0
  %978 = vmatpush.bf16.msra.mxu0 0
  %979 = vmatpush.bf16.msra.mxu0 %v896
  %980 = vmatpush.bf16.msra.mxu0 %v830
  %981 = vmatpush.bf16.msra.mxu0 %v817
  %982 = vmatmul.bf16.gmra.mxu0 %v880
  %v983 = vpop.f32.mrf.mxu0
  %v984 = vadd.f32 0.0, %v983
  %v985 = vpop.f32.mrf.mxu0
  %986 = vdwg.mxu0
  %987 = vmatpush.bf16.msra.mxu0 0
  %988 = vmatpush.bf16.msra.mxu0 0
  %989 = vmatpush.bf16.msra.mxu0 0
  %990 = vmatpush.bf16.msra.mxu0 0
  %991 = vmatpush.bf16.msra.mxu0 0
  %992 = vmatpush.bf16.msra.mxu0 %v899
  %993 = vmatpush.bf16.msra.mxu0 %v831
  %994 = vmatpush.bf16.msra.mxu0 %v818
  %995 = vmatmul.bf16.gmra.mxu0 %v880
  %v996 = vpop.f32.mrf.mxu0
  %v997 = vadd.f32 0.0, %v996
  %v998 = vpop.f32.mrf.mxu0
  %999 = vdwg.mxu0
  %1000 = vmatpush.bf16.msra.mxu0 0
  %1001 = vmatpush.bf16.msra.mxu0 0
  %1002 = vmatpush.bf16.msra.mxu0 0
  %1003 = vmatpush.bf16.msra.mxu0 0
  %1004 = vmatpush.bf16.msra.mxu0 0
  %1005 = vmatpush.bf16.msra.mxu0 %v902
  %1006 = vmatpush.bf16.msra.mxu0 %v832
  %1007 = vmatpush.bf16.msra.mxu0 %v819
  %1008 = vmatmul.bf16.gmra.mxu0 %v880
  %v1009 = vpop.f32.mrf.mxu0
  %v1010 = vadd.f32 0.0, %v1009
  %v1011 = vpop.f32.mrf.mxu0
  %1012 = vdwg.mxu0
  %1013 = vmatpush.bf16.msra.mxu0 0
  %1014 = vmatpush.bf16.msra.mxu0 0
  %1015 = vmatpush.bf16.msra.mxu0 0
  %1016 = vmatpush.bf16.msra.mxu0 0
  %1017 = vmatpush.bf16.msra.mxu0 0
  %1018 = vmatpush.bf16.msra.mxu0 %v905
  %1019 = vmatpush.bf16.msra.mxu0 %v833
  %1020 = vmatpush.bf16.msra.mxu0 %v820
  %1021 = vmatmul.bf16.gmra.mxu0 %v880
  %v1022 = vpop.f32.mrf.mxu0
  %v1023 = vadd.f32 0.0, %v1022
  %v1024 = vpop.f32.mrf.mxu0
  %1025 = vdwg.mxu0
  %1026 = vmatpush.bf16.msra.mxu0 0
  %1027 = vmatpush.bf16.msra.mxu0 0
  %1028 = vmatpush.bf16.msra.mxu0 0
  %1029 = vmatpush.bf16.msra.mxu0 0
  %1030 = vmatpush.bf16.msra.mxu0 0
  %1031 = vmatpush.bf16.msra.mxu0 %v908
  %1032 = vmatpush.bf16.msra.mxu0 %v834
  %1033 = vmatpush.bf16.msra.mxu0 %v821
  %1034 = vmatmul.bf16.gmra.mxu0 %v880
  %v1035 = vpop.f32.mrf.mxu0
  %v1036 = vadd.f32 0.0, %v1035
  %v1037 = vpop.f32.mrf.mxu0
  %1038 = vdwg.mxu0
  %1039 = vmatpush.bf16.msra.mxu0 0
  %1040 = vmatpush.bf16.msra.mxu0 0
  %1041 = vmatpush.bf16.msra.mxu0 0
  %1042 = vmatpush.bf16.msra.mxu0 0
  %1043 = vmatpush.bf16.msra.mxu0 0
  %1044 = vmatpush.bf16.msra.mxu0 %v911
  %1045 = vmatpush.bf16.msra.mxu0 %v835
  %1046 = vmatpush.bf16.msra.mxu0 %v822
  %1047 = vmatmul.bf16.gmra.mxu0 %v880
  %v1048 = vpop.f32.mrf.mxu0
  %v1049 = vadd.f32 0.0, %v1048
  %v1050 = vpop.f32.mrf.mxu0
  %1051 = vdwg.mxu0
  %1052 = vmatpush.bf16.msra.mxu0 0
  %1053 = vmatpush.bf16.msra.mxu0 0
  %1054 = vmatpush.bf16.msra.mxu0 0
  %1055 = vmatpush.bf16.msra.mxu0 0
  %1056 = vmatpush.bf16.msra.mxu0 0
  %1057 = vmatpush.bf16.msra.mxu0 %v914
  %1058 = vmatpush.bf16.msra.mxu0 %v836
  %1059 = vmatpush.bf16.msra.mxu0 %v823
  %1060 = vmatmul.bf16.gmra.mxu0 %v880
  %v1061 = vpop.f32.mrf.mxu0
  %v1062 = vadd.f32 0.0, %v1061
  %v1063 = vpop.f32.mrf.mxu0
  %1064 = vdwg.mxu0
  %1065 = vmatpush.bf16.msra.mxu0 0
  %1066 = vmatpush.bf16.msra.mxu0 0
  %1067 = vmatpush.bf16.msra.mxu0 0
  %1068 = vmatpush.bf16.msra.mxu0 0
  %1069 = vmatpush.bf16.msra.mxu0 0
  %1070 = vmatpush.bf16.msra.mxu0 %v917
  %1071 = vmatpush.bf16.msra.mxu0 %v837
  %1072 = vmatpush.bf16.msra.mxu0 %v824
  %1073 = vmatmul.bf16.gmra.mxu0 %v880
  %v1074 = vpop.f32.mrf.mxu0
  %v1075 = vadd.f32 0.0, %v1074
  %v1076 = vpop.f32.mrf.mxu0
  %1077 = vdwg.mxu0
  %1078 = vmatpush.bf16.msra.mxu0 0
  %1079 = vmatpush.bf16.msra.mxu0 0
  %1080 = vmatpush.bf16.msra.mxu0 0
  %1081 = vmatpush.bf16.msra.mxu0 0
  %1082 = vmatpush.bf16.msra.mxu0 0
  %1083 = vmatpush.bf16.msra.mxu0 %v920
  %1084 = vmatpush.bf16.msra.mxu0 %v838
  %1085 = vmatpush.bf16.msra.mxu0 %v825
  %1086 = vmatmul.bf16.gmra.mxu0 %v880
  %v1087 = vpop.f32.mrf.mxu0
  %v1088 = vadd.f32 0.0, %v1087
  %v1089 = vpop.f32.mrf.mxu0
  %1090 = vdwg.mxu0
  %1091 = vst [vmem:[%s2] sm:$0xff] %v932
  %1092 = vst [vmem:[%s2 + $0x8] sm:$0xff] %v945
  %1093 = vst [vmem:[%s2 + $0x10] sm:$0xff] %v958
  %1094 = vst [vmem:[%s2 + $0x18] sm:$0xff] %v971
  %1095 = vst [vmem:[%s2 + $0x20] sm:$0xff] %v984
  %1096 = vst [vmem:[%s2 + $0x28] sm:$0xff] %v997
  %1097 = vst [vmem:[%s2 + $0x30] sm:$0xff] %v1010
  %1098 = vst [vmem:[%s2 + $0x38] sm:$0xff] %v1023
  %1099 = vst [vmem:[%s2 + $0x40] sm:$0xff] %v1036
  %1100 = vst [vmem:[%s2 + $0x48] sm:$0xff] %v1049
  %1101 = vst [vmem:[%s2 + $0x50] sm:$0xff] %v1062
  %1102 = vst [vmem:[%s2 + $0x58] sm:$0xff] %v1075
  %1103 = vst [vmem:[%s2 + $0x60] sm:$0xff] %v1088
  %s1104 = scalar_lea.vmem %s1, 4
  %v1105 = vld [vmem:[%s1104] sm:$0xf]
  %v1107 = vsel %vm878, %v1105, 0
  %1109 = vmatpush.bf16.msra.mxu0 0
  %1110 = vmatpush.bf16.msra.mxu0 0
  %1111 = vmatpush.bf16.msra.mxu0 0
  %1112 = vmatpush.bf16.msra.mxu0 0
  %1113 = vmatpush.bf16.msra.mxu0 0
  %1114 = vmatpush.bf16.msra.mxu0 %v884
  %1115 = vmatpush.bf16.msra.mxu0 %v826
  %1116 = vmatpush.bf16.msra.mxu0 %v813
  %1117 = vmatmul.bf16.gmra.mxu0 %v1107
  %v1118 = vpop.f32.mrf.mxu0
  %v1119 = vadd.f32 0.0, %v1118
  %v1120 = vpop.f32.mrf.mxu0
  %1121 = vdwg.mxu0
  %1122 = vmatpush.bf16.msra.mxu0 0
  %1123 = vmatpush.bf16.msra.mxu0 0
  %1124 = vmatpush.bf16.msra.mxu0 0
  %1125 = vmatpush.bf16.msra.mxu0 0
  %1126 = vmatpush.bf16.msra.mxu0 0
  %1127 = vmatpush.bf16.msra.mxu0 %v887
  %1128 = vmatpush.bf16.msra.mxu0 %v827
  %1129 = vmatpush.bf16.msra.mxu0 %v814
  %1130 = vmatmul.bf16.gmra.mxu0 %v1107
  %v1131 = vpop.f32.mrf.mxu0
  %v1132 = vadd.f32 0.0, %v1131
  %v1133 = vpop.f32.mrf.mxu0
  %1134 = vdwg.mxu0
  %1135 = vmatpush.bf16.msra.mxu0 0
  %1136 = vmatpush.bf16.msra.mxu0 0
  %1137 = vmatpush.bf16.msra.mxu0 0
  %1138 = vmatpush.bf16.msra.mxu0 0
  %1139 = vmatpush.bf16.msra.mxu0 0
  %1140 = vmatpush.bf16.msra.mxu0 %v890
  %1141 = vmatpush.bf16.msra.mxu0 %v828
  %1142 = vmatpush.bf16.msra.mxu0 %v815
  %1143 = vmatmul.bf16.gmra.mxu0 %v1107
  %v1144 = vpop.f32.mrf.mxu0
  %v1145 = vadd.f32 0.0, %v1144
  %v1146 = vpop.f32.mrf.mxu0
  %1147 = vdwg.mxu0
  %1148 = vmatpush.bf16.msra.mxu0 0
  %1149 = vmatpush.bf16.msra.mxu0 0
  %1150 = vmatpush.bf16.msra.mxu0 0
  %1151 = vmatpush.bf16.msra.mxu0 0
  %1152 = vmatpush.bf16.msra.mxu0 0
  %1153 = vmatpush.bf16.msra.mxu0 %v893
  %1154 = vmatpush.bf16.msra.mxu0 %v829
  %1155 = vmatpush.bf16.msra.mxu0 %v816
  %1156 = vmatmul.bf16.gmra.mxu0 %v1107
  %v1157 = vpop.f32.mrf.mxu0
  %v1158 = vadd.f32 0.0, %v1157
  %v1159 = vpop.f32.mrf.mxu0
  %1160 = vdwg.mxu0
  %1161 = vmatpush.bf16.msra.mxu0 0
  %1162 = vmatpush.bf16.msra.mxu0 0
  %1163 = vmatpush.bf16.msra.mxu0 0
  %1164 = vmatpush.bf16.msra.mxu0 0
  %1165 = vmatpush.bf16.msra.mxu0 0
  %1166 = vmatpush.bf16.msra.mxu0 %v896
  %1167 = vmatpush.bf16.msra.mxu0 %v830
  %1168 = vmatpush.bf16.msra.mxu0 %v817
  %1169 = vmatmul.bf16.gmra.mxu0 %v1107
  %v1170 = vpop.f32.mrf.mxu0
  %v1171 = vadd.f32 0.0, %v1170
  %v1172 = vpop.f32.mrf.mxu0
  %1173 = vdwg.mxu0
  %1174 = vmatpush.bf16.msra.mxu0 0
  %1175 = vmatpush.bf16.msra.mxu0 0
  %1176 = vmatpush.bf16.msra.mxu0 0
  %1177 = vmatpush.bf16.msra.mxu0 0
  %1178 = vmatpush.bf16.msra.mxu0 0
  %1179 = vmatpush.bf16.msra.mxu0 %v899
  %1180 = vmatpush.bf16.msra.mxu0 %v831
  %1181 = vmatpush.bf16.msra.mxu0 %v818
  %1182 = vmatmul.bf16.gmra.mxu0 %v1107
  %v1183 = vpop.f32.mrf.mxu0
  %v1184 = vadd.f32 0.0, %v1183
  %v1185 = vpop.f32.mrf.mxu0
  %1186 = vdwg.mxu0
  %1187 = vmatpush.bf16.msra.mxu0 0
  %1188 = vmatpush.bf16.msra.mxu0 0
  %1189 = vmatpush.bf16.msra.mxu0 0
  %1190 = vmatpush.bf16.msra.mxu0 0
  %1191 = vmatpush.bf16.msra.mxu0 0
  %1192 = vmatpush.bf16.msra.mxu0 %v902
  %1193 = vmatpush.bf16.msra.mxu0 %v832
  %1194 = vmatpush.bf16.msra.mxu0 %v819
  %1195 = vmatmul.bf16.gmra.mxu0 %v1107
  %v1196 = vpop.f32.mrf.mxu0
  %v1197 = vadd.f32 0.0, %v1196
  %v1198 = vpop.f32.mrf.mxu0
  %1199 = vdwg.mxu0
  %1200 = vmatpush.bf16.msra.mxu0 0
  %1201 = vmatpush.bf16.msra.mxu0 0
  %1202 = vmatpush.bf16.msra.mxu0 0
  %1203 = vmatpush.bf16.msra.mxu0 0
  %1204 = vmatpush.bf16.msra.mxu0 0
  %1205 = vmatpush.bf16.msra.mxu0 %v905
  %1206 = vmatpush.bf16.msra.mxu0 %v833
  %1207 = vmatpush.bf16.msra.mxu0 %v820
  %1208 = vmatmul.bf16.gmra.mxu0 %v1107
  %v1209 = vpop.f32.mrf.mxu0
  %v1210 = vadd.f32 0.0, %v1209
  %v1211 = vpop.f32.mrf.mxu0
  %1212 = vdwg.mxu0
  %1213 = vmatpush.bf16.msra.mxu0 0
  %1214 = vmatpush.bf16.msra.mxu0 0
  %1215 = vmatpush.bf16.msra.mxu0 0
  %1216 = vmatpush.bf16.msra.mxu0 0
  %1217 = vmatpush.bf16.msra.mxu0 0
  %1218 = vmatpush.bf16.msra.mxu0 %v908
  %1219 = vmatpush.bf16.msra.mxu0 %v834
  %1220 = vmatpush.bf16.msra.mxu0 %v821
  %1221 = vmatmul.bf16.gmra.mxu0 %v1107
  %v1222 = vpop.f32.mrf.mxu0
  %v1223 = vadd.f32 0.0, %v1222
  %v1224 = vpop.f32.mrf.mxu0
  %1225 = vdwg.mxu0
  %1226 = vmatpush.bf16.msra.mxu0 0
  %1227 = vmatpush.bf16.msra.mxu0 0
  %1228 = vmatpush.bf16.msra.mxu0 0
  %1229 = vmatpush.bf16.msra.mxu0 0
  %1230 = vmatpush.bf16.msra.mxu0 0
  %1231 = vmatpush.bf16.msra.mxu0 %v911
  %1232 = vmatpush.bf16.msra.mxu0 %v835
  %1233 = vmatpush.bf16.msra.mxu0 %v822
  %1234 = vmatmul.bf16.gmra.mxu0 %v1107
  %v1235 = vpop.f32.mrf.mxu0
  %v1236 = vadd.f32 0.0, %v1235
  %v1237 = vpop.f32.mrf.mxu0
  %1238 = vdwg.mxu0
  %1239 = vmatpush.bf16.msra.mxu0 0
  %1240 = vmatpush.bf16.msra.mxu0 0
  %1241 = vmatpush.bf16.msra.mxu0 0
  %1242 = vmatpush.bf16.msra.mxu0 0
  %1243 = vmatpush.bf16.msra.mxu0 0
  %1244 = vmatpush.bf16.msra.mxu0 %v914
  %1245 = vmatpush.bf16.msra.mxu0 %v836
  %1246 = vmatpush.bf16.msra.mxu0 %v823
  %1247 = vmatmul.bf16.gmra.mxu0 %v1107
  %v1248 = vpop.f32.mrf.mxu0
  %v1249 = vadd.f32 0.0, %v1248
  %v1250 = vpop.f32.mrf.mxu0
  %1251 = vdwg.mxu0
  %1252 = vmatpush.bf16.msra.mxu0 0
  %1253 = vmatpush.bf16.msra.mxu0 0
  %1254 = vmatpush.bf16.msra.mxu0 0
  %1255 = vmatpush.bf16.msra.mxu0 0
  %1256 = vmatpush.bf16.msra.mxu0 0
  %1257 = vmatpush.bf16.msra.mxu0 %v917
  %1258 = vmatpush.bf16.msra.mxu0 %v837
  %1259 = vmatpush.bf16.msra.mxu0 %v824
  %1260 = vmatmul.bf16.gmra.mxu0 %v1107
  %v1261 = vpop.f32.mrf.mxu0
  %v1262 = vadd.f32 0.0, %v1261
  %v1263 = vpop.f32.mrf.mxu0
  %1264 = vdwg.mxu0
  %1265 = vmatpush.bf16.msra.mxu0 0
  %1266 = vmatpush.bf16.msra.mxu0 0
  %1267 = vmatpush.bf16.msra.mxu0 0
  %1268 = vmatpush.bf16.msra.mxu0 0
  %1269 = vmatpush.bf16.msra.mxu0 0
  %1270 = vmatpush.bf16.msra.mxu0 %v920
  %1271 = vmatpush.bf16.msra.mxu0 %v838
  %1272 = vmatpush.bf16.msra.mxu0 %v825
  %1273 = vmatmul.bf16.gmra.mxu0 %v1107
  %v1274 = vpop.f32.mrf.mxu0
  %v1275 = vadd.f32 0.0, %v1274
  %v1276 = vpop.f32.mrf.mxu0
  %1277 = vdwg.mxu0
  %v1278 = vld [vmem:[%s2] sm:$0xff]
  %v1279 = vld [vmem:[%s2 + $0x8] sm:$0xff]
  %v1280 = vld [vmem:[%s2 + $0x10] sm:$0xff]
  %v1281 = vld [vmem:[%s2 + $0x18] sm:$0xff]
  %v1282 = vld [vmem:[%s2 + $0x20] sm:$0xff]
  %v1283 = vld [vmem:[%s2 + $0x28] sm:$0xff]
  %v1284 = vld [vmem:[%s2 + $0x30] sm:$0xff]
  %v1285 = vld [vmem:[%s2 + $0x38] sm:$0xff]
  %v1286 = vld [vmem:[%s2 + $0x40] sm:$0xff]
  %v1287 = vld [vmem:[%s2 + $0x48] sm:$0xff]
  %v1288 = vld [vmem:[%s2 + $0x50] sm:$0xff]
  %v1289 = vld [vmem:[%s2 + $0x58] sm:$0xff]
  %v1290 = vld [vmem:[%s2 + $0x60] sm:$0xff]
  %1304 = vrot.lane.b32.xlu0 %v1119, 127
  %v1305 = vpop.permute.xlu0 %1304
  %1306 = vrot.lane.b32.xlu0 %v1132, 127
  %v1307 = vpop.permute.xlu0 %1306
  %1308 = vrot.lane.b32.xlu0 %v1145, 127
  %v1309 = vpop.permute.xlu0 %1308
  %1310 = vrot.lane.b32.xlu0 %v1158, 127
  %v1311 = vpop.permute.xlu0 %1310
  %1312 = vrot.lane.b32.xlu0 %v1171, 127
  %v1313 = vpop.permute.xlu0 %1312
  %1314 = vrot.lane.b32.xlu0 %v1184, 127
  %v1315 = vpop.permute.xlu0 %1314
  %1316 = vrot.lane.b32.xlu0 %v1197, 127
  %v1317 = vpop.permute.xlu0 %1316
  %1318 = vrot.lane.b32.xlu0 %v1210, 127
  %v1319 = vpop.permute.xlu0 %1318
  %1320 = vrot.lane.b32.xlu0 %v1223, 127
  %v1321 = vpop.permute.xlu0 %1320
  %1322 = vrot.lane.b32.xlu0 %v1236, 127
  %v1323 = vpop.permute.xlu0 %1322
  %1324 = vrot.lane.b32.xlu0 %v1249, 127
  %v1325 = vpop.permute.xlu0 %1324
  %1326 = vrot.lane.b32.xlu0 %v1262, 127
  %v1327 = vpop.permute.xlu0 %1326
  %1328 = vrot.lane.b32.xlu0 %v1275, 127
  %v1329 = vpop.permute.xlu0 %1328
  %vm1330 = vcmask 1039360
  %v1331 = vsel %vm1330, %v1305, %v1307
  %v1332 = vsel %vm1330, %v1307, %v1309
  %v1333 = vsel %vm1330, %v1309, %v1311
  %v1334 = vsel %vm1330, %v1311, %v1313
  %v1335 = vsel %vm1330, %v1313, %v1315
  %v1336 = vsel %vm1330, %v1315, %v1317
  %v1337 = vsel %vm1330, %v1317, %v1319
  %v1338 = vsel %vm1330, %v1319, %v1321
  %v1339 = vsel %vm1330, %v1321, %v1323
  %v1340 = vsel %vm1330, %v1323, %v1325
  %v1341 = vsel %vm1330, %v1325, %v1327
  %v1342 = vsel %vm1330, %v1327, %v1329
  %v1356 = vadd.f32 %v1278, %v1331
  %v1357 = vadd.f32 %v1279, %v1332
  %v1358 = vadd.f32 %v1280, %v1333
  %v1359 = vadd.f32 %v1281, %v1334
  %v1360 = vadd.f32 %v1282, %v1335
  %v1361 = vadd.f32 %v1283, %v1336
  %v1362 = vadd.f32 %v1284, %v1337
  %v1363 = vadd.f32 %v1285, %v1338
  %v1364 = vadd.f32 %v1286, %v1339
  %v1365 = vadd.f32 %v1287, %v1340
  %v1366 = vadd.f32 %v1288, %v1341
  %v1367 = vadd.f32 %v1289, %v1342
  %v1368 = vadd.f32 %v1290, %v1329
  %1369 = vst [vmem:[%s2] sm:$0xff] %v1356
  %1370 = vst [vmem:[%s2 + $0x8] sm:$0xff] %v1357
  %1371 = vst [vmem:[%s2 + $0x10] sm:$0xff] %v1358
  %1372 = vst [vmem:[%s2 + $0x18] sm:$0xff] %v1359
  %1373 = vst [vmem:[%s2 + $0x20] sm:$0xff] %v1360
  %1374 = vst [vmem:[%s2 + $0x28] sm:$0xff] %v1361
  %1375 = vst [vmem:[%s2 + $0x30] sm:$0xff] %v1362
  %1376 = vst [vmem:[%s2 + $0x38] sm:$0xff] %v1363
  %1377 = vst [vmem:[%s2 + $0x40] sm:$0xff] %v1364
  %1378 = vst [vmem:[%s2 + $0x48] sm:$0xff] %v1365
  %1379 = vst [vmem:[%s2 + $0x50] sm:$0xff] %v1366
  %1380 = vst [vmem:[%s2 + $0x58] sm:$0xff] %v1367
  %1381 = vst.msk [vmem:[%s2 + $0x60] sm:$0xff] %vm1330, %v1368
  %s1382 = scalar_lea.vmem %s1, 8
  %v1383 = vld [vmem:[%s1382] sm:$0xf]
  %v1385 = vsel %vm878, %v1383, 0
  %1387 = vmatpush.bf16.msra.mxu0 0
  %1388 = vmatpush.bf16.msra.mxu0 0
  %1389 = vmatpush.bf16.msra.mxu0 0
  %1390 = vmatpush.bf16.msra.mxu0 0
  %1391 = vmatpush.bf16.msra.mxu0 0
  %1392 = vmatpush.bf16.msra.mxu0 %v884
  %1393 = vmatpush.bf16.msra.mxu0 %v826
  %1394 = vmatpush.bf16.msra.mxu0 %v813
  %1395 = vmatmul.bf16.gmra.mxu0 %v1385
  %v1396 = vpop.f32.mrf.mxu0
  %v1397 = vadd.f32 0.0, %v1396
  %v1398 = vpop.f32.mrf.mxu0
  %1399 = vdwg.mxu0
  %1400 = vmatpush.bf16.msra.mxu0 0
  %1401 = vmatpush.bf16.msra.mxu0 0
  %1402 = vmatpush.bf16.msra.mxu0 0
  %1403 = vmatpush.bf16.msra.mxu0 0
  %1404 = vmatpush.bf16.msra.mxu0 0
  %1405 = vmatpush.bf16.msra.mxu0 %v887
  %1406 = vmatpush.bf16.msra.mxu0 %v827
  %1407 = vmatpush.bf16.msra.mxu0 %v814
  %1408 = vmatmul.bf16.gmra.mxu0 %v1385
  %v1409 = vpop.f32.mrf.mxu0
  %v1410 = vadd.f32 0.0, %v1409
  %v1411 = vpop.f32.mrf.mxu0
  %1412 = vdwg.mxu0
  %1413 = vmatpush.bf16.msra.mxu0 0
  %1414 = vmatpush.bf16.msra.mxu0 0
  %1415 = vmatpush.bf16.msra.mxu0 0
  %1416 = vmatpush.bf16.msra.mxu0 0
  %1417 = vmatpush.bf16.msra.mxu0 0
  %1418 = vmatpush.bf16.msra.mxu0 %v890
  %1419 = vmatpush.bf16.msra.mxu0 %v828
  %1420 = vmatpush.bf16.msra.mxu0 %v815
  %1421 = vmatmul.bf16.gmra.mxu0 %v1385
  %v1422 = vpop.f32.mrf.mxu0
  %v1423 = vadd.f32 0.0, %v1422
  %v1424 = vpop.f32.mrf.mxu0
  %1425 = vdwg.mxu0
  %1426 = vmatpush.bf16.msra.mxu0 0
  %1427 = vmatpush.bf16.msra.mxu0 0
  %1428 = vmatpush.bf16.msra.mxu0 0
  %1429 = vmatpush.bf16.msra.mxu0 0
  %1430 = vmatpush.bf16.msra.mxu0 0
  %1431 = vmatpush.bf16.msra.mxu0 %v893
  %1432 = vmatpush.bf16.msra.mxu0 %v829
  %1433 = vmatpush.bf16.msra.mxu0 %v816
  %1434 = vmatmul.bf16.gmra.mxu0 %v1385
  %v1435 = vpop.f32.mrf.mxu0
  %v1436 = vadd.f32 0.0, %v1435
  %v1437 = vpop.f32.mrf.mxu0
  %1438 = vdwg.mxu0
  %1439 = vmatpush.bf16.msra.mxu0 0
  %1440 = vmatpush.bf16.msra.mxu0 0
  %1441 = vmatpush.bf16.msra.mxu0 0
  %1442 = vmatpush.bf16.msra.mxu0 0
  %1443 = vmatpush.bf16.msra.mxu0 0
  %1444 = vmatpush.bf16.msra.mxu0 %v896
  %1445 = vmatpush.bf16.msra.mxu0 %v830
  %1446 = vmatpush.bf16.msra.mxu0 %v817
  %1447 = vmatmul.bf16.gmra.mxu0 %v1385
  %v1448 = vpop.f32.mrf.mxu0
  %v1449 = vadd.f32 0.0, %v1448
  %v1450 = vpop.f32.mrf.mxu0
  %1451 = vdwg.mxu0
  %1452 = vmatpush.bf16.msra.mxu0 0
  %1453 = vmatpush.bf16.msra.mxu0 0
  %1454 = vmatpush.bf16.msra.mxu0 0
  %1455 = vmatpush.bf16.msra.mxu0 0
  %1456 = vmatpush.bf16.msra.mxu0 0
  %1457 = vmatpush.bf16.msra.mxu0 %v899
  %1458 = vmatpush.bf16.msra.mxu0 %v831
  %1459 = vmatpush.bf16.msra.mxu0 %v818
  %1460 = vmatmul.bf16.gmra.mxu0 %v1385
  %v1461 = vpop.f32.mrf.mxu0
  %v1462 = vadd.f32 0.0, %v1461
  %v1463 = vpop.f32.mrf.mxu0
  %1464 = vdwg.mxu0
  %1465 = vmatpush.bf16.msra.mxu0 0
  %1466 = vmatpush.bf16.msra.mxu0 0
  %1467 = vmatpush.bf16.msra.mxu0 0
  %1468 = vmatpush.bf16.msra.mxu0 0
  %1469 = vmatpush.bf16.msra.mxu0 0
  %1470 = vmatpush.bf16.msra.mxu0 %v902
  %1471 = vmatpush.bf16.msra.mxu0 %v832
  %1472 = vmatpush.bf16.msra.mxu0 %v819
  %1473 = vmatmul.bf16.gmra.mxu0 %v1385
  %v1474 = vpop.f32.mrf.mxu0
  %v1475 = vadd.f32 0.0, %v1474
  %v1476 = vpop.f32.mrf.mxu0
  %1477 = vdwg.mxu0
  %1478 = vmatpush.bf16.msra.mxu0 0
  %1479 = vmatpush.bf16.msra.mxu0 0
  %1480 = vmatpush.bf16.msra.mxu0 0
  %1481 = vmatpush.bf16.msra.mxu0 0
  %1482 = vmatpush.bf16.msra.mxu0 0
  %1483 = vmatpush.bf16.msra.mxu0 %v905
  %1484 = vmatpush.bf16.msra.mxu0 %v833
  %1485 = vmatpush.bf16.msra.mxu0 %v820
  %1486 = vmatmul.bf16.gmra.mxu0 %v1385
  %v1487 = vpop.f32.mrf.mxu0
  %v1488 = vadd.f32 0.0, %v1487
  %v1489 = vpop.f32.mrf.mxu0
  %1490 = vdwg.mxu0
  %1491 = vmatpush.bf16.msra.mxu0 0
  %1492 = vmatpush.bf16.msra.mxu0 0
  %1493 = vmatpush.bf16.msra.mxu0 0
  %1494 = vmatpush.bf16.msra.mxu0 0
  %1495 = vmatpush.bf16.msra.mxu0 0
  %1496 = vmatpush.bf16.msra.mxu0 %v908
  %1497 = vmatpush.bf16.msra.mxu0 %v834
  %1498 = vmatpush.bf16.msra.mxu0 %v821
  %1499 = vmatmul.bf16.gmra.mxu0 %v1385
  %v1500 = vpop.f32.mrf.mxu0
  %v1501 = vadd.f32 0.0, %v1500
  %v1502 = vpop.f32.mrf.mxu0
  %1503 = vdwg.mxu0
  %1504 = vmatpush.bf16.msra.mxu0 0
  %1505 = vmatpush.bf16.msra.mxu0 0
  %1506 = vmatpush.bf16.msra.mxu0 0
  %1507 = vmatpush.bf16.msra.mxu0 0
  %1508 = vmatpush.bf16.msra.mxu0 0
  %1509 = vmatpush.bf16.msra.mxu0 %v911
  %1510 = vmatpush.bf16.msra.mxu0 %v835
  %1511 = vmatpush.bf16.msra.mxu0 %v822
  %1512 = vmatmul.bf16.gmra.mxu0 %v1385
  %v1513 = vpop.f32.mrf.mxu0
  %v1514 = vadd.f32 0.0, %v1513
  %v1515 = vpop.f32.mrf.mxu0
  %1516 = vdwg.mxu0
  %1517 = vmatpush.bf16.msra.mxu0 0
  %1518 = vmatpush.bf16.msra.mxu0 0
  %1519 = vmatpush.bf16.msra.mxu0 0
  %1520 = vmatpush.bf16.msra.mxu0 0
  %1521 = vmatpush.bf16.msra.mxu0 0
  %1522 = vmatpush.bf16.msra.mxu0 %v914
  %1523 = vmatpush.bf16.msra.mxu0 %v836
  %1524 = vmatpush.bf16.msra.mxu0 %v823
  %1525 = vmatmul.bf16.gmra.mxu0 %v1385
  %v1526 = vpop.f32.mrf.mxu0
  %v1527 = vadd.f32 0.0, %v1526
  %v1528 = vpop.f32.mrf.mxu0
  %1529 = vdwg.mxu0
  %1530 = vmatpush.bf16.msra.mxu0 0
  %1531 = vmatpush.bf16.msra.mxu0 0
  %1532 = vmatpush.bf16.msra.mxu0 0
  %1533 = vmatpush.bf16.msra.mxu0 0
  %1534 = vmatpush.bf16.msra.mxu0 0
  %1535 = vmatpush.bf16.msra.mxu0 %v917
  %1536 = vmatpush.bf16.msra.mxu0 %v837
  %1537 = vmatpush.bf16.msra.mxu0 %v824
  %1538 = vmatmul.bf16.gmra.mxu0 %v1385
  %v1539 = vpop.f32.mrf.mxu0
  %v1540 = vadd.f32 0.0, %v1539
  %v1541 = vpop.f32.mrf.mxu0
  %1542 = vdwg.mxu0
  %1543 = vmatpush.bf16.msra.mxu0 0
  %1544 = vmatpush.bf16.msra.mxu0 0
  %1545 = vmatpush.bf16.msra.mxu0 0
  %1546 = vmatpush.bf16.msra.mxu0 0
  %1547 = vmatpush.bf16.msra.mxu0 0
  %1548 = vmatpush.bf16.msra.mxu0 %v920
  %1549 = vmatpush.bf16.msra.mxu0 %v838
  %1550 = vmatpush.bf16.msra.mxu0 %v825
  %1551 = vmatmul.bf16.gmra.mxu0 %v1385
  %v1552 = vpop.f32.mrf.mxu0
  %v1553 = vadd.f32 0.0, %v1552
  %v1554 = vpop.f32.mrf.mxu0
  %1555 = vdwg.mxu0
  %v1556 = vld [vmem:[%s2] sm:$0xff]
  %v1557 = vld [vmem:[%s2 + $0x8] sm:$0xff]
  %v1558 = vld [vmem:[%s2 + $0x10] sm:$0xff]
  %v1559 = vld [vmem:[%s2 + $0x18] sm:$0xff]
  %v1560 = vld [vmem:[%s2 + $0x20] sm:$0xff]
  %v1561 = vld [vmem:[%s2 + $0x28] sm:$0xff]
  %v1562 = vld [vmem:[%s2 + $0x30] sm:$0xff]
  %v1563 = vld [vmem:[%s2 + $0x38] sm:$0xff]
  %v1564 = vld [vmem:[%s2 + $0x40] sm:$0xff]
  %v1565 = vld [vmem:[%s2 + $0x48] sm:$0xff]
  %v1566 = vld [vmem:[%s2 + $0x50] sm:$0xff]
  %v1567 = vld [vmem:[%s2 + $0x58] sm:$0xff]
  %v1568 = vld [vmem:[%s2 + $0x60] sm:$0xff]
  %1582 = vrot.lane.b32.xlu0 %v1397, 126
  %v1583 = vpop.permute.xlu0 %1582
  %1584 = vrot.lane.b32.xlu0 %v1410, 126
  %v1585 = vpop.permute.xlu0 %1584
  %1586 = vrot.lane.b32.xlu0 %v1423, 126
  %v1587 = vpop.permute.xlu0 %1586
  %1588 = vrot.lane.b32.xlu0 %v1436, 126
  %v1589 = vpop.permute.xlu0 %1588
  %1590 = vrot.lane.b32.xlu0 %v1449, 126
  %v1591 = vpop.permute.xlu0 %1590
  %1592 = vrot.lane.b32.xlu0 %v1462, 126
  %v1593 = vpop.permute.xlu0 %1592
  %1594 = vrot.lane.b32.xlu0 %v1475, 126
  %v1595 = vpop.permute.xlu0 %1594
  %1596 = vrot.lane.b32.xlu0 %v1488, 126
  %v1597 = vpop.permute.xlu0 %1596
  %1598 = vrot.lane.b32.xlu0 %v1501, 126
  %v1599 = vpop.permute.xlu0 %1598
  %1600 = vrot.lane.b32.xlu0 %v1514, 126
  %v1601 = vpop.permute.xlu0 %1600
  %1602 = vrot.lane.b32.xlu0 %v1527, 126
  %v1603 = vpop.permute.xlu0 %1602
  %1604 = vrot.lane.b32.xlu0 %v1540, 126
  %v1605 = vpop.permute.xlu0 %1604
  %1606 = vrot.lane.b32.xlu0 %v1553, 126
  %v1607 = vpop.permute.xlu0 %1606
  %vm1608 = vcmask 1031168
  %v1609 = vsel %vm1608, %v1583, %v1585
  %v1610 = vsel %vm1608, %v1585, %v1587
  %v1611 = vsel %vm1608, %v1587, %v1589
  %v1612 = vsel %vm1608, %v1589, %v1591
  %v1613 = vsel %vm1608, %v1591, %v1593
  %v1614 = vsel %vm1608, %v1593, %v1595
  %v1615 = vsel %vm1608, %v1595, %v1597
  %v1616 = vsel %vm1608, %v1597, %v1599
  %v1617 = vsel %vm1608, %v1599, %v1601
  %v1618 = vsel %vm1608, %v1601, %v1603
  %v1619 = vsel %vm1608, %v1603, %v1605
  %v1620 = vsel %vm1608, %v1605, %v1607
  %v1634 = vadd.f32 %v1556, %v1609
  %v1635 = vadd.f32 %v1557, %v1610
  %v1636 = vadd.f32 %v1558, %v1611
  %v1637 = vadd.f32 %v1559, %v1612
  %v1638 = vadd.f32 %v1560, %v1613
  %v1639 = vadd.f32 %v1561, %v1614
  %v1640 = vadd.f32 %v1562, %v1615
  %v1641 = vadd.f32 %v1563, %v1616
  %v1642 = vadd.f32 %v1564, %v1617
  %v1643 = vadd.f32 %v1565, %v1618
  %v1644 = vadd.f32 %v1566, %v1619
  %v1645 = vadd.f32 %v1567, %v1620
  %v1646 = vadd.f32 %v1568, %v1607
  %1647 = vst [vmem:[%s2] sm:$0xff] %v1634
  %1648 = vst [vmem:[%s2 + $0x8] sm:$0xff] %v1635
  %1649 = vst [vmem:[%s2 + $0x10] sm:$0xff] %v1636
  %1650 = vst [vmem:[%s2 + $0x18] sm:$0xff] %v1637
  %1651 = vst [vmem:[%s2 + $0x20] sm:$0xff] %v1638
  %1652 = vst [vmem:[%s2 + $0x28] sm:$0xff] %v1639
  %1653 = vst [vmem:[%s2 + $0x30] sm:$0xff] %v1640
  %1654 = vst [vmem:[%s2 + $0x38] sm:$0xff] %v1641
  %1655 = vst [vmem:[%s2 + $0x40] sm:$0xff] %v1642
  %1656 = vst [vmem:[%s2 + $0x48] sm:$0xff] %v1643
  %1657 = vst [vmem:[%s2 + $0x50] sm:$0xff] %v1644
  %1658 = vst [vmem:[%s2 + $0x58] sm:$0xff] %v1645
  %1659 = vst.msk [vmem:[%s2 + $0x60] sm:$0xff] %vm1608, %v1646
  // Predicated region
  $region10: #{_lambda_.2} parent=0 // pred_check
    _
  $region11: #{_lambda_.2} parent=0 // pred_check_branch
    %1661 = sbr.rel (0) target = $region13
  $region12: #{_lambda_.2} parent=0 // pred_region
    _
  $region13: #{_lambda_.2} parent=0 // pred_fallthru
    _
  // Predicated region
  $region14: #{_lambda_.2} parent=0 // pred_check
    _
  $region15: #{_lambda_.2} parent=0 // pred_check_branch
    %1663 = sbr.rel (0) target = $region17
  $region16: #{_lambda_.2} parent=0 // pred_region
    _
  $region17: #{_lambda_.2} parent=0 // pred_fallthru
    _

// kernel: _lambda_.3
$region0: #{_lambda_.3}
  #allocation0 [shape = 'u32[]', space=smem, size = 0x4, offset = 0x4, fixed_abs, tag = 'smem constant byte address 0x4 - core index']
  #allocation1 [shape = 'u32[72,128]{1,0:T(1,128)}', space=vmem, size = 0x9000, scoped, tag = 'internal scratch']
  #allocation2 [shape = 'bf16[72,1664]{1,0:T(8,128)(2,1)}', space=vmem, size = 0x3a800, scoped, tag = 'scratch operand']
  %s0 = inlined_call_operand.vmem [shape: bf16[8,1920], index: 0, kind: input, shape index: {}]
  %s1 = inlined_call_operand.vmem [shape: bf16[3,8,72], index: 1, kind: input, shape index: {}]
  %s2 = inlined_call_operand.vmem [shape: f32[8,1664], index: 2, kind: output, shape index: {}]
  %s3 = sld [smem:[#allocation0]]
  $region18: #{_lambda_.3} parent=0
    _
  %s5 = ssub.s32 1, %s3
  %s6 = scalar_select 0, %s5, %s3
  // Predicated region
  $region2: #{_lambda_.3} parent=0 // pred_check
    _
  $region3: #{_lambda_.3} parent=0 // pred_check_branch
    %8 = sbr.rel (0) target = $region5
  $region4: #{_lambda_.3} parent=0 // pred_region
    _
  $region5: #{_lambda_.3} parent=0 // pred_fallthru
    _
  // Predicated region
  $region6: #{_lambda_.3} parent=0 // pred_check
    _
  $region7: #{_lambda_.3} parent=0 // pred_check_branch
    %10 = sbr.rel (0) target = $region9
  $region8: #{_lambda_.3} parent=0 // pred_region
    _
  $region9: #{_lambda_.3} parent=0 // pred_fallthru
    _
  %v12 = vld [vmem:[%s0] sm:$0xff]
  %v13 = vld [vmem:[%s0 + $0x8] sm:$0xff]
  %v14 = vld [vmem:[%s0 + $0x10] sm:$0xff]
  %v15 = vld [vmem:[%s0 + $0x18] sm:$0xff]
  %v16 = vld [vmem:[%s0 + $0x20] sm:$0xff]
  %v17 = vld [vmem:[%s0 + $0x28] sm:$0xff]
  %v18 = vld [vmem:[%s0 + $0x30] sm:$0xf]
  %19 = vst [vmem:[#allocation2] sm:$0xff] %v12
  %20 = vst [vmem:[#allocation2 + $0x8] sm:$0xff] %v13
  %21 = vst [vmem:[#allocation2 + $0x10] sm:$0xff] %v14
  %22 = vst [vmem:[#allocation2 + $0x18] sm:$0xff] %v15
  %23 = vst [vmem:[#allocation2 + $0x20] sm:$0xff] %v16
  %24 = vst [vmem:[#allocation2 + $0x28] sm:$0xff] %v17
  %25 = vst [vmem:[#allocation2 + $0x30] sm:$0xf] %v18
  %v26 = vld [vmem:[%s0] sm:$0xff]
  %v27 = vld [vmem:[%s0 + $0x8] sm:$0xff]
  %v28 = vld [vmem:[%s0 + $0x10] sm:$0xff]
  %v29 = vld [vmem:[%s0 + $0x18] sm:$0xff]
  %v30 = vld [vmem:[%s0 + $0x20] sm:$0xff]
  %v31 = vld [vmem:[%s0 + $0x28] sm:$0xff]
  %v32 = vld [vmem:[%s0 + $0x30] sm:$0xff]
  %40 = vrot.lane.b32.xlu0 %v26, 118
  %v41 = vpop.permute.xlu0 %40
  %42 = vrot.lane.b32.xlu0 %v27, 118
  %v43 = vpop.permute.xlu0 %42
  %44 = vrot.lane.b32.xlu0 %v28, 118
  %v45 = vpop.permute.xlu0 %44
  %46 = vrot.lane.b32.xlu0 %v29, 118
  %v47 = vpop.permute.xlu0 %46
  %48 = vrot.lane.b32.xlu0 %v30, 118
  %v49 = vpop.permute.xlu0 %48
  %50 = vrot.lane.b32.xlu0 %v31, 118
  %v51 = vpop.permute.xlu0 %50
  %52 = vrot.lane.b32.xlu0 %v32, 118
  %v53 = vpop.permute.xlu0 %52
  %v54 = vrot.slane %v41, 4
  %v55 = vrot.slane %v43, 4
  %v56 = vrot.slane %v45, 4
  %v57 = vrot.slane %v47, 4
  %v58 = vrot.slane %v49, 4
  %v59 = vrot.slane %v51, 4
  %v60 = vrot.slane %v53, 4
  %vm61 = vcmask 1043456
  %v62 = vsel %vm61, %v54, %v55
  %vm63 = vcmask 965632
  %v64 = vsel %vm63, %v41, %v62
  %v65 = vsel %vm61, %v55, %v56
  %v66 = vsel %vm63, %v43, %v65
  %v67 = vsel %vm61, %v56, %v57
  %v68 = vsel %vm63, %v45, %v67
  %v69 = vsel %vm61, %v57, %v58
  %v70 = vsel %vm63, %v47, %v69
  %v71 = vsel %vm61, %v58, %v59
  %v72 = vsel %vm63, %v49, %v71
  %v73 = vsel %vm61, %v59, %v60
  %v74 = vsel %vm63, %v51, %v73
  %v75 = vsel %vm63, %v53, %v60
  %83 = vst [vmem:[#allocation2 + $0x34] sm:$0xff] %v64
  %84 = vst [vmem:[#allocation2 + $0x3c] sm:$0xff] %v66
  %85 = vst [vmem:[#allocation2 + $0x44] sm:$0xff] %v68
  %86 = vst [vmem:[#allocation2 + $0x4c] sm:$0xff] %v70
  %87 = vst [vmem:[#allocation2 + $0x54] sm:$0xff] %v72
  %88 = vst [vmem:[#allocation2 + $0x5c] sm:$0xff] %v74
  %89 = vst [vmem:[#allocation2 + $0x64] sm:$0xf] %v75
  %v90 = vld [vmem:[%s0] sm:$0xff]
  %v91 = vld [vmem:[%s0 + $0x8] sm:$0xff]
  %v92 = vld [vmem:[%s0 + $0x10] sm:$0xff]
  %v93 = vld [vmem:[%s0 + $0x18] sm:$0xff]
  %v94 = vld [vmem:[%s0 + $0x20] sm:$0xff]
  %v95 = vld [vmem:[%s0 + $0x28] sm:$0xff]
  %v96 = vld [vmem:[%s0 + $0x30] sm:$0xff]
  %104 = vrot.lane.b32.xlu0 %v90, 108
  %v105 = vpop.permute.xlu0 %104
  %106 = vrot.lane.b32.xlu0 %v91, 108
  %v107 = vpop.permute.xlu0 %106
  %108 = vrot.lane.b32.xlu0 %v92, 108
  %v109 = vpop.permute.xlu0 %108
  %110 = vrot.lane.b32.xlu0 %v93, 108
  %v111 = vpop.permute.xlu0 %110
  %112 = vrot.lane.b32.xlu0 %v94, 108
  %v113 = vpop.permute.xlu0 %112
  %114 = vrot.lane.b32.xlu0 %v95, 108
  %v115 = vpop.permute.xlu0 %114
  %116 = vrot.lane.b32.xlu0 %v96, 108
  %v117 = vpop.permute.xlu0 %116
  %v118 = vrot.slane %v105, 4
  %v119 = vrot.slane %v107, 4
  %v120 = vrot.slane %v109, 4
  %v121 = vrot.slane %v111, 4
  %v122 = vrot.slane %v113, 4
  %v123 = vrot.slane %v115, 4
  %v124 = vrot.slane %v117, 4
  %v125 = vsel %vm61, %v118, %v119
  %vm126 = vcmask 883712
  %v127 = vsel %vm126, %v105, %v125
  %v128 = vsel %vm61, %v119, %v120
  %v129 = vsel %vm126, %v107, %v128
  %v130 = vsel %vm61, %v120, %v121
  %v131 = vsel %vm126, %v109, %v130
  %v132 = vsel %vm61, %v121, %v122
  %v133 = vsel %vm126, %v111, %v132
  %v134 = vsel %vm61, %v122, %v123
  %v135 = vsel %vm126, %v113, %v134
  %v136 = vsel %vm61, %v123, %v124
  %v137 = vsel %vm126, %v115, %v136
  %v138 = vsel %vm126, %v117, %v124
  %146 = vst [vmem:[#allocation2 + $0x68] sm:$0xff] %v127
  %147 = vst [vmem:[#allocation2 + $0x70] sm:$0xff] %v129
  %148 = vst [vmem:[#allocation2 + $0x78] sm:$0xff] %v131
  %149 = vst [vmem:[#allocation2 + $0x80] sm:$0xff] %v133
  %150 = vst [vmem:[#allocation2 + $0x88] sm:$0xff] %v135
  %151 = vst [vmem:[#allocation2 + $0x90] sm:$0xff] %v137
  %152 = vst [vmem:[#allocation2 + $0x98] sm:$0xf] %v138
  %v153 = vld [vmem:[%s0] sm:$0xff]
  %v154 = vld [vmem:[%s0 + $0x8] sm:$0xff]
  %v155 = vld [vmem:[%s0 + $0x10] sm:$0xff]
  %v156 = vld [vmem:[%s0 + $0x18] sm:$0xff]
  %v157 = vld [vmem:[%s0 + $0x20] sm:$0xff]
  %v158 = vld [vmem:[%s0 + $0x28] sm:$0xff]
  %v159 = vld [vmem:[%s0 + $0x30] sm:$0xff]
  %167 = vrot.lane.b32.xlu0 %v153, 28
  %v168 = vpop.permute.xlu0 %167
  %169 = vrot.lane.b32.xlu0 %v154, 28
  %v170 = vpop.permute.xlu0 %169
  %171 = vrot.lane.b32.xlu0 %v155, 28
  %v172 = vpop.permute.xlu0 %171
  %173 = vrot.lane.b32.xlu0 %v156, 28
  %v174 = vpop.permute.xlu0 %173
  %175 = vrot.lane.b32.xlu0 %v157, 28
  %v176 = vpop.permute.xlu0 %175
  %177 = vrot.lane.b32.xlu0 %v158, 28
  %v178 = vpop.permute.xlu0 %177
  %179 = vrot.lane.b32.xlu0 %v159, 28
  %v180 = vpop.permute.xlu0 %179
  %v181 = vrot.slane %v168, 4
  %v182 = vrot.slane %v170, 4
  %v183 = vrot.slane %v172, 4
  %v184 = vrot.slane %v174, 4
  %v185 = vrot.slane %v176, 4
  %v186 = vrot.slane %v178, 4
  %v187 = vrot.slane %v180, 4
  %v188 = vsel %vm61, %v181, %v182
  %vm189 = vcmask 228352
  %v190 = vsel %vm189, %v168, %v188
  %v191 = vsel %vm61, %v182, %v183
  %v192 = vsel %vm189, %v170, %v191
  %v193 = vsel %vm61, %v183, %v184
  %v194 = vsel %vm189, %v172, %v193
  %v195 = vsel %vm61, %v184, %v185
  %v196 = vsel %vm189, %v174, %v195
  %v197 = vsel %vm61, %v185, %v186
  %v198 = vsel %vm189, %v176, %v197
  %v199 = vsel %vm61, %v186, %v187
  %v200 = vsel %vm189, %v178, %v199
  %v201 = vsel %vm189, %v180, %v187
  %209 = vst [vmem:[#allocation2 + $0x9c] sm:$0xff] %v190
  %210 = vst [vmem:[#allocation2 + $0xa4] sm:$0xff] %v192
  %211 = vst [vmem:[#allocation2 + $0xac] sm:$0xff] %v194
  %212 = vst [vmem:[#allocation2 + $0xb4] sm:$0xff] %v196
  %213 = vst [vmem:[#allocation2 + $0xbc] sm:$0xff] %v198
  %214 = vst [vmem:[#allocation2 + $0xc4] sm:$0xff] %v200
  %215 = vst [vmem:[#allocation2 + $0xcc] sm:$0xf] %v201
  %v216 = vld [vmem:[%s0] sm:$0xff]
  %v217 = vld [vmem:[%s0 + $0x8] sm:$0xff]
  %v218 = vld [vmem:[%s0 + $0x10] sm:$0xff]
  %v219 = vld [vmem:[%s0 + $0x18] sm:$0xff]
  %v220 = vld [vmem:[%s0 + $0x20] sm:$0xff]
  %v221 = vld [vmem:[%s0 + $0x28] sm:$0xff]
  %v222 = vld [vmem:[%s0 + $0x30] sm:$0xff]
  %230 = vrot.lane.b32.xlu0 %v216, 18
  %v231 = vpop.permute.xlu0 %230
  %232 = vrot.lane.b32.xlu0 %v217, 18
  %v233 = vpop.permute.xlu0 %232
  %234 = vrot.lane.b32.xlu0 %v218, 18
  %v235 = vpop.permute.xlu0 %234
  %236 = vrot.lane.b32.xlu0 %v219, 18
  %v237 = vpop.permute.xlu0 %236
  %238 = vrot.lane.b32.xlu0 %v220, 18
  %v239 = vpop.permute.xlu0 %238
  %240 = vrot.lane.b32.xlu0 %v221, 18
  %v241 = vpop.permute.xlu0 %240
  %242 = vrot.lane.b32.xlu0 %v222, 18
  %v243 = vpop.permute.xlu0 %242
  %v244 = vrot.slane %v231, 4
  %v245 = vrot.slane %v233, 4
  %v246 = vrot.slane %v235, 4
  %v247 = vrot.slane %v237, 4
  %v248 = vrot.slane %v239, 4
  %v249 = vrot.slane %v241, 4
  %v250 = vrot.slane %v243, 4
  %v251 = vsel %vm61, %v244, %v245
  %vm252 = vcmask 146432
  %v253 = vsel %vm252, %v231, %v251
  %v254 = vsel %vm61, %v245, %v246
  %v255 = vsel %vm252, %v233, %v254
  %v256 = vsel %vm61, %v246, %v247
  %v257 = vsel %vm252, %v235, %v256
  %v258 = vsel %vm61, %v247, %v248
  %v259 = vsel %vm252, %v237, %v258
  %v260 = vsel %vm61, %v248, %v249
  %v261 = vsel %vm252, %v239, %v260
  %v262 = vsel %vm61, %v249, %v250
  %v263 = vsel %vm252, %v241, %v262
  %v264 = vsel %vm252, %v243, %v250
  %272 = vst [vmem:[#allocation2 + $0xd0] sm:$0xff] %v253
  %273 = vst [vmem:[#allocation2 + $0xd8] sm:$0xff] %v255
  %274 = vst [vmem:[#allocation2 + $0xe0] sm:$0xff] %v257
  %275 = vst [vmem:[#allocation2 + $0xe8] sm:$0xff] %v259
  %276 = vst [vmem:[#allocation2 + $0xf0] sm:$0xff] %v261
  %277 = vst [vmem:[#allocation2 + $0xf8] sm:$0xff] %v263
  %278 = vst [vmem:[#allocation2 + $0x100] sm:$0xf] %v264
  %v279 = vld [vmem:[%s0] sm:$0xff]
  %v280 = vld [vmem:[%s0 + $0x8] sm:$0xff]
  %v281 = vld [vmem:[%s0 + $0x10] sm:$0xff]
  %v282 = vld [vmem:[%s0 + $0x18] sm:$0xff]
  %v283 = vld [vmem:[%s0 + $0x20] sm:$0xff]
  %v284 = vld [vmem:[%s0 + $0x28] sm:$0xff]
  %v285 = vld [vmem:[%s0 + $0x30] sm:$0xff]
  %293 = vrot.lane.b32.xlu0 %v279, 8
  %v294 = vpop.permute.xlu0 %293
  %295 = vrot.lane.b32.xlu0 %v280, 8
  %v296 = vpop.permute.xlu0 %295
  %297 = vrot.lane.b32.xlu0 %v281, 8
  %v298 = vpop.permute.xlu0 %297
  %299 = vrot.lane.b32.xlu0 %v282, 8
  %v300 = vpop.permute.xlu0 %299
  %301 = vrot.lane.b32.xlu0 %v283, 8
  %v302 = vpop.permute.xlu0 %301
  %303 = vrot.lane.b32.xlu0 %v284, 8
  %v304 = vpop.permute.xlu0 %303
  %305 = vrot.lane.b32.xlu0 %v285, 8
  %v306 = vpop.permute.xlu0 %305
  %v307 = vrot.slane %v294, 4
  %v308 = vrot.slane %v296, 4
  %v309 = vrot.slane %v298, 4
  %v310 = vrot.slane %v300, 4
  %v311 = vrot.slane %v302, 4
  %v312 = vrot.slane %v304, 4
  %v313 = vrot.slane %v306, 4
  %v314 = vsel %vm61, %v307, %v308
  %vm315 = vcmask 64512
  %v316 = vsel %vm315, %v294, %v314
  %v317 = vsel %vm61, %v308, %v309
  %v318 = vsel %vm315, %v296, %v317
  %v319 = vsel %vm61, %v309, %v310
  %v320 = vsel %vm315, %v298, %v319
  %v321 = vsel %vm61, %v310, %v311
  %v322 = vsel %vm315, %v300, %v321
  %v323 = vsel %vm61, %v311, %v312
  %v324 = vsel %vm315, %v302, %v323
  %v325 = vsel %vm61, %v312, %v313
  %v326 = vsel %vm315, %v304, %v325
  %v327 = vsel %vm315, %v306, %v313
  %335 = vst [vmem:[#allocation2 + $0x104] sm:$0xff] %v316
  %336 = vst [vmem:[#allocation2 + $0x10c] sm:$0xff] %v318
  %337 = vst [vmem:[#allocation2 + $0x114] sm:$0xff] %v320
  %338 = vst [vmem:[#allocation2 + $0x11c] sm:$0xff] %v322
  %339 = vst [vmem:[#allocation2 + $0x124] sm:$0xff] %v324
  %340 = vst [vmem:[#allocation2 + $0x12c] sm:$0xff] %v326
  %341 = vst [vmem:[#allocation2 + $0x134] sm:$0xf] %v327
  %v342 = vld [vmem:[%s0 + $0x4] sm:$0xff]
  %v343 = vld [vmem:[%s0 + $0xc] sm:$0xff]
  %v344 = vld [vmem:[%s0 + $0x14] sm:$0xff]
  %v345 = vld [vmem:[%s0 + $0x1c] sm:$0xff]
  %v346 = vld [vmem:[%s0 + $0x24] sm:$0xff]
  %v347 = vld [vmem:[%s0 + $0x2c] sm:$0xff]
  %v348 = vld [vmem:[%s0 + $0x34] sm:$0xff]
  %356 = vrot.lane.b32.xlu0 %v342, 56
  %v357 = vpop.permute.xlu0 %356
  %358 = vrot.lane.b32.xlu0 %v343, 56
  %v359 = vpop.permute.xlu0 %358
  %360 = vrot.lane.b32.xlu0 %v344, 56
  %v361 = vpop.permute.xlu0 %360
  %362 = vrot.lane.b32.xlu0 %v345, 56
  %v363 = vpop.permute.xlu0 %362
  %364 = vrot.lane.b32.xlu0 %v346, 56
  %v365 = vpop.permute.xlu0 %364
  %366 = vrot.lane.b32.xlu0 %v347, 56
  %v367 = vpop.permute.xlu0 %366
  %368 = vrot.lane.b32.xlu0 %v348, 56
  %v369 = vpop.permute.xlu0 %368
  %v370 = vrot.slane %v357, 4
  %v371 = vrot.slane %v359, 4
  %v372 = vrot.slane %v361, 4
  %v373 = vrot.slane %v363, 4
  %v374 = vrot.slane %v365, 4
  %v375 = vrot.slane %v367, 4
  %v376 = vrot.slane %v369, 4
  %v377 = vsel %vm61, %v370, %v371
  %vm378 = vcmask 457728
  %v379 = vsel %vm378, %v357, %v377
  %v380 = vsel %vm61, %v371, %v372
  %v381 = vsel %vm378, %v359, %v380
  %v382 = vsel %vm61, %v372, %v373
  %v383 = vsel %vm378, %v361, %v382
  %v384 = vsel %vm61, %v373, %v374
  %v385 = vsel %vm378, %v363, %v384
  %v386 = vsel %vm61, %v374, %v375
  %v387 = vsel %vm378, %v365, %v386
  %v388 = vsel %vm61, %v375, %v376
  %v389 = vsel %vm378, %v367, %v388
  %v390 = vsel %vm378, %v369, %v376
  %398 = vst [vmem:[#allocation2 + $0x138] sm:$0xff] %v379
  %399 = vst [vmem:[#allocation2 + $0x140] sm:$0xff] %v381
  %400 = vst [vmem:[#allocation2 + $0x148] sm:$0xff] %v383
  %401 = vst [vmem:[#allocation2 + $0x150] sm:$0xff] %v385
  %402 = vst [vmem:[#allocation2 + $0x158] sm:$0xff] %v387
  %403 = vst [vmem:[#allocation2 + $0x160] sm:$0xff] %v389
  %404 = vst [vmem:[#allocation2 + $0x168] sm:$0xf] %v390
  %v405 = vld [vmem:[%s0 + $0x4] sm:$0xff]
  %v406 = vld [vmem:[%s0 + $0xc] sm:$0xff]
  %v407 = vld [vmem:[%s0 + $0x14] sm:$0xff]
  %v408 = vld [vmem:[%s0 + $0x1c] sm:$0xff]
  %v409 = vld [vmem:[%s0 + $0x24] sm:$0xff]
  %v410 = vld [vmem:[%s0 + $0x2c] sm:$0xff]
  %v411 = vld [vmem:[%s0 + $0x34] sm:$0xff]
  %419 = vrot.lane.b32.xlu0 %v405, 46
  %v420 = vpop.permute.xlu0 %419
  %421 = vrot.lane.b32.xlu0 %v406, 46
  %v422 = vpop.permute.xlu0 %421
  %423 = vrot.lane.b32.xlu0 %v407, 46
  %v424 = vpop.permute.xlu0 %423
  %425 = vrot.lane.b32.xlu0 %v408, 46
  %v426 = vpop.permute.xlu0 %425
  %427 = vrot.lane.b32.xlu0 %v409, 46
  %v428 = vpop.permute.xlu0 %427
  %429 = vrot.lane.b32.xlu0 %v410, 46
  %v430 = vpop.permute.xlu0 %429
  %431 = vrot.lane.b32.xlu0 %v411, 46
  %v432 = vpop.permute.xlu0 %431
  %v433 = vrot.slane %v420, 4
  %v434 = vrot.slane %v422, 4
  %v435 = vrot.slane %v424, 4
  %v436 = vrot.slane %v426, 4
  %v437 = vrot.slane %v428, 4
  %v438 = vrot.slane %v430, 4
  %v439 = vrot.slane %v432, 4
  %v440 = vsel %vm61, %v433, %v434
  %vm441 = vcmask 375808
  %v442 = vsel %vm441, %v420, %v440
  %v443 = vsel %vm61, %v434, %v435
  %v444 = vsel %vm441, %v422, %v443
  %v445 = vsel %vm61, %v435, %v436
  %v446 = vsel %vm441, %v424, %v445
  %v447 = vsel %vm61, %v436, %v437
  %v448 = vsel %vm441, %v426, %v447
  %v449 = vsel %vm61, %v437, %v438
  %v450 = vsel %vm441, %v428, %v449
  %v451 = vsel %vm61, %v438, %v439
  %v452 = vsel %vm441, %v430, %v451
  %v453 = vsel %vm441, %v432, %v439
  %461 = vst [vmem:[#allocation2 + $0x16c] sm:$0xff] %v442
  %462 = vst [vmem:[#allocation2 + $0x174] sm:$0xff] %v444
  %463 = vst [vmem:[#allocation2 + $0x17c] sm:$0xff] %v446
  %464 = vst [vmem:[#allocation2 + $0x184] sm:$0xff] %v448
  %465 = vst [vmem:[#allocation2 + $0x18c] sm:$0xff] %v450
  %466 = vst [vmem:[#allocation2 + $0x194] sm:$0xff] %v452
  %467 = vst [vmem:[#allocation2 + $0x19c] sm:$0xf] %v453
  %v468 = vld [vmem:[%s0 + $0x4] sm:$0xff]
  %v469 = vld [vmem:[%s0 + $0xc] sm:$0xff]
  %v470 = vld [vmem:[%s0 + $0x14] sm:$0xff]
  %v471 = vld [vmem:[%s0 + $0x1c] sm:$0xff]
  %v472 = vld [vmem:[%s0 + $0x24] sm:$0xff]
  %v473 = vld [vmem:[%s0 + $0x2c] sm:$0xff]
  %v474 = vld [vmem:[%s0 + $0x34] sm:$0xff]
  %482 = vrot.lane.b32.xlu0 %v468, 36
  %v483 = vpop.permute.xlu0 %482
  %484 = vrot.lane.b32.xlu0 %v469, 36
  %v485 = vpop.permute.xlu0 %484
  %486 = vrot.lane.b32.xlu0 %v470, 36
  %v487 = vpop.permute.xlu0 %486
  %488 = vrot.lane.b32.xlu0 %v471, 36
  %v489 = vpop.permute.xlu0 %488
  %490 = vrot.lane.b32.xlu0 %v472, 36
  %v491 = vpop.permute.xlu0 %490
  %492 = vrot.lane.b32.xlu0 %v473, 36
  %v493 = vpop.permute.xlu0 %492
  %494 = vrot.lane.b32.xlu0 %v474, 36
  %v495 = vpop.permute.xlu0 %494
  %v496 = vrot.slane %v483, 4
  %v497 = vrot.slane %v485, 4
  %v498 = vrot.slane %v487, 4
  %v499 = vrot.slane %v489, 4
  %v500 = vrot.slane %v491, 4
  %v501 = vrot.slane %v493, 4
  %v502 = vrot.slane %v495, 4
  %v503 = vsel %vm61, %v496, %v497
  %vm504 = vcmask 293888
  %v505 = vsel %vm504, %v483, %v503
  %v506 = vsel %vm61, %v497, %v498
  %v507 = vsel %vm504, %v485, %v506
  %v508 = vsel %vm61, %v498, %v499
  %v509 = vsel %vm504, %v487, %v508
  %v510 = vsel %vm61, %v499, %v500
  %v511 = vsel %vm504, %v489, %v510
  %v512 = vsel %vm61, %v500, %v501
  %v513 = vsel %vm504, %v491, %v512
  %v514 = vsel %vm61, %v501, %v502
  %v515 = vsel %vm504, %v493, %v514
  %v516 = vsel %vm504, %v495, %v502
  %524 = vst [vmem:[#allocation2 + $0x1a0] sm:$0xff] %v505
  %525 = vst [vmem:[#allocation2 + $0x1a8] sm:$0xff] %v507
  %526 = vst [vmem:[#allocation2 + $0x1b0] sm:$0xff] %v509
  %527 = vst [vmem:[#allocation2 + $0x1b8] sm:$0xff] %v511
  %528 = vst [vmem:[#allocation2 + $0x1c0] sm:$0xff] %v513
  %529 = vst [vmem:[#allocation2 + $0x1c8] sm:$0xff] %v515
  %530 = vst [vmem:[#allocation2 + $0x1d0] sm:$0xf] %v516
  %v531 = vld [vmem:[#allocation2] sm:$0xff]
  %v532 = vld [vmem:[#allocation2 + $0x8] sm:$0xff]
  %v533 = vld [vmem:[#allocation2 + $0x10] sm:$0xff]
  %v534 = vld [vmem:[#allocation2 + $0x18] sm:$0xff]
  %v535 = vld [vmem:[#allocation2 + $0x20] sm:$0xff]
  %v536 = vld [vmem:[#allocation2 + $0x28] sm:$0xff]
  %v537 = vld [vmem:[#allocation2 + $0x30] sm:$0xf]
  %v538 = vld [vmem:[#allocation2 + $0x34] sm:$0xff]
  %v539 = vld [vmem:[#allocation2 + $0x3c] sm:$0xff]
  %v540 = vld [vmem:[#allocation2 + $0x44] sm:$0xff]
  %v541 = vld [vmem:[#allocation2 + $0x4c] sm:$0xff]
  %v542 = vld [vmem:[#allocation2 + $0x54] sm:$0xff]
  %v543 = vld [vmem:[#allocation2 + $0x5c] sm:$0xff]
  %v544 = vld [vmem:[#allocation2 + $0x64] sm:$0xf]
  %v545 = vld [vmem:[#allocation2 + $0x68] sm:$0xff]
  %v546 = vld [vmem:[#allocation2 + $0x70] sm:$0xff]
  %v547 = vld [vmem:[#allocation2 + $0x78] sm:$0xff]
  %v548 = vld [vmem:[#allocation2 + $0x80] sm:$0xff]
  %v549 = vld [vmem:[#allocation2 + $0x88] sm:$0xff]
  %v550 = vld [vmem:[#allocation2 + $0x90] sm:$0xff]
  %v551 = vld [vmem:[#allocation2 + $0x98] sm:$0xf]
  %v552 = vld [vmem:[#allocation2 + $0x9c] sm:$0xff]
  %v553 = vld [vmem:[#allocation2 + $0xa4] sm:$0xff]
  %v554 = vld [vmem:[#allocation2 + $0xac] sm:$0xff]
  %v555 = vld [vmem:[#allocation2 + $0xb4] sm:$0xff]
  %v556 = vld [vmem:[#allocation2 + $0xbc] sm:$0xff]
  %v557 = vld [vmem:[#allocation2 + $0xc4] sm:$0xff]
  %v558 = vld [vmem:[#allocation2 + $0xcc] sm:$0xf]
  %v559 = vld [vmem:[#allocation2 + $0xd0] sm:$0xff]
  %v560 = vld [vmem:[#allocation2 + $0xd8] sm:$0xff]
  %v561 = vld [vmem:[#allocation2 + $0xe0] sm:$0xff]
  %v562 = vld [vmem:[#allocation2 + $0xe8] sm:$0xff]
  %v563 = vld [vmem:[#allocation2 + $0xf0] sm:$0xff]
  %v564 = vld [vmem:[#allocation2 + $0xf8] sm:$0xff]
  %v565 = vld [vmem:[#allocation2 + $0x100] sm:$0xf]
  %v566 = vld [vmem:[#allocation2 + $0x104] sm:$0xff]
  %v567 = vld [vmem:[#allocation2 + $0x10c] sm:$0xff]
  %v568 = vld [vmem:[#allocation2 + $0x114] sm:$0xff]
  %v569 = vld [vmem:[#allocation2 + $0x11c] sm:$0xff]
  %v570 = vld [vmem:[#allocation2 + $0x124] sm:$0xff]
  %v571 = vld [vmem:[#allocation2 + $0x12c] sm:$0xff]
  %v572 = vld [vmem:[#allocation2 + $0x134] sm:$0xf]
  %v573 = vld [vmem:[#allocation2 + $0x138] sm:$0xff]
  %v574 = vld [vmem:[#allocation2 + $0x140] sm:$0xff]
  %v575 = vld [vmem:[#allocation2 + $0x148] sm:$0xff]
  %v576 = vld [vmem:[#allocation2 + $0x150] sm:$0xff]
  %v577 = vld [vmem:[#allocation2 + $0x158] sm:$0xff]
  %v578 = vld [vmem:[#allocation2 + $0x160] sm:$0xff]
  %v579 = vld [vmem:[#allocation2 + $0x168] sm:$0xf]
  %v580 = vld [vmem:[#allocation2 + $0x16c] sm:$0xff]
  %v581 = vld [vmem:[#allocation2 + $0x174] sm:$0xff]
  %v582 = vld [vmem:[#allocation2 + $0x17c] sm:$0xff]
  %v583 = vld [vmem:[#allocation2 + $0x184] sm:$0xff]
  %v584 = vld [vmem:[#allocation2 + $0x18c] sm:$0xff]
  %v585 = vld [vmem:[#allocation2 + $0x194] sm:$0xff]
  %v586 = vld [vmem:[#allocation2 + $0x19c] sm:$0xf]
  %v587 = vld [vmem:[#allocation2 + $0x1a0] sm:$0xff]
  %v588 = vld [vmem:[#allocation2 + $0x1a8] sm:$0xff]
  %v589 = vld [vmem:[#allocation2 + $0x1b0] sm:$0xff]
  %v590 = vld [vmem:[#allocation2 + $0x1b8] sm:$0xff]
  %v591 = vld [vmem:[#allocation2 + $0x1c0] sm:$0xff]
  %v592 = vld [vmem:[#allocation2 + $0x1c8] sm:$0xff]
  %v593 = vld [vmem:[#allocation2 + $0x1d0] sm:$0xf]
  %v594 = vld [vmem:[%s1] sm:$0xf]
  %v658 = vunpack.c.l.b16 %v531
  %v659 = vunpack.c.h.b16 %v531
  %v660 = vunpack.c.l.b16 %v532
  %v661 = vunpack.c.h.b16 %v532
  %v662 = vunpack.c.l.b16 %v533
  %v663 = vunpack.c.h.b16 %v533
  %v664 = vunpack.c.l.b16 %v534
  %v665 = vunpack.c.h.b16 %v534
  %v666 = vunpack.c.l.b16 %v535
  %v667 = vunpack.c.h.b16 %v535
  %v668 = vunpack.c.l.b16 %v536
  %v669 = vunpack.c.h.b16 %v536
  %v670 = vunpack.c.l.b16 %v537
  %v671 = vunpack.c.l.b16 %v538
  %v672 = vunpack.c.h.b16 %v538
  %v673 = vunpack.c.l.b16 %v539
  %v674 = vunpack.c.h.b16 %v539
  %v675 = vunpack.c.l.b16 %v540
  %v676 = vunpack.c.h.b16 %v540
  %v677 = vunpack.c.l.b16 %v541
  %v678 = vunpack.c.h.b16 %v541
  %v679 = vunpack.c.l.b16 %v542
  %v680 = vunpack.c.h.b16 %v542
  %v681 = vunpack.c.l.b16 %v543
  %v682 = vunpack.c.h.b16 %v543
  %v683 = vunpack.c.l.b16 %v544
  %v684 = vunpack.c.l.b16 %v545
  %v685 = vunpack.c.h.b16 %v545
  %v686 = vunpack.c.l.b16 %v546
  %v687 = vunpack.c.h.b16 %v546
  %v688 = vunpack.c.l.b16 %v547
  %v689 = vunpack.c.h.b16 %v547
  %v690 = vunpack.c.l.b16 %v548
  %v691 = vunpack.c.h.b16 %v548
  %v692 = vunpack.c.l.b16 %v549
  %v693 = vunpack.c.h.b16 %v549
  %v694 = vunpack.c.l.b16 %v550
  %v695 = vunpack.c.h.b16 %v550
  %v696 = vunpack.c.l.b16 %v551
  %v697 = vunpack.c.l.b16 %v552
  %v698 = vunpack.c.h.b16 %v552
  %v699 = vunpack.c.l.b16 %v553
  %v700 = vunpack.c.h.b16 %v553
  %v701 = vunpack.c.l.b16 %v554
  %v702 = vunpack.c.h.b16 %v554
  %v703 = vunpack.c.l.b16 %v555
  %v704 = vunpack.c.h.b16 %v555
  %v705 = vunpack.c.l.b16 %v556
  %v706 = vunpack.c.h.b16 %v556
  %v707 = vunpack.c.l.b16 %v557
  %v708 = vunpack.c.h.b16 %v557
  %v709 = vunpack.c.l.b16 %v558
  %v710 = vunpack.c.l.b16 %v559
  %v711 = vunpack.c.h.b16 %v559
  %v712 = vunpack.c.l.b16 %v560
  %v713 = vunpack.c.h.b16 %v560
  %v714 = vunpack.c.l.b16 %v561
  %v715 = vunpack.c.h.b16 %v561
  %v716 = vunpack.c.l.b16 %v562
  %v717 = vunpack.c.h.b16 %v562
  %v718 = vunpack.c.l.b16 %v563
  %v719 = vunpack.c.h.b16 %v563
  %v720 = vunpack.c.l.b16 %v564
  %v721 = vunpack.c.h.b16 %v564
  %v722 = vunpack.c.l.b16 %v565
  %v723 = vunpack.c.l.b16 %v566
  %v724 = vunpack.c.h.b16 %v566
  %v725 = vunpack.c.l.b16 %v567
  %v726 = vunpack.c.h.b16 %v567
  %v727 = vunpack.c.l.b16 %v568
  %v728 = vunpack.c.h.b16 %v568
  %v729 = vunpack.c.l.b16 %v569
  %v730 = vunpack.c.h.b16 %v569
  %v731 = vunpack.c.l.b16 %v570
  %v732 = vunpack.c.h.b16 %v570
  %v733 = vunpack.c.l.b16 %v571
  %v734 = vunpack.c.h.b16 %v571
  %v735 = vunpack.c.l.b16 %v572
  %v736 = vunpack.c.l.b16 %v573
  %v737 = vunpack.c.h.b16 %v573
  %v738 = vunpack.c.l.b16 %v574
  %v739 = vunpack.c.h.b16 %v574
  %v740 = vunpack.c.l.b16 %v575
  %v741 = vunpack.c.h.b16 %v575
  %v742 = vunpack.c.l.b16 %v576
  %v743 = vunpack.c.h.b16 %v576
  %v744 = vunpack.c.l.b16 %v577
  %v745 = vunpack.c.h.b16 %v577
  %v746 = vunpack.c.l.b16 %v578
  %v747 = vunpack.c.h.b16 %v578
  %v748 = vunpack.c.l.b16 %v579
  %v749 = vunpack.c.l.b16 %v580
  %v750 = vunpack.c.h.b16 %v580
  %v751 = vunpack.c.l.b16 %v581
  %v752 = vunpack.c.h.b16 %v581
  %v753 = vunpack.c.l.b16 %v582
  %v754 = vunpack.c.h.b16 %v582
  %v755 = vunpack.c.l.b16 %v583
  %v756 = vunpack.c.h.b16 %v583
  %v757 = vunpack.c.l.b16 %v584
  %v758 = vunpack.c.h.b16 %v584
  %v759 = vunpack.c.l.b16 %v585
  %v760 = vunpack.c.h.b16 %v585
  %v761 = vunpack.c.l.b16 %v586
  %v762 = vunpack.c.l.b16 %v587
  %v763 = vunpack.c.h.b16 %v587
  %v764 = vunpack.c.l.b16 %v588
  %v765 = vunpack.c.h.b16 %v588
  %v766 = vunpack.c.l.b16 %v589
  %v767 = vunpack.c.h.b16 %v589
  %v768 = vunpack.c.l.b16 %v590
  %v769 = vunpack.c.h.b16 %v590
  %v770 = vunpack.c.l.b16 %v591
  %v771 = vunpack.c.h.b16 %v591
  %v772 = vunpack.c.l.b16 %v592
  %v773 = vunpack.c.h.b16 %v592
  %v774 = vunpack.c.l.b16 %v593
  %v775 = vpack.c.b16 %v671, %v658
  %v776 = vpack.c.b16 %v672, %v659
  %v777 = vpack.c.b16 %v673, %v660
  %v778 = vpack.c.b16 %v674, %v661
  %v779 = vpack.c.b16 %v675, %v662
  %v780 = vpack.c.b16 %v676, %v663
  %v781 = vpack.c.b16 %v677, %v664
  %v782 = vpack.c.b16 %v678, %v665
  %v783 = vpack.c.b16 %v679, %v666
  %v784 = vpack.c.b16 %v680, %v667
  %v785 = vpack.c.b16 %v681, %v668
  %v786 = vpack.c.b16 %v682, %v669
  %v787 = vpack.c.b16 %v683, %v670
  %v788 = vpack.c.b16 %v697, %v684
  %v789 = vpack.c.b16 %v698, %v685
  %v790 = vpack.c.b16 %v699, %v686
  %v791 = vpack.c.b16 %v700, %v687
  %v792 = vpack.c.b16 %v701, %v688
  %v793 = vpack.c.b16 %v702, %v689
  %v794 = vpack.c.b16 %v703, %v690
  %v795 = vpack.c.b16 %v704, %v691
  %v796 = vpack.c.b16 %v705, %v692
  %v797 = vpack.c.b16 %v706, %v693
  %v798 = vpack.c.b16 %v707, %v694
  %v799 = vpack.c.b16 %v708, %v695
  %v800 = vpack.c.b16 %v709, %v696
  %v801 = vpack.c.b16 %v723, %v710
  %v802 = vpack.c.b16 %v724, %v711
  %v803 = vpack.c.b16 %v725, %v712
  %v804 = vpack.c.b16 %v726, %v713
  %v805 = vpack.c.b16 %v727, %v714
  %v806 = vpack.c.b16 %v728, %v715
  %v807 = vpack.c.b16 %v729, %v716
  %v808 = vpack.c.b16 %v730, %v717
  %v809 = vpack.c.b16 %v731, %v718
  %v810 = vpack.c.b16 %v732, %v719
  %v811 = vpack.c.b16 %v733, %v720
  %v812 = vpack.c.b16 %v734, %v721
  %v813 = vpack.c.b16 %v735, %v722
  %v814 = vpack.c.b16 %v749, %v736
  %v815 = vpack.c.b16 %v750, %v737
  %v816 = vpack.c.b16 %v751, %v738
  %v817 = vpack.c.b16 %v752, %v739
  %v818 = vpack.c.b16 %v753, %v740
  %v819 = vpack.c.b16 %v754, %v741
  %v820 = vpack.c.b16 %v755, %v742
  %v821 = vpack.c.b16 %v756, %v743
  %v822 = vpack.c.b16 %v757, %v744
  %v823 = vpack.c.b16 %v758, %v745
  %v824 = vpack.c.b16 %v759, %v746
  %v825 = vpack.c.b16 %v760, %v747
  %v826 = vpack.c.b16 %v761, %v748
  %v827 = vpack.c.b16 %v762, %v762
  %v828 = vpack.c.b16 %v763, %v763
  %v829 = vpack.c.b16 %v764, %v764
  %v830 = vpack.c.b16 %v765, %v765
  %v831 = vpack.c.b16 %v766, %v766
  %v832 = vpack.c.b16 %v767, %v767
  %v833 = vpack.c.b16 %v768, %v768
  %v834 = vpack.c.b16 %v769, %v769
  %v835 = vpack.c.b16 %v770, %v770
  %v836 = vpack.c.b16 %v771, %v771
  %v837 = vpack.c.b16 %v772, %v772
  %v838 = vpack.c.b16 %v773, %v773
  %v839 = vpack.c.b16 %v774, %v774
  %vm892 = vcmask 588800
  %v894 = vsel %vm892, %v594, 0
  %vm896 = vcmask 1043456
  %v898 = vsel %vm896, %v827, 0
  %v901 = vsel %vm896, %v828, 0
  %v904 = vsel %vm896, %v829, 0
  %v907 = vsel %vm896, %v830, 0
  %v910 = vsel %vm896, %v831, 0
  %v913 = vsel %vm896, %v832, 0
  %v916 = vsel %vm896, %v833, 0
  %v919 = vsel %vm896, %v834, 0
  %v922 = vsel %vm896, %v835, 0
  %v925 = vsel %vm896, %v836, 0
  %v928 = vsel %vm896, %v837, 0
  %v931 = vsel %vm896, %v838, 0
  %v934 = vsel %vm896, %v839, 0
  %936 = vmatpush.bf16.msra.mxu0 0
  %937 = vmatpush.bf16.msra.mxu0 0
  %938 = vmatpush.bf16.msra.mxu0 0
  %939 = vmatpush.bf16.msra.mxu0 %v898
  %940 = vmatpush.bf16.msra.mxu0 %v814
  %941 = vmatpush.bf16.msra.mxu0 %v801
  %942 = vmatpush.bf16.msra.mxu0 %v788
  %943 = vmatpush.bf16.msra.mxu0 %v775
  %944 = vmatmul.bf16.gmra.mxu0 %v894
  %v945 = vpop.f32.mrf.mxu0
  %v946 = vadd.f32 0.0, %v945
  %v947 = vpop.f32.mrf.mxu0
  %948 = vdwg.mxu0
  %949 = vmatpush.bf16.msra.mxu0 0
  %950 = vmatpush.bf16.msra.mxu0 0
  %951 = vmatpush.bf16.msra.mxu0 0
  %952 = vmatpush.bf16.msra.mxu0 %v901
  %953 = vmatpush.bf16.msra.mxu0 %v815
  %954 = vmatpush.bf16.msra.mxu0 %v802
  %955 = vmatpush.bf16.msra.mxu0 %v789
  %956 = vmatpush.bf16.msra.mxu0 %v776
  %957 = vmatmul.bf16.gmra.mxu0 %v894
  %v958 = vpop.f32.mrf.mxu0
  %v959 = vadd.f32 0.0, %v958
  %v960 = vpop.f32.mrf.mxu0
  %961 = vdwg.mxu0
  %962 = vmatpush.bf16.msra.mxu0 0
  %963 = vmatpush.bf16.msra.mxu0 0
  %964 = vmatpush.bf16.msra.mxu0 0
  %965 = vmatpush.bf16.msra.mxu0 %v904
  %966 = vmatpush.bf16.msra.mxu0 %v816
  %967 = vmatpush.bf16.msra.mxu0 %v803
  %968 = vmatpush.bf16.msra.mxu0 %v790
  %969 = vmatpush.bf16.msra.mxu0 %v777
  %970 = vmatmul.bf16.gmra.mxu0 %v894
  %v971 = vpop.f32.mrf.mxu0
  %v972 = vadd.f32 0.0, %v971
  %v973 = vpop.f32.mrf.mxu0
  %974 = vdwg.mxu0
  %975 = vmatpush.bf16.msra.mxu0 0
  %976 = vmatpush.bf16.msra.mxu0 0
  %977 = vmatpush.bf16.msra.mxu0 0
  %978 = vmatpush.bf16.msra.mxu0 %v907
  %979 = vmatpush.bf16.msra.mxu0 %v817
  %980 = vmatpush.bf16.msra.mxu0 %v804
  %981 = vmatpush.bf16.msra.mxu0 %v791
  %982 = vmatpush.bf16.msra.mxu0 %v778
  %983 = vmatmul.bf16.gmra.mxu0 %v894
  %v984 = vpop.f32.mrf.mxu0
  %v985 = vadd.f32 0.0, %v984
  %v986 = vpop.f32.mrf.mxu0
  %987 = vdwg.mxu0
  %988 = vmatpush.bf16.msra.mxu0 0
  %989 = vmatpush.bf16.msra.mxu0 0
  %990 = vmatpush.bf16.msra.mxu0 0
  %991 = vmatpush.bf16.msra.mxu0 %v910
  %992 = vmatpush.bf16.msra.mxu0 %v818
  %993 = vmatpush.bf16.msra.mxu0 %v805
  %994 = vmatpush.bf16.msra.mxu0 %v792
  %995 = vmatpush.bf16.msra.mxu0 %v779
  %996 = vmatmul.bf16.gmra.mxu0 %v894
  %v997 = vpop.f32.mrf.mxu0
  %v998 = vadd.f32 0.0, %v997
  %v999 = vpop.f32.mrf.mxu0
  %1000 = vdwg.mxu0
  %1001 = vmatpush.bf16.msra.mxu0 0
  %1002 = vmatpush.bf16.msra.mxu0 0
  %1003 = vmatpush.bf16.msra.mxu0 0
  %1004 = vmatpush.bf16.msra.mxu0 %v913
  %1005 = vmatpush.bf16.msra.mxu0 %v819
  %1006 = vmatpush.bf16.msra.mxu0 %v806
  %1007 = vmatpush.bf16.msra.mxu0 %v793
  %1008 = vmatpush.bf16.msra.mxu0 %v780
  %1009 = vmatmul.bf16.gmra.mxu0 %v894
  %v1010 = vpop.f32.mrf.mxu0
  %v1011 = vadd.f32 0.0, %v1010
  %v1012 = vpop.f32.mrf.mxu0
  %1013 = vdwg.mxu0
  %1014 = vmatpush.bf16.msra.mxu0 0
  %1015 = vmatpush.bf16.msra.mxu0 0
  %1016 = vmatpush.bf16.msra.mxu0 0
  %1017 = vmatpush.bf16.msra.mxu0 %v916
  %1018 = vmatpush.bf16.msra.mxu0 %v820
  %1019 = vmatpush.bf16.msra.mxu0 %v807
  %1020 = vmatpush.bf16.msra.mxu0 %v794
  %1021 = vmatpush.bf16.msra.mxu0 %v781
  %1022 = vmatmul.bf16.gmra.mxu0 %v894
  %v1023 = vpop.f32.mrf.mxu0
  %v1024 = vadd.f32 0.0, %v1023
  %v1025 = vpop.f32.mrf.mxu0
  %1026 = vdwg.mxu0
  %1027 = vmatpush.bf16.msra.mxu0 0
  %1028 = vmatpush.bf16.msra.mxu0 0
  %1029 = vmatpush.bf16.msra.mxu0 0
  %1030 = vmatpush.bf16.msra.mxu0 %v919
  %1031 = vmatpush.bf16.msra.mxu0 %v821
  %1032 = vmatpush.bf16.msra.mxu0 %v808
  %1033 = vmatpush.bf16.msra.mxu0 %v795
  %1034 = vmatpush.bf16.msra.mxu0 %v782
  %1035 = vmatmul.bf16.gmra.mxu0 %v894
  %v1036 = vpop.f32.mrf.mxu0
  %v1037 = vadd.f32 0.0, %v1036
  %v1038 = vpop.f32.mrf.mxu0
  %1039 = vdwg.mxu0
  %1040 = vmatpush.bf16.msra.mxu0 0
  %1041 = vmatpush.bf16.msra.mxu0 0
  %1042 = vmatpush.bf16.msra.mxu0 0
  %1043 = vmatpush.bf16.msra.mxu0 %v922
  %1044 = vmatpush.bf16.msra.mxu0 %v822
  %1045 = vmatpush.bf16.msra.mxu0 %v809
  %1046 = vmatpush.bf16.msra.mxu0 %v796
  %1047 = vmatpush.bf16.msra.mxu0 %v783
  %1048 = vmatmul.bf16.gmra.mxu0 %v894
  %v1049 = vpop.f32.mrf.mxu0
  %v1050 = vadd.f32 0.0, %v1049
  %v1051 = vpop.f32.mrf.mxu0
  %1052 = vdwg.mxu0
  %1053 = vmatpush.bf16.msra.mxu0 0
  %1054 = vmatpush.bf16.msra.mxu0 0
  %1055 = vmatpush.bf16.msra.mxu0 0
  %1056 = vmatpush.bf16.msra.mxu0 %v925
  %1057 = vmatpush.bf16.msra.mxu0 %v823
  %1058 = vmatpush.bf16.msra.mxu0 %v810
  %1059 = vmatpush.bf16.msra.mxu0 %v797
  %1060 = vmatpush.bf16.msra.mxu0 %v784
  %1061 = vmatmul.bf16.gmra.mxu0 %v894
  %v1062 = vpop.f32.mrf.mxu0
  %v1063 = vadd.f32 0.0, %v1062
  %v1064 = vpop.f32.mrf.mxu0
  %1065 = vdwg.mxu0
  %1066 = vmatpush.bf16.msra.mxu0 0
  %1067 = vmatpush.bf16.msra.mxu0 0
  %1068 = vmatpush.bf16.msra.mxu0 0
  %1069 = vmatpush.bf16.msra.mxu0 %v928
  %1070 = vmatpush.bf16.msra.mxu0 %v824
  %1071 = vmatpush.bf16.msra.mxu0 %v811
  %1072 = vmatpush.bf16.msra.mxu0 %v798
  %1073 = vmatpush.bf16.msra.mxu0 %v785
  %1074 = vmatmul.bf16.gmra.mxu0 %v894
  %v1075 = vpop.f32.mrf.mxu0
  %v1076 = vadd.f32 0.0, %v1075
  %v1077 = vpop.f32.mrf.mxu0
  %1078 = vdwg.mxu0
  %1079 = vmatpush.bf16.msra.mxu0 0
  %1080 = vmatpush.bf16.msra.mxu0 0
  %1081 = vmatpush.bf16.msra.mxu0 0
  %1082 = vmatpush.bf16.msra.mxu0 %v931
  %1083 = vmatpush.bf16.msra.mxu0 %v825
  %1084 = vmatpush.bf16.msra.mxu0 %v812
  %1085 = vmatpush.bf16.msra.mxu0 %v799
  %1086 = vmatpush.bf16.msra.mxu0 %v786
  %1087 = vmatmul.bf16.gmra.mxu0 %v894
  %v1088 = vpop.f32.mrf.mxu0
  %v1089 = vadd.f32 0.0, %v1088
  %v1090 = vpop.f32.mrf.mxu0
  %1091 = vdwg.mxu0
  %1092 = vmatpush.bf16.msra.mxu0 0
  %1093 = vmatpush.bf16.msra.mxu0 0
  %1094 = vmatpush.bf16.msra.mxu0 0
  %1095 = vmatpush.bf16.msra.mxu0 %v934
  %1096 = vmatpush.bf16.msra.mxu0 %v826
  %1097 = vmatpush.bf16.msra.mxu0 %v813
  %1098 = vmatpush.bf16.msra.mxu0 %v800
  %1099 = vmatpush.bf16.msra.mxu0 %v787
  %1100 = vmatmul.bf16.gmra.mxu0 %v894
  %v1101 = vpop.f32.mrf.mxu0
  %v1102 = vadd.f32 0.0, %v1101
  %v1103 = vpop.f32.mrf.mxu0
  %1104 = vdwg.mxu0
  %1105 = vst [vmem:[%s2] sm:$0xff] %v946
  %1106 = vst [vmem:[%s2 + $0x8] sm:$0xff] %v959
  %1107 = vst [vmem:[%s2 + $0x10] sm:$0xff] %v972
  %1108 = vst [vmem:[%s2 + $0x18] sm:$0xff] %v985
  %1109 = vst [vmem:[%s2 + $0x20] sm:$0xff] %v998
  %1110 = vst [vmem:[%s2 + $0x28] sm:$0xff] %v1011
  %1111 = vst [vmem:[%s2 + $0x30] sm:$0xff] %v1024
  %1112 = vst [vmem:[%s2 + $0x38] sm:$0xff] %v1037
  %1113 = vst [vmem:[%s2 + $0x40] sm:$0xff] %v1050
  %1114 = vst [vmem:[%s2 + $0x48] sm:$0xff] %v1063
  %1115 = vst [vmem:[%s2 + $0x50] sm:$0xff] %v1076
  %1116 = vst [vmem:[%s2 + $0x58] sm:$0xff] %v1089
  %1117 = vst [vmem:[%s2 + $0x60] sm:$0xff] %v1102
  %s1118 = scalar_lea.vmem %s1, 4
  %v1119 = vld [vmem:[%s1118] sm:$0xf]
  %v1121 = vsel %vm892, %v1119, 0
  %1123 = vmatpush.bf16.msra.mxu0 0
  %1124 = vmatpush.bf16.msra.mxu0 0
  %1125 = vmatpush.bf16.msra.mxu0 0
  %1126 = vmatpush.bf16.msra.mxu0 %v898
  %1127 = vmatpush.bf16.msra.mxu0 %v814
  %1128 = vmatpush.bf16.msra.mxu0 %v801
  %1129 = vmatpush.bf16.msra.mxu0 %v788
  %1130 = vmatpush.bf16.msra.mxu0 %v775
  %1131 = vmatmul.bf16.gmra.mxu0 %v1121
  %v1132 = vpop.f32.mrf.mxu0
  %v1133 = vadd.f32 0.0, %v1132
  %v1134 = vpop.f32.mrf.mxu0
  %1135 = vdwg.mxu0
  %1136 = vmatpush.bf16.msra.mxu0 0
  %1137 = vmatpush.bf16.msra.mxu0 0
  %1138 = vmatpush.bf16.msra.mxu0 0
  %1139 = vmatpush.bf16.msra.mxu0 %v901
  %1140 = vmatpush.bf16.msra.mxu0 %v815
  %1141 = vmatpush.bf16.msra.mxu0 %v802
  %1142 = vmatpush.bf16.msra.mxu0 %v789
  %1143 = vmatpush.bf16.msra.mxu0 %v776
  %1144 = vmatmul.bf16.gmra.mxu0 %v1121
  %v1145 = vpop.f32.mrf.mxu0
  %v1146 = vadd.f32 0.0, %v1145
  %v1147 = vpop.f32.mrf.mxu0
  %1148 = vdwg.mxu0
  %1149 = vmatpush.bf16.msra.mxu0 0
  %1150 = vmatpush.bf16.msra.mxu0 0
  %1151 = vmatpush.bf16.msra.mxu0 0
  %1152 = vmatpush.bf16.msra.mxu0 %v904
  %1153 = vmatpush.bf16.msra.mxu0 %v816
  %1154 = vmatpush.bf16.msra.mxu0 %v803
  %1155 = vmatpush.bf16.msra.mxu0 %v790
  %1156 = vmatpush.bf16.msra.mxu0 %v777
  %1157 = vmatmul.bf16.gmra.mxu0 %v1121
  %v1158 = vpop.f32.mrf.mxu0
  %v1159 = vadd.f32 0.0, %v1158
  %v1160 = vpop.f32.mrf.mxu0
  %1161 = vdwg.mxu0
  %1162 = vmatpush.bf16.msra.mxu0 0
  %1163 = vmatpush.bf16.msra.mxu0 0
  %1164 = vmatpush.bf16.msra.mxu0 0
  %1165 = vmatpush.bf16.msra.mxu0 %v907
  %1166 = vmatpush.bf16.msra.mxu0 %v817
  %1167 = vmatpush.bf16.msra.mxu0 %v804
  %1168 = vmatpush.bf16.msra.mxu0 %v791
  %1169 = vmatpush.bf16.msra.mxu0 %v778
  %1170 = vmatmul.bf16.gmra.mxu0 %v1121
  %v1171 = vpop.f32.mrf.mxu0
  %v1172 = vadd.f32 0.0, %v1171
  %v1173 = vpop.f32.mrf.mxu0
  %1174 = vdwg.mxu0
  %1175 = vmatpush.bf16.msra.mxu0 0
  %1176 = vmatpush.bf16.msra.mxu0 0
  %1177 = vmatpush.bf16.msra.mxu0 0
  %1178 = vmatpush.bf16.msra.mxu0 %v910
  %1179 = vmatpush.bf16.msra.mxu0 %v818
  %1180 = vmatpush.bf16.msra.mxu0 %v805
  %1181 = vmatpush.bf16.msra.mxu0 %v792
  %1182 = vmatpush.bf16.msra.mxu0 %v779
  %1183 = vmatmul.bf16.gmra.mxu0 %v1121
  %v1184 = vpop.f32.mrf.mxu0
  %v1185 = vadd.f32 0.0, %v1184
  %v1186 = vpop.f32.mrf.mxu0
  %1187 = vdwg.mxu0
  %1188 = vmatpush.bf16.msra.mxu0 0
  %1189 = vmatpush.bf16.msra.mxu0 0
  %1190 = vmatpush.bf16.msra.mxu0 0
  %1191 = vmatpush.bf16.msra.mxu0 %v913
  %1192 = vmatpush.bf16.msra.mxu0 %v819
  %1193 = vmatpush.bf16.msra.mxu0 %v806
  %1194 = vmatpush.bf16.msra.mxu0 %v793
  %1195 = vmatpush.bf16.msra.mxu0 %v780
  %1196 = vmatmul.bf16.gmra.mxu0 %v1121
  %v1197 = vpop.f32.mrf.mxu0
  %v1198 = vadd.f32 0.0, %v1197
  %v1199 = vpop.f32.mrf.mxu0
  %1200 = vdwg.mxu0
  %1201 = vmatpush.bf16.msra.mxu0 0
  %1202 = vmatpush.bf16.msra.mxu0 0
  %1203 = vmatpush.bf16.msra.mxu0 0
  %1204 = vmatpush.bf16.msra.mxu0 %v916
  %1205 = vmatpush.bf16.msra.mxu0 %v820
  %1206 = vmatpush.bf16.msra.mxu0 %v807
  %1207 = vmatpush.bf16.msra.mxu0 %v794
  %1208 = vmatpush.bf16.msra.mxu0 %v781
  %1209 = vmatmul.bf16.gmra.mxu0 %v1121
  %v1210 = vpop.f32.mrf.mxu0
  %v1211 = vadd.f32 0.0, %v1210
  %v1212 = vpop.f32.mrf.mxu0
  %1213 = vdwg.mxu0
  %1214 = vmatpush.bf16.msra.mxu0 0
  %1215 = vmatpush.bf16.msra.mxu0 0
  %1216 = vmatpush.bf16.msra.mxu0 0
  %1217 = vmatpush.bf16.msra.mxu0 %v919
  %1218 = vmatpush.bf16.msra.mxu0 %v821
  %1219 = vmatpush.bf16.msra.mxu0 %v808
  %1220 = vmatpush.bf16.msra.mxu0 %v795
  %1221 = vmatpush.bf16.msra.mxu0 %v782
  %1222 = vmatmul.bf16.gmra.mxu0 %v1121
  %v1223 = vpop.f32.mrf.mxu0
  %v1224 = vadd.f32 0.0, %v1223
  %v1225 = vpop.f32.mrf.mxu0
  %1226 = vdwg.mxu0
  %1227 = vmatpush.bf16.msra.mxu0 0
  %1228 = vmatpush.bf16.msra.mxu0 0
  %1229 = vmatpush.bf16.msra.mxu0 0
  %1230 = vmatpush.bf16.msra.mxu0 %v922
  %1231 = vmatpush.bf16.msra.mxu0 %v822
  %1232 = vmatpush.bf16.msra.mxu0 %v809
  %1233 = vmatpush.bf16.msra.mxu0 %v796
  %1234 = vmatpush.bf16.msra.mxu0 %v783
  %1235 = vmatmul.bf16.gmra.mxu0 %v1121
  %v1236 = vpop.f32.mrf.mxu0
  %v1237 = vadd.f32 0.0, %v1236
  %v1238 = vpop.f32.mrf.mxu0
  %1239 = vdwg.mxu0
  %1240 = vmatpush.bf16.msra.mxu0 0
  %1241 = vmatpush.bf16.msra.mxu0 0
  %1242 = vmatpush.bf16.msra.mxu0 0
  %1243 = vmatpush.bf16.msra.mxu0 %v925
  %1244 = vmatpush.bf16.msra.mxu0 %v823
  %1245 = vmatpush.bf16.msra.mxu0 %v810
  %1246 = vmatpush.bf16.msra.mxu0 %v797
  %1247 = vmatpush.bf16.msra.mxu0 %v784
  %1248 = vmatmul.bf16.gmra.mxu0 %v1121
  %v1249 = vpop.f32.mrf.mxu0
  %v1250 = vadd.f32 0.0, %v1249
  %v1251 = vpop.f32.mrf.mxu0
  %1252 = vdwg.mxu0
  %1253 = vmatpush.bf16.msra.mxu0 0
  %1254 = vmatpush.bf16.msra.mxu0 0
  %1255 = vmatpush.bf16.msra.mxu0 0
  %1256 = vmatpush.bf16.msra.mxu0 %v928
  %1257 = vmatpush.bf16.msra.mxu0 %v824
  %1258 = vmatpush.bf16.msra.mxu0 %v811
  %1259 = vmatpush.bf16.msra.mxu0 %v798
  %1260 = vmatpush.bf16.msra.mxu0 %v785
  %1261 = vmatmul.bf16.gmra.mxu0 %v1121
  %v1262 = vpop.f32.mrf.mxu0
  %v1263 = vadd.f32 0.0, %v1262
  %v1264 = vpop.f32.mrf.mxu0
  %1265 = vdwg.mxu0
  %1266 = vmatpush.bf16.msra.mxu0 0
  %1267 = vmatpush.bf16.msra.mxu0 0
  %1268 = vmatpush.bf16.msra.mxu0 0
  %1269 = vmatpush.bf16.msra.mxu0 %v931
  %1270 = vmatpush.bf16.msra.mxu0 %v825
  %1271 = vmatpush.bf16.msra.mxu0 %v812
  %1272 = vmatpush.bf16.msra.mxu0 %v799
  %1273 = vmatpush.bf16.msra.mxu0 %v786
  %1274 = vmatmul.bf16.gmra.mxu0 %v1121
  %v1275 = vpop.f32.mrf.mxu0
  %v1276 = vadd.f32 0.0, %v1275
  %v1277 = vpop.f32.mrf.mxu0
  %1278 = vdwg.mxu0
  %1279 = vmatpush.bf16.msra.mxu0 0
  %1280 = vmatpush.bf16.msra.mxu0 0
  %1281 = vmatpush.bf16.msra.mxu0 0
  %1282 = vmatpush.bf16.msra.mxu0 %v934
  %1283 = vmatpush.bf16.msra.mxu0 %v826
  %1284 = vmatpush.bf16.msra.mxu0 %v813
  %1285 = vmatpush.bf16.msra.mxu0 %v800
  %1286 = vmatpush.bf16.msra.mxu0 %v787
  %1287 = vmatmul.bf16.gmra.mxu0 %v1121
  %v1288 = vpop.f32.mrf.mxu0
  %v1289 = vadd.f32 0.0, %v1288
  %v1290 = vpop.f32.mrf.mxu0
  %1291 = vdwg.mxu0
  %v1292 = vld [vmem:[%s2] sm:$0xff]
  %v1293 = vld [vmem:[%s2 + $0x8] sm:$0xff]
  %v1294 = vld [vmem:[%s2 + $0x10] sm:$0xff]
  %v1295 = vld [vmem:[%s2 + $0x18] sm:$0xff]
  %v1296 = vld [vmem:[%s2 + $0x20] sm:$0xff]
  %v1297 = vld [vmem:[%s2 + $0x28] sm:$0xff]
  %v1298 = vld [vmem:[%s2 + $0x30] sm:$0xff]
  %v1299 = vld [vmem:[%s2 + $0x38] sm:$0xff]
  %v1300 = vld [vmem:[%s2 + $0x40] sm:$0xff]
  %v1301 = vld [vmem:[%s2 + $0x48] sm:$0xff]
  %v1302 = vld [vmem:[%s2 + $0x50] sm:$0xff]
  %v1303 = vld [vmem:[%s2 + $0x58] sm:$0xff]
  %v1304 = vld [vmem:[%s2 + $0x60] sm:$0xff]
  %1318 = vrot.lane.b32.xlu0 %v1133, 127
  %v1319 = vpop.permute.xlu0 %1318
  %1320 = vrot.lane.b32.xlu0 %v1146, 127
  %v1321 = vpop.permute.xlu0 %1320
  %1322 = vrot.lane.b32.xlu0 %v1159, 127
  %v1323 = vpop.permute.xlu0 %1322
  %1324 = vrot.lane.b32.xlu0 %v1172, 127
  %v1325 = vpop.permute.xlu0 %1324
  %1326 = vrot.lane.b32.xlu0 %v1185, 127
  %v1327 = vpop.permute.xlu0 %1326
  %1328 = vrot.lane.b32.xlu0 %v1198, 127
  %v1329 = vpop.permute.xlu0 %1328
  %1330 = vrot.lane.b32.xlu0 %v1211, 127
  %v1331 = vpop.permute.xlu0 %1330
  %1332 = vrot.lane.b32.xlu0 %v1224, 127
  %v1333 = vpop.permute.xlu0 %1332
  %1334 = vrot.lane.b32.xlu0 %v1237, 127
  %v1335 = vpop.permute.xlu0 %1334
  %1336 = vrot.lane.b32.xlu0 %v1250, 127
  %v1337 = vpop.permute.xlu0 %1336
  %1338 = vrot.lane.b32.xlu0 %v1263, 127
  %v1339 = vpop.permute.xlu0 %1338
  %1340 = vrot.lane.b32.xlu0 %v1276, 127
  %v1341 = vpop.permute.xlu0 %1340
  %1342 = vrot.lane.b32.xlu0 %v1289, 127
  %v1343 = vpop.permute.xlu0 %1342
  %vm1344 = vcmask 1039360
  %v1345 = vsel %vm1344, %v1319, %v1321
  %v1346 = vsel %vm1344, %v1321, %v1323
  %v1347 = vsel %vm1344, %v1323, %v1325
  %v1348 = vsel %vm1344, %v1325, %v1327
  %v1349 = vsel %vm1344, %v1327, %v1329
  %v1350 = vsel %vm1344, %v1329, %v1331
  %v1351 = vsel %vm1344, %v1331, %v1333
  %v1352 = vsel %vm1344, %v1333, %v1335
  %v1353 = vsel %vm1344, %v1335, %v1337
  %v1354 = vsel %vm1344, %v1337, %v1339
  %v1355 = vsel %vm1344, %v1339, %v1341
  %v1356 = vsel %vm1344, %v1341, %v1343
  %v1370 = vadd.f32 %v1292, %v1345
  %v1371 = vadd.f32 %v1293, %v1346
  %v1372 = vadd.f32 %v1294, %v1347
  %v1373 = vadd.f32 %v1295, %v1348
  %v1374 = vadd.f32 %v1296, %v1349
  %v1375 = vadd.f32 %v1297, %v1350
  %v1376 = vadd.f32 %v1298, %v1351
  %v1377 = vadd.f32 %v1299, %v1352
  %v1378 = vadd.f32 %v1300, %v1353
  %v1379 = vadd.f32 %v1301, %v1354
  %v1380 = vadd.f32 %v1302, %v1355
  %v1381 = vadd.f32 %v1303, %v1356
  %v1382 = vadd.f32 %v1304, %v1343
  %1383 = vst [vmem:[%s2] sm:$0xff] %v1370
  %1384 = vst [vmem:[%s2 + $0x8] sm:$0xff] %v1371
  %1385 = vst [vmem:[%s2 + $0x10] sm:$0xff] %v1372
  %1386 = vst [vmem:[%s2 + $0x18] sm:$0xff] %v1373
  %1387 = vst [vmem:[%s2 + $0x20] sm:$0xff] %v1374
  %1388 = vst [vmem:[%s2 + $0x28] sm:$0xff] %v1375
  %1389 = vst [vmem:[%s2 + $0x30] sm:$0xff] %v1376
  %1390 = vst [vmem:[%s2 + $0x38] sm:$0xff] %v1377
  %1391 = vst [vmem:[%s2 + $0x40] sm:$0xff] %v1378
  %1392 = vst [vmem:[%s2 + $0x48] sm:$0xff] %v1379
  %1393 = vst [vmem:[%s2 + $0x50] sm:$0xff] %v1380
  %1394 = vst [vmem:[%s2 + $0x58] sm:$0xff] %v1381
  %1395 = vst.msk [vmem:[%s2 + $0x60] sm:$0xff] %vm1344, %v1382
  %s1396 = scalar_lea.vmem %s1, 8
  %v1397 = vld [vmem:[%s1396] sm:$0xf]
  %v1399 = vsel %vm892, %v1397, 0
  %1401 = vmatpush.bf16.msra.mxu0 0
  %1402 = vmatpush.bf16.msra.mxu0 0
  %1403 = vmatpush.bf16.msra.mxu0 0
  %1404 = vmatpush.bf16.msra.mxu0 %v898
  %1405 = vmatpush.bf16.msra.mxu0 %v814
  %1406 = vmatpush.bf16.msra.mxu0 %v801
  %1407 = vmatpush.bf16.msra.mxu0 %v788
  %1408 = vmatpush.bf16.msra.mxu0 %v775
  %1409 = vmatmul.bf16.gmra.mxu0 %v1399
  %v1410 = vpop.f32.mrf.mxu0
  %v1411 = vadd.f32 0.0, %v1410
  %v1412 = vpop.f32.mrf.mxu0
  %1413 = vdwg.mxu0
  %1414 = vmatpush.bf16.msra.mxu0 0
  %1415 = vmatpush.bf16.msra.mxu0 0
  %1416 = vmatpush.bf16.msra.mxu0 0
  %1417 = vmatpush.bf16.msra.mxu0 %v901
  %1418 = vmatpush.bf16.msra.mxu0 %v815
  %1419 = vmatpush.bf16.msra.mxu0 %v802
  %1420 = vmatpush.bf16.msra.mxu0 %v789
  %1421 = vmatpush.bf16.msra.mxu0 %v776
  %1422 = vmatmul.bf16.gmra.mxu0 %v1399
  %v1423 = vpop.f32.mrf.mxu0
  %v1424 = vadd.f32 0.0, %v1423
  %v1425 = vpop.f32.mrf.mxu0
  %1426 = vdwg.mxu0
  %1427 = vmatpush.bf16.msra.mxu0 0
  %1428 = vmatpush.bf16.msra.mxu0 0
  %1429 = vmatpush.bf16.msra.mxu0 0
  %1430 = vmatpush.bf16.msra.mxu0 %v904
  %1431 = vmatpush.bf16.msra.mxu0 %v816
  %1432 = vmatpush.bf16.msra.mxu0 %v803
  %1433 = vmatpush.bf16.msra.mxu0 %v790
  %1434 = vmatpush.bf16.msra.mxu0 %v777
  %1435 = vmatmul.bf16.gmra.mxu0 %v1399
  %v1436 = vpop.f32.mrf.mxu0
  %v1437 = vadd.f32 0.0, %v1436
  %v1438 = vpop.f32.mrf.mxu0
  %1439 = vdwg.mxu0
  %1440 = vmatpush.bf16.msra.mxu0 0
  %1441 = vmatpush.bf16.msra.mxu0 0
  %1442 = vmatpush.bf16.msra.mxu0 0
  %1443 = vmatpush.bf16.msra.mxu0 %v907
  %1444 = vmatpush.bf16.msra.mxu0 %v817
  %1445 = vmatpush.bf16.msra.mxu0 %v804
  %1446 = vmatpush.bf16.msra.mxu0 %v791
  %1447 = vmatpush.bf16.msra.mxu0 %v778
  %1448 = vmatmul.bf16.gmra.mxu0 %v1399
  %v1449 = vpop.f32.mrf.mxu0
  %v1450 = vadd.f32 0.0, %v1449
  %v1451 = vpop.f32.mrf.mxu0
  %1452 = vdwg.mxu0
  %1453 = vmatpush.bf16.msra.mxu0 0
  %1454 = vmatpush.bf16.msra.mxu0 0
  %1455 = vmatpush.bf16.msra.mxu0 0
  %1456 = vmatpush.bf16.msra.mxu0 %v910
  %1457 = vmatpush.bf16.msra.mxu0 %v818
  %1458 = vmatpush.bf16.msra.mxu0 %v805
  %1459 = vmatpush.bf16.msra.mxu0 %v792
  %1460 = vmatpush.bf16.msra.mxu0 %v779
  %1461 = vmatmul.bf16.gmra.mxu0 %v1399
  %v1462 = vpop.f32.mrf.mxu0
  %v1463 = vadd.f32 0.0, %v1462
  %v1464 = vpop.f32.mrf.mxu0
  %1465 = vdwg.mxu0
  %1466 = vmatpush.bf16.msra.mxu0 0
  %1467 = vmatpush.bf16.msra.mxu0 0
  %1468 = vmatpush.bf16.msra.mxu0 0
  %1469 = vmatpush.bf16.msra.mxu0 %v913
  %1470 = vmatpush.bf16.msra.mxu0 %v819
  %1471 = vmatpush.bf16.msra.mxu0 %v806
  %1472 = vmatpush.bf16.msra.mxu0 %v793
  %1473 = vmatpush.bf16.msra.mxu0 %v780
  %1474 = vmatmul.bf16.gmra.mxu0 %v1399
  %v1475 = vpop.f32.mrf.mxu0
  %v1476 = vadd.f32 0.0, %v1475
  %v1477 = vpop.f32.mrf.mxu0
  %1478 = vdwg.mxu0
  %1479 = vmatpush.bf16.msra.mxu0 0
  %1480 = vmatpush.bf16.msra.mxu0 0
  %1481 = vmatpush.bf16.msra.mxu0 0
  %1482 = vmatpush.bf16.msra.mxu0 %v916
  %1483 = vmatpush.bf16.msra.mxu0 %v820
  %1484 = vmatpush.bf16.msra.mxu0 %v807
  %1485 = vmatpush.bf16.msra.mxu0 %v794
  %1486 = vmatpush.bf16.msra.mxu0 %v781
  %1487 = vmatmul.bf16.gmra.mxu0 %v1399
  %v1488 = vpop.f32.mrf.mxu0
  %v1489 = vadd.f32 0.0, %v1488
  %v1490 = vpop.f32.mrf.mxu0
  %1491 = vdwg.mxu0
  %1492 = vmatpush.bf16.msra.mxu0 0
  %1493 = vmatpush.bf16.msra.mxu0 0
  %1494 = vmatpush.bf16.msra.mxu0 0
  %1495 = vmatpush.bf16.msra.mxu0 %v919
  %1496 = vmatpush.bf16.msra.mxu0 %v821
  %1497 = vmatpush.bf16.msra.mxu0 %v808
  %1498 = vmatpush.bf16.msra.mxu0 %v795
  %1499 = vmatpush.bf16.msra.mxu0 %v782
  %1500 = vmatmul.bf16.gmra.mxu0 %v1399
  %v1501 = vpop.f32.mrf.mxu0
  %v1502 = vadd.f32 0.0, %v1501
  %v1503 = vpop.f32.mrf.mxu0
  %1504 = vdwg.mxu0
  %1505 = vmatpush.bf16.msra.mxu0 0
  %1506 = vmatpush.bf16.msra.mxu0 0
  %1507 = vmatpush.bf16.msra.mxu0 0
  %1508 = vmatpush.bf16.msra.mxu0 %v922
  %1509 = vmatpush.bf16.msra.mxu0 %v822
  %1510 = vmatpush.bf16.msra.mxu0 %v809
  %1511 = vmatpush.bf16.msra.mxu0 %v796
  %1512 = vmatpush.bf16.msra.mxu0 %v783
  %1513 = vmatmul.bf16.gmra.mxu0 %v1399
  %v1514 = vpop.f32.mrf.mxu0
  %v1515 = vadd.f32 0.0, %v1514
  %v1516 = vpop.f32.mrf.mxu0
  %1517 = vdwg.mxu0
  %1518 = vmatpush.bf16.msra.mxu0 0
  %1519 = vmatpush.bf16.msra.mxu0 0
  %1520 = vmatpush.bf16.msra.mxu0 0
  %1521 = vmatpush.bf16.msra.mxu0 %v925
  %1522 = vmatpush.bf16.msra.mxu0 %v823
  %1523 = vmatpush.bf16.msra.mxu0 %v810
  %1524 = vmatpush.bf16.msra.mxu0 %v797
  %1525 = vmatpush.bf16.msra.mxu0 %v784
  %1526 = vmatmul.bf16.gmra.mxu0 %v1399
  %v1527 = vpop.f32.mrf.mxu0
  %v1528 = vadd.f32 0.0, %v1527
  %v1529 = vpop.f32.mrf.mxu0
  %1530 = vdwg.mxu0
  %1531 = vmatpush.bf16.msra.mxu0 0
  %1532 = vmatpush.bf16.msra.mxu0 0
  %1533 = vmatpush.bf16.msra.mxu0 0
  %1534 = vmatpush.bf16.msra.mxu0 %v928
  %1535 = vmatpush.bf16.msra.mxu0 %v824
  %1536 = vmatpush.bf16.msra.mxu0 %v811
  %1537 = vmatpush.bf16.msra.mxu0 %v798
  %1538 = vmatpush.bf16.msra.mxu0 %v785
  %1539 = vmatmul.bf16.gmra.mxu0 %v1399
  %v1540 = vpop.f32.mrf.mxu0
  %v1541 = vadd.f32 0.0, %v1540
  %v1542 = vpop.f32.mrf.mxu0
  %1543 = vdwg.mxu0
  %1544 = vmatpush.bf16.msra.mxu0 0
  %1545 = vmatpush.bf16.msra.mxu0 0
  %1546 = vmatpush.bf16.msra.mxu0 0
  %1547 = vmatpush.bf16.msra.mxu0 %v931
  %1548 = vmatpush.bf16.msra.mxu0 %v825
  %1549 = vmatpush.bf16.msra.mxu0 %v812
  %1550 = vmatpush.bf16.msra.mxu0 %v799
  %1551 = vmatpush.bf16.msra.mxu0 %v786
  %1552 = vmatmul.bf16.gmra.mxu0 %v1399
  %v1553 = vpop.f32.mrf.mxu0
  %v1554 = vadd.f32 0.0, %v1553
  %v1555 = vpop.f32.mrf.mxu0
  %1556 = vdwg.mxu0
  %1557 = vmatpush.bf16.msra.mxu0 0
  %1558 = vmatpush.bf16.msra.mxu0 0
  %1559 = vmatpush.bf16.msra.mxu0 0
  %1560 = vmatpush.bf16.msra.mxu0 %v934
  %1561 = vmatpush.bf16.msra.mxu0 %v826
  %1562 = vmatpush.bf16.msra.mxu0 %v813
  %1563 = vmatpush.bf16.msra.mxu0 %v800
  %1564 = vmatpush.bf16.msra.mxu0 %v787
  %1565 = vmatmul.bf16.gmra.mxu0 %v1399
  %v1566 = vpop.f32.mrf.mxu0
  %v1567 = vadd.f32 0.0, %v1566
  %v1568 = vpop.f32.mrf.mxu0
  %1569 = vdwg.mxu0
  %v1570 = vld [vmem:[%s2] sm:$0xff]
  %v1571 = vld [vmem:[%s2 + $0x8] sm:$0xff]
  %v1572 = vld [vmem:[%s2 + $0x10] sm:$0xff]
  %v1573 = vld [vmem:[%s2 + $0x18] sm:$0xff]
  %v1574 = vld [vmem:[%s2 + $0x20] sm:$0xff]
  %v1575 = vld [vmem:[%s2 + $0x28] sm:$0xff]
  %v1576 = vld [vmem:[%s2 + $0x30] sm:$0xff]
  %v1577 = vld [vmem:[%s2 + $0x38] sm:$0xff]
  %v1578 = vld [vmem:[%s2 + $0x40] sm:$0xff]
  %v1579 = vld [vmem:[%s2 + $0x48] sm:$0xff]
  %v1580 = vld [vmem:[%s2 + $0x50] sm:$0xff]
  %v1581 = vld [vmem:[%s2 + $0x58] sm:$0xff]
  %v1582 = vld [vmem:[%s2 + $0x60] sm:$0xff]
  %1596 = vrot.lane.b32.xlu0 %v1411, 126
  %v1597 = vpop.permute.xlu0 %1596
  %1598 = vrot.lane.b32.xlu0 %v1424, 126
  %v1599 = vpop.permute.xlu0 %1598
  %1600 = vrot.lane.b32.xlu0 %v1437, 126
  %v1601 = vpop.permute.xlu0 %1600
  %1602 = vrot.lane.b32.xlu0 %v1450, 126
  %v1603 = vpop.permute.xlu0 %1602
  %1604 = vrot.lane.b32.xlu0 %v1463, 126
  %v1605 = vpop.permute.xlu0 %1604
  %1606 = vrot.lane.b32.xlu0 %v1476, 126
  %v1607 = vpop.permute.xlu0 %1606
  %1608 = vrot.lane.b32.xlu0 %v1489, 126
  %v1609 = vpop.permute.xlu0 %1608
  %1610 = vrot.lane.b32.xlu0 %v1502, 126
  %v1611 = vpop.permute.xlu0 %1610
  %1612 = vrot.lane.b32.xlu0 %v1515, 126
  %v1613 = vpop.permute.xlu0 %1612
  %1614 = vrot.lane.b32.xlu0 %v1528, 126
  %v1615 = vpop.permute.xlu0 %1614
  %1616 = vrot.lane.b32.xlu0 %v1541, 126
  %v1617 = vpop.permute.xlu0 %1616
  %1618 = vrot.lane.b32.xlu0 %v1554, 126
  %v1619 = vpop.permute.xlu0 %1618
  %1620 = vrot.lane.b32.xlu0 %v1567, 126
  %v1621 = vpop.permute.xlu0 %1620
  %vm1622 = vcmask 1031168
  %v1623 = vsel %vm1622, %v1597, %v1599
  %v1624 = vsel %vm1622, %v1599, %v1601
  %v1625 = vsel %vm1622, %v1601, %v1603
  %v1626 = vsel %vm1622, %v1603, %v1605
  %v1627 = vsel %vm1622, %v1605, %v1607
  %v1628 = vsel %vm1622, %v1607, %v1609
  %v1629 = vsel %vm1622, %v1609, %v1611
  %v1630 = vsel %vm1622, %v1611, %v1613
  %v1631 = vsel %vm1622, %v1613, %v1615
  %v1632 = vsel %vm1622, %v1615, %v1617
  %v1633 = vsel %vm1622, %v1617, %v1619
  %v1634 = vsel %vm1622, %v1619, %v1621
  %v1648 = vadd.f32 %v1570, %v1623
  %v1649 = vadd.f32 %v1571, %v1624
  %v1650 = vadd.f32 %v1572, %v1625
  %v1651 = vadd.f32 %v1573, %v1626
  %v1652 = vadd.f32 %v1574, %v1627
  %v1653 = vadd.f32 %v1575, %v1628
  %v1654 = vadd.f32 %v1576, %v1629
  %v1655 = vadd.f32 %v1577, %v1630
  %v1656 = vadd.f32 %v1578, %v1631
  %v1657 = vadd.f32 %v1579, %v1632
  %v1658 = vadd.f32 %v1580, %v1633
  %v1659 = vadd.f32 %v1581, %v1634
  %v1660 = vadd.f32 %v1582, %v1621
  %1661 = vst [vmem:[%s2] sm:$0xff] %v1648
  %1662 = vst [vmem:[%s2 + $0x8] sm:$0xff] %v1649
  %1663 = vst [vmem:[%s2 + $0x10] sm:$0xff] %v1650
  %1664 = vst [vmem:[%s2 + $0x18] sm:$0xff] %v1651
  %1665 = vst [vmem:[%s2 + $0x20] sm:$0xff] %v1652
  %1666 = vst [vmem:[%s2 + $0x28] sm:$0xff] %v1653
  %1667 = vst [vmem:[%s2 + $0x30] sm:$0xff] %v1654
  %1668 = vst [vmem:[%s2 + $0x38] sm:$0xff] %v1655
  %1669 = vst [vmem:[%s2 + $0x40] sm:$0xff] %v1656
  %1670 = vst [vmem:[%s2 + $0x48] sm:$0xff] %v1657
  %1671 = vst [vmem:[%s2 + $0x50] sm:$0xff] %v1658
  %1672 = vst [vmem:[%s2 + $0x58] sm:$0xff] %v1659
  %1673 = vst.msk [vmem:[%s2 + $0x60] sm:$0xff] %vm1622, %v1660
  // Predicated region
  $region10: #{_lambda_.3} parent=0 // pred_check
    _
  $region11: #{_lambda_.3} parent=0 // pred_check_branch
    %1675 = sbr.rel (0) target = $region13
  $region12: #{_lambda_.3} parent=0 // pred_region
    _
  $region13: #{_lambda_.3} parent=0 // pred_fallthru
    _
  // Predicated region
  $region14: #{_lambda_.3} parent=0 // pred_check
    _
  $region15: #{_lambda_.3} parent=0 // pred_check_branch
    %1677 = sbr.rel (0) target = $region17
  $region16: #{_lambda_.3} parent=0 // pred_region
    _
  $region17: #{_lambda_.3} parent=0 // pred_fallthru
    _

</llo_original>
